<compile_context>
chip_gen: v7x
topology: tpu7x:2x2x1
jax: 0.10.0
libtpu: 0.0.40
codegen_flags: <defaults>
</compile_context>

<pallas_src>
import jax
import jax.numpy as jnp
import numpy as np
from jax.experimental import pallas as pl
from jax.experimental.pallas import tpu as pltpu

# ----------------- WaveNet constructor configuration (small, synthetic) -----
NUM_BLOCKS  = 2          # num_blocks
RES_LAYERS  = 3          # residual_layers
GLOBAL_COND = True       # global_conditioning
GC_SPEAKERS = 5          # gc_speakers
IN_CHANNELS = 256        # hard-coded in the PyTorch module (input_conv)
RC          = 32         # residual_channels
DC          = 32         # dilation_channels
SC          = 128        # skip_channels
EC          = 64         # end_channels
OC          = 32         # output_channels
OC_PAD      = ((OC + 127) // 128) * 128   # lane-dense padded output width

NL             = NUM_BLOCKS * RES_LAYERS
RESIDUAL_FIELD = sum(2 ** l for l in range(RES_LAYERS)) * NUM_BLOCKS

# Problem sizes
B = 2
L = 32
T = L - RESIDUAL_FIELD   # target_length

# Roll-based causal shift correctness relies on (row < d) masking of the rows
# wrapped by pltpu.roll; that only covers them if every dilation d < L.
assert all((2 ** l) < L for l in range(RES_LAYERS)), "dilation must be < L"
assert L > RESIDUAL_FIELD, "input length must exceed the residual field"


# --------------------------------- kernel -----------------------------------
def wavenet_kernel(x_ref, win_ref, wfgp_ref, wfgc_ref, wrs_ref, gcb_ref,
                   w1_ref, b1_ref, w2_ref, b2_ref, o_ref):
    bf16 = jnp.bfloat16

    x = x_ref[...]                                               # (L, 256) bf16
    # input_conv (1x1, no bias) -> residual stream, kept in f32
    res = jnp.dot(x, win_ref[...], preferred_element_type=jnp.float32)   # (L, RC)

    # causal masks for the distinct dilations, hoisted out of the layer loop
    row = jax.lax.broadcasted_iota(jnp.int32, (L, 1), 0)
    masks = {d: row < d for d in sorted({2 ** l for l in range(RES_LAYERS)})}

    # per-batch global-conditioning row biases ([filt | 0.5*gate]), loaded once
    gcb = gcb_ref[...]                                           # (NL, 2*DC) f32

    final = jnp.zeros((L, SC), jnp.float32)                      # skip accumulator

    for blk in range(NUM_BLOCKS):
        for layer in range(RES_LAYERS):
            i = blk * RES_LAYERS + layer
            d = 2 ** layer

            # causal shift within this batch element: shifted[t] = res[t - d],
            # zero for t < d.  roll -> XLU slot, mask -> one f32 select.
            shifted = jnp.where(masks[d], 0.0,
                                pltpu.roll(res, shift=d, axis=0))

            # fused [filter | gate] gated conv as TWO accumulating dots
            # (no lane-offset concat); bf16 only at the MXU operands.
            fg = (jnp.dot(shifted.astype(bf16), wfgp_ref[i],
                          preferred_element_type=jnp.float32)
                  + jnp.dot(res.astype(bf16), wfgc_ref[i],
                            preferred_element_type=jnp.float32))   # (L, 2*DC)

            if GLOBAL_COND:
                fg = fg + gcb[i:i + 1, :]          # broadcast row bias

            # single-tanh gated activation:
            #   gate columns already carry the 0.5 factor (wrapper),
            #   sigmoid(g) = 0.5 * (1 + tanh(g / 2))
            t = jnp.tanh(fg)
            out = (t[:, :DC] * (0.5 + 0.5 * t[:, DC:])).astype(bf16)   # (L, DC)

            # fused skip + residual 1x1 convs: one (L,DC) x (DC,SC+RC) matmul
            rs = jnp.dot(out, wrs_ref[i], preferred_element_type=jnp.float32)
            final = final + rs[:, :SC]       # skip  (lanes 0:128, clean vreg)
            res = res + rs[:, SC:]           # residual update (lanes 128:160)

    # final 1x1 convs on all L steps; wrapper slices the last T steps.
    h = jnp.maximum(final, 0.0).astype(bf16)
    h = jnp.dot(h, w1_ref[...], preferred_element_type=jnp.float32) + b1_ref[...]
    h = jnp.maximum(h, 0.0).astype(bf16)
    y = jnp.dot(h, w2_ref[...], preferred_element_type=jnp.float32) + b2_ref[...]
    o_ref[...] = y.astype(o_ref.dtype)       # (L, 128) lane-dense store


# --------------------------------- wrapper -----------------------------------
def wavenet_forward(params, inputs_ncl, conditioning):
    """inputs_ncl: (B, 256, L) float32 (PyTorch NCL); conditioning: (B, gc_speakers)."""
    Bn, Cin, Ln = inputs_ncl.shape
    assert (Bn, Cin, Ln) == (B, IN_CHANNELS, L)

    bf16 = jnp.bfloat16

    # (B, C, L) -> (B, L, C): time on sublanes, channels on lanes, bf16 operand.
    x = jnp.transpose(inputs_ncl, (0, 2, 1)).astype(bf16)        # (B, L, 256)

    if GLOBAL_COND:
        gc_f = (conditioning @ params["w_gcf"].T).astype(jnp.float32)   # (B, NL)
        gc_g = (conditioning @ params["w_gcg"].T).astype(jnp.float32)
    else:
        gc_f = jnp.zeros((B, NL), jnp.float32)
        gc_g = jnp.zeros((B, NL), jnp.float32)
    # per-batch row bias [filt | 0.5*gate]  (0.5 from sigmoid(g)=0.5*(1+tanh(g/2)))
    gcb = jnp.concatenate(
        [jnp.broadcast_to(gc_f[:, :, None], (B, NL, DC)),
         jnp.broadcast_to(0.5 * gc_g[:, :, None], (B, NL, DC))],
        axis=-1).astype(jnp.float32)                              # (B, NL, 2*DC)

    # ---- weight packing (once, in the wrapper) ----
    # [filter | 0.5*gate] N-fused gated-conv weights, kept as two K-halves so
    # the kernel issues two accumulating dots instead of a lane concat.
    w_fg_prev = jnp.concatenate(
        [params["wf_prev"], 0.5 * params["wg_prev"]], axis=-1).astype(bf16)  # (NL,RC,2DC)
    w_fg_cur = jnp.concatenate(
        [params["wf_cur"], 0.5 * params["wg_cur"]], axis=-1).astype(bf16)    # (NL,RC,2DC)
    # [skip | residual] fused 1x1 weight: (NL, DC, SC+RC)
    w_rs = jnp.concatenate([params["ws"], params["wr"]], axis=-1).astype(bf16)
    w_in = params["w_in"].astype(bf16)
    w1 = params["w1"].astype(bf16)
    b1 = params["b1"].astype(jnp.float32)
    w2p = jnp.zeros((EC, OC_PAD), jnp.float32).at[:, :OC].set(params["w2"]).astype(bf16)
    b2p = jnp.zeros((1, OC_PAD), jnp.float32).at[:, :OC].set(params["b2"])

    # advisory cost estimate so XLA schedules surrounding ops around this call
    flops = 2 * B * L * (IN_CHANNELS * RC
                         + NL * ((2 * RC) * (2 * DC) + DC * (SC + RC))
                         + SC * EC + EC * OC_PAD)
    bytes_accessed = int(
        sum(int(a.size) * a.dtype.itemsize
            for a in (x, w_in, w_fg_prev, w_fg_cur, w_rs, gcb, w1, b1, w2p, b2p))
        + B * L * OC_PAD * 4)
    cost = pl.CostEstimate(flops=flops,
                           transcendentals=B * L * (2 * DC) * NL,   # one tanh/layer
                           bytes_accessed=bytes_accessed)

    grid_spec = pltpu.PrefetchScalarGridSpec(
        num_scalar_prefetch=0,
        grid=(B,),                                        # batch axis -> parallel grid
        in_specs=[
            pl.BlockSpec((None, L, IN_CHANNELS), lambda b: (b, 0, 0)),   # x
            pl.BlockSpec((IN_CHANNELS, RC),      lambda b: (0, 0)),      # w_in
            pl.BlockSpec((NL, RC, 2 * DC),       lambda b: (0, 0, 0)),   # w_fg_prev
            pl.BlockSpec((NL, RC, 2 * DC),       lambda b: (0, 0, 0)),   # w_fg_cur
            pl.BlockSpec((NL, DC, SC + RC),      lambda b: (0, 0, 0)),   # w_rs
            pl.BlockSpec((None, NL, 2 * DC),     lambda b: (b, 0, 0)),   # gcb
            pl.BlockSpec((SC, EC),               lambda b: (0, 0)),      # w1
            pl.BlockSpec((1, EC),                lambda b: (0, 0)),      # b1
            pl.BlockSpec((EC, OC_PAD),           lambda b: (0, 0)),      # w2 (padded)
            pl.BlockSpec((1, OC_PAD),            lambda b: (0, 0)),      # b2 (padded)
        ],
        out_specs=pl.BlockSpec((None, L, OC_PAD), lambda b: (b, 0, 0)),
    )

    out_full = pl.pallas_call(
        wavenet_kernel,
        grid_spec=grid_spec,
        out_shape=jax.ShapeDtypeStruct((B, L, OC_PAD), jnp.float32),
        compiler_params=pltpu.CompilerParams(dimension_semantics=("parallel",)),
        cost_estimate=cost,
    )(x, w_in, w_fg_prev, w_fg_cur, w_rs, gcb, w1, b1, w2p, b2p)

    # slice the last target_length steps per batch and drop the lane padding;
    # matches torch: x.transpose(1, 2).contiguous().view(n * l, c)
    out = out_full[:, L - T:, :OC]
    return out.reshape(B * T, OC)


# ------------------------ pure-JAX reference (for checking) ------------------
def wavenet_reference(params, inputs_ncl, conditioning):
    x = jnp.transpose(inputs_ncl, (0, 2, 1)).astype(jnp.float32)       # (B, L, C)
    res = x @ params["w_in"]
    gc_f = conditioning @ params["w_gcf"].T                            # (B, NL)
    gc_g = conditioning @ params["w_gcg"].T
    final = jnp.zeros((B, T, SC), jnp.float32)
    for blk in range(NUM_BLOCKS):
        for layer in range(RES_LAYERS):
            i = blk * RES_LAYERS + layer
            d = 2 ** layer
            shifted = jnp.concatenate(
                [jnp.zeros((B, d, RC), jnp.float32), res[:, : L - d, :]], axis=1)
            filt = shifted @ params["wf_prev"][i] + res @ params["wf_cur"][i]
            gate = shifted @ params["wg_prev"][i] + res @ params["wg_cur"][i]
            if GLOBAL_COND:
                filt = filt + gc_f[:, i][:, None, None]
                gate = gate + gc_g[:, i][:, None, None]
            out = jnp.tanh(filt) * jax.nn.sigmoid(gate)
            res = out @ params["wr"][i] + res
            skip = out @ params["ws"][i]
            final = final + skip[:, L - T:, :]
    h = jnp.maximum(final, 0.0)
    h = jnp.maximum(h @ params["w1"] + params["b1"], 0.0)
    y = h @ params["w2"] + params["b2"]
    return y.reshape(B * T, OC)


# --------------------------- deterministic params ----------------------------
def init_params(key):
    ks = jax.random.split(key, 13)
    s = 0.05
    f32 = jnp.float32
    return {
        "w_in":    jax.random.normal(ks[0],  (IN_CHANNELS, RC), f32) * s,
        "wf_prev": jax.random.normal(ks[1],  (NL, RC, DC), f32) * s,
        "wf_cur":  jax.random.normal(ks[2],  (NL, RC, DC), f32) * s,
        "wg_prev": jax.random.normal(ks[3],  (NL, RC, DC), f32) * s,
        "wg_cur":  jax.random.normal(ks[4],  (NL, RC, DC), f32) * s,
        "wr":      jax.random.normal(ks[5],  (NL, DC, RC), f32) * s,
        "ws":      jax.random.normal(ks[6],  (NL, DC, SC), f32) * s,
        "w1":      jax.random.normal(ks[7],  (SC, EC), f32) * s,
        "b1":      jax.random.normal(ks[8],  (1, EC), f32) * s,
        "w2":      jax.random.normal(ks[9],  (EC, OC), f32) * s,
        "b2":      jax.random.normal(ks[10], (1, OC), f32) * s,
        "w_gcf":   jax.random.normal(ks[11], (NL, GC_SPEAKERS), f32) * s,
        "w_gcg":   jax.random.normal(ks[12], (NL, GC_SPEAKERS), f32) * s,
    }


if __name__ == "__main__":
    key = jax.random.PRNGKey(0)
    k_in, k_cond, k_param = jax.random.split(key, 3)

    inputs = jax.random.normal(k_in, (B, IN_CHANNELS, L), jnp.float32)      # NCL
    speaker = jax.random.randint(k_cond, (B,), 0, GC_SPEAKERS)
    conditioning = jax.nn.one_hot(speaker, GC_SPEAKERS, dtype=jnp.float32)  # (B, 5)

    params = init_params(k_param)

    out = wavenet_forward(params, inputs, conditioning)
    out = jax.block_until_ready(out)

    assert out.shape == (B * T, OC), out.shape
    ref = wavenet_reference(params, inputs, conditioning)
    # bf16 MXU operands (f32 accumulation) + tanh-only gating rewrite ->
    # slightly looser tolerance than pure f32
    np.testing.assert_allclose(np.asarray(out), np.asarray(ref), rtol=5e-2, atol=1e-2)

    print("KERNEL_OK")
</pallas_src>

<mosaic_0001>
module attributes {stable_mosaic.version = 11 : i64} {
  func.func @wavenet_kernel(%arg0: i32, %arg1: memref<1x32x256xbf16, #tpu.memory_space<vmem>>, %arg2: memref<256x32xbf16, #tpu.memory_space<vmem>>, %arg3: memref<6x32x64xbf16, #tpu.memory_space<vmem>>, %arg4: memref<6x32x64xbf16, #tpu.memory_space<vmem>>, %arg5: memref<6x32x160xbf16, #tpu.memory_space<vmem>>, %arg6: memref<1x6x64xf32, #tpu.memory_space<vmem>>, %arg7: memref<128x64xbf16, #tpu.memory_space<vmem>>, %arg8: memref<1x64xf32, #tpu.memory_space<vmem>>, %arg9: memref<64x128xbf16, #tpu.memory_space<vmem>>, %arg10: memref<1x128xf32, #tpu.memory_space<vmem>>, %arg11: memref<1x32x128xf32, #tpu.memory_space<vmem>>) attributes {dimension_semantics = [#tpu.dimension_semantics<parallel>], iteration_bounds = array<i64: 2>, scalar_prefetch = 0 : i64, scratch_operands = 0 : i64, tpu.core_type = #tpu.core_type<tc>, window_params = [{transform_indices = @transform_0, window_bounds = array<i64: 1, 32, 256>}, {pipeline_mode = #tpu.pipeline_mode<synchronous>, transform_indices = @transform_1, window_bounds = array<i64: 256, 32>}, {pipeline_mode = #tpu.pipeline_mode<synchronous>, transform_indices = @transform_2, window_bounds = array<i64: 6, 32, 64>}, {pipeline_mode = #tpu.pipeline_mode<synchronous>, transform_indices = @transform_3, window_bounds = array<i64: 6, 32, 64>}, {pipeline_mode = #tpu.pipeline_mode<synchronous>, transform_indices = @transform_4, window_bounds = array<i64: 6, 32, 160>}, {transform_indices = @transform_5, window_bounds = array<i64: 1, 6, 64>}, {pipeline_mode = #tpu.pipeline_mode<synchronous>, transform_indices = @transform_6, window_bounds = array<i64: 128, 64>}, {pipeline_mode = #tpu.pipeline_mode<synchronous>, transform_indices = @transform_7, window_bounds = array<i64: 1, 64>}, {pipeline_mode = #tpu.pipeline_mode<synchronous>, transform_indices = @transform_8, window_bounds = array<i64: 64, 128>}, {pipeline_mode = #tpu.pipeline_mode<synchronous>, transform_indices = @transform_9, window_bounds = array<i64: 1, 128>}, {transform_indices = @transform_10, window_bounds = array<i64: 1, 32, 128>}]} {
    %c0 = arith.constant 0 : index
    %c0_0 = arith.constant 0 : index
    %c0_1 = arith.constant 0 : index
    %0 = vector.load %arg1[%c0, %c0_0, %c0_1] : memref<1x32x256xbf16, #tpu.memory_space<vmem>>, vector<1x32x256xbf16>
    %1 = vector.shape_cast %0 : vector<1x32x256xbf16> to vector<32x256xbf16>
    %c0_2 = arith.constant 0 : index
    %c0_3 = arith.constant 0 : index
    %2 = vector.load %arg2[%c0_2, %c0_3] : memref<256x32xbf16, #tpu.memory_space<vmem>>, vector<256x32xbf16>
    %cst = arith.constant dense<0.000000e+00> : vector<32x32xf32>
    %3 = tpu.matmul %1, %2, %cst {dimension_numbers = #tpu.dot_dimension_numbers<[1], [0], [0], [1], [0, 0, 1, 1], [], []>} : vector<32x256xbf16>, vector<256x32xbf16>, vector<32x32xf32> -> vector<32x32xf32>
    %4 = tpu.iota {dimensions = array<i32: 0>} : vector<32x1xi32>
    %c1_i32 = arith.constant 1 : i32
    %5 = vector.broadcast %c1_i32 : i32 to vector<32x1xi32>
    %6 = arith.cmpi slt, %4, %5 : vector<32x1xi32>
    %c2_i32 = arith.constant 2 : i32
    %7 = vector.broadcast %c2_i32 : i32 to vector<32x1xi32>
    %8 = arith.cmpi slt, %4, %7 : vector<32x1xi32>
    %c4_i32 = arith.constant 4 : i32
    %9 = vector.broadcast %c4_i32 : i32 to vector<32x1xi32>
    %10 = arith.cmpi slt, %4, %9 : vector<32x1xi32>
    %c0_4 = arith.constant 0 : index
    %c0_5 = arith.constant 0 : index
    %c0_6 = arith.constant 0 : index
    %11 = vector.load %arg6[%c0_4, %c0_5, %c0_6] : memref<1x6x64xf32, #tpu.memory_space<vmem>>, vector<1x6x64xf32>
    %12 = vector.shape_cast %11 : vector<1x6x64xf32> to vector<6x64xf32>
    %cst_7 = arith.constant 0.000000e+00 : f32
    %13 = vector.broadcast %cst_7 : f32 to vector<32x128xf32>
    %c1_i32_8 = arith.constant 1 : i32
    %14 = tpu.dynamic_rotate %3 by %c1_i32_8 dim 0 : vector<32x32xf32>, i32 -> vector<32x32xf32>
    %cst_9 = arith.constant 0.000000e+00 : f32
    %15 = vector.shape_cast %6 : vector<32x1xi1> to vector<32x1xi1>
    %16 = vector.broadcast %15 : vector<32x1xi1> to vector<32x32xi1>
    %17 = vector.broadcast %cst_9 : f32 to vector<32x32xf32>
    %18 = arith.select %16, %17, %14 : vector<32x32xi1>, vector<32x32xf32>
    %19 = arith.truncf %18 : vector<32x32xf32> to vector<32x32xbf16>
    %c0_10 = arith.constant 0 : index
    %c0_11 = arith.constant 0 : index
    %c0_12 = arith.constant 0 : index
    %20 = vector.load %arg3[%c0_10, %c0_11, %c0_12] : memref<6x32x64xbf16, #tpu.memory_space<vmem>>, vector<1x32x64xbf16>
    %21 = vector.shape_cast %20 : vector<1x32x64xbf16> to vector<32x64xbf16>
    %cst_13 = arith.constant dense<0.000000e+00> : vector<32x64xf32>
    %22 = tpu.matmul %19, %21, %cst_13 {dimension_numbers = #tpu.dot_dimension_numbers<[1], [0], [0], [1], [0, 0, 1, 1], [], []>} : vector<32x32xbf16>, vector<32x64xbf16>, vector<32x64xf32> -> vector<32x64xf32>
    %23 = arith.truncf %3 : vector<32x32xf32> to vector<32x32xbf16>
    %c0_14 = arith.constant 0 : index
    %c0_15 = arith.constant 0 : index
    %c0_16 = arith.constant 0 : index
    %24 = vector.load %arg4[%c0_14, %c0_15, %c0_16] : memref<6x32x64xbf16, #tpu.memory_space<vmem>>, vector<1x32x64xbf16>
    %25 = vector.shape_cast %24 : vector<1x32x64xbf16> to vector<32x64xbf16>
    %cst_17 = arith.constant dense<0.000000e+00> : vector<32x64xf32>
    %26 = tpu.matmul %23, %25, %cst_17 {dimension_numbers = #tpu.dot_dimension_numbers<[1], [0], [0], [1], [0, 0, 1, 1], [], []>} : vector<32x32xbf16>, vector<32x64xbf16>, vector<32x64xf32> -> vector<32x64xf32>
    %27 = arith.addf %22, %26 : vector<32x64xf32>
    %28 = vector.extract_strided_slice %12 {offsets = [0, 0], sizes = [1, 64], strides = [1, 1]} : vector<6x64xf32> to vector<1x64xf32>
    %29 = vector.broadcast %28 : vector<1x64xf32> to vector<32x64xf32>
    %30 = arith.addf %27, %29 : vector<32x64xf32>
    %31 = math.tanh %30 : vector<32x64xf32>
    %32 = vector.extract_strided_slice %31 {offsets = [0, 0], sizes = [32, 32], strides = [1, 1]} : vector<32x64xf32> to vector<32x32xf32>
    %33 = vector.extract_strided_slice %31 {offsets = [0, 32], sizes = [32, 32], strides = [1, 1]} : vector<32x64xf32> to vector<32x32xf32>
    %cst_18 = arith.constant 5.000000e-01 : f32
    %34 = vector.broadcast %cst_18 : f32 to vector<32x32xf32>
    %35 = arith.mulf %34, %33 : vector<32x32xf32>
    %cst_19 = arith.constant 5.000000e-01 : f32
    %36 = vector.broadcast %cst_19 : f32 to vector<32x32xf32>
    %37 = arith.addf %36, %35 : vector<32x32xf32>
    %38 = arith.mulf %32, %37 : vector<32x32xf32>
    %39 = arith.truncf %38 : vector<32x32xf32> to vector<32x32xbf16>
    %c0_20 = arith.constant 0 : index
    %c0_21 = arith.constant 0 : index
    %c0_22 = arith.constant 0 : index
    %40 = vector.load %arg5[%c0_20, %c0_21, %c0_22] : memref<6x32x160xbf16, #tpu.memory_space<vmem>>, vector<1x32x160xbf16>
    %41 = vector.shape_cast %40 : vector<1x32x160xbf16> to vector<32x160xbf16>
    %cst_23 = arith.constant dense<0.000000e+00> : vector<32x160xf32>
    %42 = tpu.matmul %39, %41, %cst_23 {dimension_numbers = #tpu.dot_dimension_numbers<[1], [0], [0], [1], [0, 0, 1, 1], [], []>} : vector<32x32xbf16>, vector<32x160xbf16>, vector<32x160xf32> -> vector<32x160xf32>
    %43 = vector.extract_strided_slice %42 {offsets = [0, 0], sizes = [32, 128], strides = [1, 1]} : vector<32x160xf32> to vector<32x128xf32>
    %44 = arith.addf %13, %43 : vector<32x128xf32>
    %45 = vector.extract_strided_slice %42 {offsets = [0, 128], sizes = [32, 32], strides = [1, 1]} : vector<32x160xf32> to vector<32x32xf32>
    %46 = arith.addf %3, %45 : vector<32x32xf32>
    %c2_i32_24 = arith.constant 2 : i32
    %47 = tpu.dynamic_rotate %46 by %c2_i32_24 dim 0 : vector<32x32xf32>, i32 -> vector<32x32xf32>
    %cst_25 = arith.constant 0.000000e+00 : f32
    %48 = vector.shape_cast %8 : vector<32x1xi1> to vector<32x1xi1>
    %49 = vector.broadcast %48 : vector<32x1xi1> to vector<32x32xi1>
    %50 = vector.broadcast %cst_25 : f32 to vector<32x32xf32>
    %51 = arith.select %49, %50, %47 : vector<32x32xi1>, vector<32x32xf32>
    %52 = arith.truncf %51 : vector<32x32xf32> to vector<32x32xbf16>
    %c1 = arith.constant 1 : index
    %c0_26 = arith.constant 0 : index
    %c0_27 = arith.constant 0 : index
    %53 = vector.load %arg3[%c1, %c0_26, %c0_27] : memref<6x32x64xbf16, #tpu.memory_space<vmem>>, vector<1x32x64xbf16>
    %54 = vector.shape_cast %53 : vector<1x32x64xbf16> to vector<32x64xbf16>
    %cst_28 = arith.constant dense<0.000000e+00> : vector<32x64xf32>
    %55 = tpu.matmul %52, %54, %cst_28 {dimension_numbers = #tpu.dot_dimension_numbers<[1], [0], [0], [1], [0, 0, 1, 1], [], []>} : vector<32x32xbf16>, vector<32x64xbf16>, vector<32x64xf32> -> vector<32x64xf32>
    %56 = arith.truncf %46 : vector<32x32xf32> to vector<32x32xbf16>
    %c1_29 = arith.constant 1 : index
    %c0_30 = arith.constant 0 : index
    %c0_31 = arith.constant 0 : index
    %57 = vector.load %arg4[%c1_29, %c0_30, %c0_31] : memref<6x32x64xbf16, #tpu.memory_space<vmem>>, vector<1x32x64xbf16>
    %58 = vector.shape_cast %57 : vector<1x32x64xbf16> to vector<32x64xbf16>
    %cst_32 = arith.constant dense<0.000000e+00> : vector<32x64xf32>
    %59 = tpu.matmul %56, %58, %cst_32 {dimension_numbers = #tpu.dot_dimension_numbers<[1], [0], [0], [1], [0, 0, 1, 1], [], []>} : vector<32x32xbf16>, vector<32x64xbf16>, vector<32x64xf32> -> vector<32x64xf32>
    %60 = arith.addf %55, %59 : vector<32x64xf32>
    %61 = vector.extract_strided_slice %12 {offsets = [1, 0], sizes = [1, 64], strides = [1, 1]} : vector<6x64xf32> to vector<1x64xf32>
    %62 = vector.broadcast %61 : vector<1x64xf32> to vector<32x64xf32>
    %63 = arith.addf %60, %62 : vector<32x64xf32>
    %64 = math.tanh %63 : vector<32x64xf32>
    %65 = vector.extract_strided_slice %64 {offsets = [0, 0], sizes = [32, 32], strides = [1, 1]} : vector<32x64xf32> to vector<32x32xf32>
    %66 = vector.extract_strided_slice %64 {offsets = [0, 32], sizes = [32, 32], strides = [1, 1]} : vector<32x64xf32> to vector<32x32xf32>
    %cst_33 = arith.constant 5.000000e-01 : f32
    %67 = vector.broadcast %cst_33 : f32 to vector<32x32xf32>
    %68 = arith.mulf %67, %66 : vector<32x32xf32>
    %cst_34 = arith.constant 5.000000e-01 : f32
    %69 = vector.broadcast %cst_34 : f32 to vector<32x32xf32>
    %70 = arith.addf %69, %68 : vector<32x32xf32>
    %71 = arith.mulf %65, %70 : vector<32x32xf32>
    %72 = arith.truncf %71 : vector<32x32xf32> to vector<32x32xbf16>
    %c1_35 = arith.constant 1 : index
    %c0_36 = arith.constant 0 : index
    %c0_37 = arith.constant 0 : index
    %73 = vector.load %arg5[%c1_35, %c0_36, %c0_37] : memref<6x32x160xbf16, #tpu.memory_space<vmem>>, vector<1x32x160xbf16>
    %74 = vector.shape_cast %73 : vector<1x32x160xbf16> to vector<32x160xbf16>
    %cst_38 = arith.constant dense<0.000000e+00> : vector<32x160xf32>
    %75 = tpu.matmul %72, %74, %cst_38 {dimension_numbers = #tpu.dot_dimension_numbers<[1], [0], [0], [1], [0, 0, 1, 1], [], []>} : vector<32x32xbf16>, vector<32x160xbf16>, vector<32x160xf32> -> vector<32x160xf32>
    %76 = vector.extract_strided_slice %75 {offsets = [0, 0], sizes = [32, 128], strides = [1, 1]} : vector<32x160xf32> to vector<32x128xf32>
    %77 = arith.addf %44, %76 : vector<32x128xf32>
    %78 = vector.extract_strided_slice %75 {offsets = [0, 128], sizes = [32, 32], strides = [1, 1]} : vector<32x160xf32> to vector<32x32xf32>
    %79 = arith.addf %46, %78 : vector<32x32xf32>
    %c4_i32_39 = arith.constant 4 : i32
    %80 = tpu.dynamic_rotate %79 by %c4_i32_39 dim 0 : vector<32x32xf32>, i32 -> vector<32x32xf32>
    %cst_40 = arith.constant 0.000000e+00 : f32
    %81 = vector.shape_cast %10 : vector<32x1xi1> to vector<32x1xi1>
    %82 = vector.broadcast %81 : vector<32x1xi1> to vector<32x32xi1>
    %83 = vector.broadcast %cst_40 : f32 to vector<32x32xf32>
    %84 = arith.select %82, %83, %80 : vector<32x32xi1>, vector<32x32xf32>
    %85 = arith.truncf %84 : vector<32x32xf32> to vector<32x32xbf16>
    %c2 = arith.constant 2 : index
    %c0_41 = arith.constant 0 : index
    %c0_42 = arith.constant 0 : index
    %86 = vector.load %arg3[%c2, %c0_41, %c0_42] : memref<6x32x64xbf16, #tpu.memory_space<vmem>>, vector<1x32x64xbf16>
    %87 = vector.shape_cast %86 : vector<1x32x64xbf16> to vector<32x64xbf16>
    %cst_43 = arith.constant dense<0.000000e+00> : vector<32x64xf32>
    %88 = tpu.matmul %85, %87, %cst_43 {dimension_numbers = #tpu.dot_dimension_numbers<[1], [0], [0], [1], [0, 0, 1, 1], [], []>} : vector<32x32xbf16>, vector<32x64xbf16>, vector<32x64xf32> -> vector<32x64xf32>
    %89 = arith.truncf %79 : vector<32x32xf32> to vector<32x32xbf16>
    %c2_44 = arith.constant 2 : index
    %c0_45 = arith.constant 0 : index
    %c0_46 = arith.constant 0 : index
    %90 = vector.load %arg4[%c2_44, %c0_45, %c0_46] : memref<6x32x64xbf16, #tpu.memory_space<vmem>>, vector<1x32x64xbf16>
    %91 = vector.shape_cast %90 : vector<1x32x64xbf16> to vector<32x64xbf16>
    %cst_47 = arith.constant dense<0.000000e+00> : vector<32x64xf32>
    %92 = tpu.matmul %89, %91, %cst_47 {dimension_numbers = #tpu.dot_dimension_numbers<[1], [0], [0], [1], [0, 0, 1, 1], [], []>} : vector<32x32xbf16>, vector<32x64xbf16>, vector<32x64xf32> -> vector<32x64xf32>
    %93 = arith.addf %88, %92 : vector<32x64xf32>
    %94 = vector.extract_strided_slice %12 {offsets = [2, 0], sizes = [1, 64], strides = [1, 1]} : vector<6x64xf32> to vector<1x64xf32>
    %95 = vector.broadcast %94 : vector<1x64xf32> to vector<32x64xf32>
    %96 = arith.addf %93, %95 : vector<32x64xf32>
    %97 = math.tanh %96 : vector<32x64xf32>
    %98 = vector.extract_strided_slice %97 {offsets = [0, 0], sizes = [32, 32], strides = [1, 1]} : vector<32x64xf32> to vector<32x32xf32>
    %99 = vector.extract_strided_slice %97 {offsets = [0, 32], sizes = [32, 32], strides = [1, 1]} : vector<32x64xf32> to vector<32x32xf32>
    %cst_48 = arith.constant 5.000000e-01 : f32
    %100 = vector.broadcast %cst_48 : f32 to vector<32x32xf32>
    %101 = arith.mulf %100, %99 : vector<32x32xf32>
    %cst_49 = arith.constant 5.000000e-01 : f32
    %102 = vector.broadcast %cst_49 : f32 to vector<32x32xf32>
    %103 = arith.addf %102, %101 : vector<32x32xf32>
    %104 = arith.mulf %98, %103 : vector<32x32xf32>
    %105 = arith.truncf %104 : vector<32x32xf32> to vector<32x32xbf16>
    %c2_50 = arith.constant 2 : index
    %c0_51 = arith.constant 0 : index
    %c0_52 = arith.constant 0 : index
    %106 = vector.load %arg5[%c2_50, %c0_51, %c0_52] : memref<6x32x160xbf16, #tpu.memory_space<vmem>>, vector<1x32x160xbf16>
    %107 = vector.shape_cast %106 : vector<1x32x160xbf16> to vector<32x160xbf16>
    %cst_53 = arith.constant dense<0.000000e+00> : vector<32x160xf32>
    %108 = tpu.matmul %105, %107, %cst_53 {dimension_numbers = #tpu.dot_dimension_numbers<[1], [0], [0], [1], [0, 0, 1, 1], [], []>} : vector<32x32xbf16>, vector<32x160xbf16>, vector<32x160xf32> -> vector<32x160xf32>
    %109 = vector.extract_strided_slice %108 {offsets = [0, 0], sizes = [32, 128], strides = [1, 1]} : vector<32x160xf32> to vector<32x128xf32>
    %110 = arith.addf %77, %109 : vector<32x128xf32>
    %111 = vector.extract_strided_slice %108 {offsets = [0, 128], sizes = [32, 32], strides = [1, 1]} : vector<32x160xf32> to vector<32x32xf32>
    %112 = arith.addf %79, %111 : vector<32x32xf32>
    %c1_i32_54 = arith.constant 1 : i32
    %113 = tpu.dynamic_rotate %112 by %c1_i32_54 dim 0 : vector<32x32xf32>, i32 -> vector<32x32xf32>
    %cst_55 = arith.constant 0.000000e+00 : f32
    %114 = vector.shape_cast %6 : vector<32x1xi1> to vector<32x1xi1>
    %115 = vector.broadcast %114 : vector<32x1xi1> to vector<32x32xi1>
    %116 = vector.broadcast %cst_55 : f32 to vector<32x32xf32>
    %117 = arith.select %115, %116, %113 : vector<32x32xi1>, vector<32x32xf32>
    %118 = arith.truncf %117 : vector<32x32xf32> to vector<32x32xbf16>
    %c3 = arith.constant 3 : index
    %c0_56 = arith.constant 0 : index
    %c0_57 = arith.constant 0 : index
    %119 = vector.load %arg3[%c3, %c0_56, %c0_57] : memref<6x32x64xbf16, #tpu.memory_space<vmem>>, vector<1x32x64xbf16>
    %120 = vector.shape_cast %119 : vector<1x32x64xbf16> to vector<32x64xbf16>
    %cst_58 = arith.constant dense<0.000000e+00> : vector<32x64xf32>
    %121 = tpu.matmul %118, %120, %cst_58 {dimension_numbers = #tpu.dot_dimension_numbers<[1], [0], [0], [1], [0, 0, 1, 1], [], []>} : vector<32x32xbf16>, vector<32x64xbf16>, vector<32x64xf32> -> vector<32x64xf32>
    %122 = arith.truncf %112 : vector<32x32xf32> to vector<32x32xbf16>
    %c3_59 = arith.constant 3 : index
    %c0_60 = arith.constant 0 : index
    %c0_61 = arith.constant 0 : index
    %123 = vector.load %arg4[%c3_59, %c0_60, %c0_61] : memref<6x32x64xbf16, #tpu.memory_space<vmem>>, vector<1x32x64xbf16>
    %124 = vector.shape_cast %123 : vector<1x32x64xbf16> to vector<32x64xbf16>
    %cst_62 = arith.constant dense<0.000000e+00> : vector<32x64xf32>
    %125 = tpu.matmul %122, %124, %cst_62 {dimension_numbers = #tpu.dot_dimension_numbers<[1], [0], [0], [1], [0, 0, 1, 1], [], []>} : vector<32x32xbf16>, vector<32x64xbf16>, vector<32x64xf32> -> vector<32x64xf32>
    %126 = arith.addf %121, %125 : vector<32x64xf32>
    %127 = vector.extract_strided_slice %12 {offsets = [3, 0], sizes = [1, 64], strides = [1, 1]} : vector<6x64xf32> to vector<1x64xf32>
    %128 = vector.broadcast %127 : vector<1x64xf32> to vector<32x64xf32>
    %129 = arith.addf %126, %128 : vector<32x64xf32>
    %130 = math.tanh %129 : vector<32x64xf32>
    %131 = vector.extract_strided_slice %130 {offsets = [0, 0], sizes = [32, 32], strides = [1, 1]} : vector<32x64xf32> to vector<32x32xf32>
    %132 = vector.extract_strided_slice %130 {offsets = [0, 32], sizes = [32, 32], strides = [1, 1]} : vector<32x64xf32> to vector<32x32xf32>
    %cst_63 = arith.constant 5.000000e-01 : f32
    %133 = vector.broadcast %cst_63 : f32 to vector<32x32xf32>
    %134 = arith.mulf %133, %132 : vector<32x32xf32>
    %cst_64 = arith.constant 5.000000e-01 : f32
    %135 = vector.broadcast %cst_64 : f32 to vector<32x32xf32>
    %136 = arith.addf %135, %134 : vector<32x32xf32>
    %137 = arith.mulf %131, %136 : vector<32x32xf32>
    %138 = arith.truncf %137 : vector<32x32xf32> to vector<32x32xbf16>
    %c3_65 = arith.constant 3 : index
    %c0_66 = arith.constant 0 : index
    %c0_67 = arith.constant 0 : index
    %139 = vector.load %arg5[%c3_65, %c0_66, %c0_67] : memref<6x32x160xbf16, #tpu.memory_space<vmem>>, vector<1x32x160xbf16>
    %140 = vector.shape_cast %139 : vector<1x32x160xbf16> to vector<32x160xbf16>
    %cst_68 = arith.constant dense<0.000000e+00> : vector<32x160xf32>
    %141 = tpu.matmul %138, %140, %cst_68 {dimension_numbers = #tpu.dot_dimension_numbers<[1], [0], [0], [1], [0, 0, 1, 1], [], []>} : vector<32x32xbf16>, vector<32x160xbf16>, vector<32x160xf32> -> vector<32x160xf32>
    %142 = vector.extract_strided_slice %141 {offsets = [0, 0], sizes = [32, 128], strides = [1, 1]} : vector<32x160xf32> to vector<32x128xf32>
    %143 = arith.addf %110, %142 : vector<32x128xf32>
    %144 = vector.extract_strided_slice %141 {offsets = [0, 128], sizes = [32, 32], strides = [1, 1]} : vector<32x160xf32> to vector<32x32xf32>
    %145 = arith.addf %112, %144 : vector<32x32xf32>
    %c2_i32_69 = arith.constant 2 : i32
    %146 = tpu.dynamic_rotate %145 by %c2_i32_69 dim 0 : vector<32x32xf32>, i32 -> vector<32x32xf32>
    %cst_70 = arith.constant 0.000000e+00 : f32
    %147 = vector.shape_cast %8 : vector<32x1xi1> to vector<32x1xi1>
    %148 = vector.broadcast %147 : vector<32x1xi1> to vector<32x32xi1>
    %149 = vector.broadcast %cst_70 : f32 to vector<32x32xf32>
    %150 = arith.select %148, %149, %146 : vector<32x32xi1>, vector<32x32xf32>
    %151 = arith.truncf %150 : vector<32x32xf32> to vector<32x32xbf16>
    %c4 = arith.constant 4 : index
    %c0_71 = arith.constant 0 : index
    %c0_72 = arith.constant 0 : index
    %152 = vector.load %arg3[%c4, %c0_71, %c0_72] : memref<6x32x64xbf16, #tpu.memory_space<vmem>>, vector<1x32x64xbf16>
    %153 = vector.shape_cast %152 : vector<1x32x64xbf16> to vector<32x64xbf16>
    %cst_73 = arith.constant dense<0.000000e+00> : vector<32x64xf32>
    %154 = tpu.matmul %151, %153, %cst_73 {dimension_numbers = #tpu.dot_dimension_numbers<[1], [0], [0], [1], [0, 0, 1, 1], [], []>} : vector<32x32xbf16>, vector<32x64xbf16>, vector<32x64xf32> -> vector<32x64xf32>
    %155 = arith.truncf %145 : vector<32x32xf32> to vector<32x32xbf16>
    %c4_74 = arith.constant 4 : index
    %c0_75 = arith.constant 0 : index
    %c0_76 = arith.constant 0 : index
    %156 = vector.load %arg4[%c4_74, %c0_75, %c0_76] : memref<6x32x64xbf16, #tpu.memory_space<vmem>>, vector<1x32x64xbf16>
    %157 = vector.shape_cast %156 : vector<1x32x64xbf16> to vector<32x64xbf16>
    %cst_77 = arith.constant dense<0.000000e+00> : vector<32x64xf32>
    %158 = tpu.matmul %155, %157, %cst_77 {dimension_numbers = #tpu.dot_dimension_numbers<[1], [0], [0], [1], [0, 0, 1, 1], [], []>} : vector<32x32xbf16>, vector<32x64xbf16>, vector<32x64xf32> -> vector<32x64xf32>
    %159 = arith.addf %154, %158 : vector<32x64xf32>
    %160 = vector.extract_strided_slice %12 {offsets = [4, 0], sizes = [1, 64], strides = [1, 1]} : vector<6x64xf32> to vector<1x64xf32>
    %161 = vector.broadcast %160 : vector<1x64xf32> to vector<32x64xf32>
    %162 = arith.addf %159, %161 : vector<32x64xf32>
    %163 = math.tanh %162 : vector<32x64xf32>
    %164 = vector.extract_strided_slice %163 {offsets = [0, 0], sizes = [32, 32], strides = [1, 1]} : vector<32x64xf32> to vector<32x32xf32>
    %165 = vector.extract_strided_slice %163 {offsets = [0, 32], sizes = [32, 32], strides = [1, 1]} : vector<32x64xf32> to vector<32x32xf32>
    %cst_78 = arith.constant 5.000000e-01 : f32
    %166 = vector.broadcast %cst_78 : f32 to vector<32x32xf32>
    %167 = arith.mulf %166, %165 : vector<32x32xf32>
    %cst_79 = arith.constant 5.000000e-01 : f32
    %168 = vector.broadcast %cst_79 : f32 to vector<32x32xf32>
    %169 = arith.addf %168, %167 : vector<32x32xf32>
    %170 = arith.mulf %164, %169 : vector<32x32xf32>
    %171 = arith.truncf %170 : vector<32x32xf32> to vector<32x32xbf16>
    %c4_80 = arith.constant 4 : index
    %c0_81 = arith.constant 0 : index
    %c0_82 = arith.constant 0 : index
    %172 = vector.load %arg5[%c4_80, %c0_81, %c0_82] : memref<6x32x160xbf16, #tpu.memory_space<vmem>>, vector<1x32x160xbf16>
    %173 = vector.shape_cast %172 : vector<1x32x160xbf16> to vector<32x160xbf16>
    %cst_83 = arith.constant dense<0.000000e+00> : vector<32x160xf32>
    %174 = tpu.matmul %171, %173, %cst_83 {dimension_numbers = #tpu.dot_dimension_numbers<[1], [0], [0], [1], [0, 0, 1, 1], [], []>} : vector<32x32xbf16>, vector<32x160xbf16>, vector<32x160xf32> -> vector<32x160xf32>
    %175 = vector.extract_strided_slice %174 {offsets = [0, 0], sizes = [32, 128], strides = [1, 1]} : vector<32x160xf32> to vector<32x128xf32>
    %176 = arith.addf %143, %175 : vector<32x128xf32>
    %177 = vector.extract_strided_slice %174 {offsets = [0, 128], sizes = [32, 32], strides = [1, 1]} : vector<32x160xf32> to vector<32x32xf32>
    %178 = arith.addf %145, %177 : vector<32x32xf32>
    %c4_i32_84 = arith.constant 4 : i32
    %179 = tpu.dynamic_rotate %178 by %c4_i32_84 dim 0 : vector<32x32xf32>, i32 -> vector<32x32xf32>
    %cst_85 = arith.constant 0.000000e+00 : f32
    %180 = vector.shape_cast %10 : vector<32x1xi1> to vector<32x1xi1>
    %181 = vector.broadcast %180 : vector<32x1xi1> to vector<32x32xi1>
    %182 = vector.broadcast %cst_85 : f32 to vector<32x32xf32>
    %183 = arith.select %181, %182, %179 : vector<32x32xi1>, vector<32x32xf32>
    %184 = arith.truncf %183 : vector<32x32xf32> to vector<32x32xbf16>
    %c5 = arith.constant 5 : index
    %c0_86 = arith.constant 0 : index
    %c0_87 = arith.constant 0 : index
    %185 = vector.load %arg3[%c5, %c0_86, %c0_87] : memref<6x32x64xbf16, #tpu.memory_space<vmem>>, vector<1x32x64xbf16>
    %186 = vector.shape_cast %185 : vector<1x32x64xbf16> to vector<32x64xbf16>
    %cst_88 = arith.constant dense<0.000000e+00> : vector<32x64xf32>
    %187 = tpu.matmul %184, %186, %cst_88 {dimension_numbers = #tpu.dot_dimension_numbers<[1], [0], [0], [1], [0, 0, 1, 1], [], []>} : vector<32x32xbf16>, vector<32x64xbf16>, vector<32x64xf32> -> vector<32x64xf32>
    %188 = arith.truncf %178 : vector<32x32xf32> to vector<32x32xbf16>
    %c5_89 = arith.constant 5 : index
    %c0_90 = arith.constant 0 : index
    %c0_91 = arith.constant 0 : index
    %189 = vector.load %arg4[%c5_89, %c0_90, %c0_91] : memref<6x32x64xbf16, #tpu.memory_space<vmem>>, vector<1x32x64xbf16>
    %190 = vector.shape_cast %189 : vector<1x32x64xbf16> to vector<32x64xbf16>
    %cst_92 = arith.constant dense<0.000000e+00> : vector<32x64xf32>
    %191 = tpu.matmul %188, %190, %cst_92 {dimension_numbers = #tpu.dot_dimension_numbers<[1], [0], [0], [1], [0, 0, 1, 1], [], []>} : vector<32x32xbf16>, vector<32x64xbf16>, vector<32x64xf32> -> vector<32x64xf32>
    %192 = arith.addf %187, %191 : vector<32x64xf32>
    %193 = vector.extract_strided_slice %12 {offsets = [5, 0], sizes = [1, 64], strides = [1, 1]} : vector<6x64xf32> to vector<1x64xf32>
    %194 = vector.broadcast %193 : vector<1x64xf32> to vector<32x64xf32>
    %195 = arith.addf %192, %194 : vector<32x64xf32>
    %196 = math.tanh %195 : vector<32x64xf32>
    %197 = vector.extract_strided_slice %196 {offsets = [0, 0], sizes = [32, 32], strides = [1, 1]} : vector<32x64xf32> to vector<32x32xf32>
    %198 = vector.extract_strided_slice %196 {offsets = [0, 32], sizes = [32, 32], strides = [1, 1]} : vector<32x64xf32> to vector<32x32xf32>
    %cst_93 = arith.constant 5.000000e-01 : f32
    %199 = vector.broadcast %cst_93 : f32 to vector<32x32xf32>
    %200 = arith.mulf %199, %198 : vector<32x32xf32>
    %cst_94 = arith.constant 5.000000e-01 : f32
    %201 = vector.broadcast %cst_94 : f32 to vector<32x32xf32>
    %202 = arith.addf %201, %200 : vector<32x32xf32>
    %203 = arith.mulf %197, %202 : vector<32x32xf32>
    %204 = arith.truncf %203 : vector<32x32xf32> to vector<32x32xbf16>
    %c5_95 = arith.constant 5 : index
    %c0_96 = arith.constant 0 : index
    %c0_97 = arith.constant 0 : index
    %205 = vector.load %arg5[%c5_95, %c0_96, %c0_97] : memref<6x32x160xbf16, #tpu.memory_space<vmem>>, vector<1x32x160xbf16>
    %206 = vector.shape_cast %205 : vector<1x32x160xbf16> to vector<32x160xbf16>
    %cst_98 = arith.constant dense<0.000000e+00> : vector<32x160xf32>
    %207 = tpu.matmul %204, %206, %cst_98 {dimension_numbers = #tpu.dot_dimension_numbers<[1], [0], [0], [1], [0, 0, 1, 1], [], []>} : vector<32x32xbf16>, vector<32x160xbf16>, vector<32x160xf32> -> vector<32x160xf32>
    %208 = vector.extract_strided_slice %207 {offsets = [0, 0], sizes = [32, 128], strides = [1, 1]} : vector<32x160xf32> to vector<32x128xf32>
    %209 = arith.addf %176, %208 : vector<32x128xf32>
    %cst_99 = arith.constant 0.000000e+00 : f32
    %210 = vector.broadcast %cst_99 : f32 to vector<32x128xf32>
    %211 = arith.maximumf %209, %210 : vector<32x128xf32>
    %212 = arith.truncf %211 : vector<32x128xf32> to vector<32x128xbf16>
    %c0_100 = arith.constant 0 : index
    %c0_101 = arith.constant 0 : index
    %213 = vector.load %arg7[%c0_100, %c0_101] : memref<128x64xbf16, #tpu.memory_space<vmem>>, vector<128x64xbf16>
    %cst_102 = arith.constant dense<0.000000e+00> : vector<32x64xf32>
    %214 = tpu.matmul %212, %213, %cst_102 {dimension_numbers = #tpu.dot_dimension_numbers<[1], [0], [0], [1], [0, 0, 1, 1], [], []>} : vector<32x128xbf16>, vector<128x64xbf16>, vector<32x64xf32> -> vector<32x64xf32>
    %c0_103 = arith.constant 0 : index
    %c0_104 = arith.constant 0 : index
    %215 = vector.load %arg8[%c0_103, %c0_104] : memref<1x64xf32, #tpu.memory_space<vmem>>, vector<1x64xf32>
    %216 = vector.broadcast %215 : vector<1x64xf32> to vector<32x64xf32>
    %217 = arith.addf %214, %216 : vector<32x64xf32>
    %cst_105 = arith.constant 0.000000e+00 : f32
    %218 = vector.broadcast %cst_105 : f32 to vector<32x64xf32>
    %219 = arith.maximumf %217, %218 : vector<32x64xf32>
    %220 = arith.truncf %219 : vector<32x64xf32> to vector<32x64xbf16>
    %c0_106 = arith.constant 0 : index
    %c0_107 = arith.constant 0 : index
    %221 = vector.load %arg9[%c0_106, %c0_107] : memref<64x128xbf16, #tpu.memory_space<vmem>>, vector<64x128xbf16>
    %cst_108 = arith.constant dense<0.000000e+00> : vector<32x128xf32>
    %222 = tpu.matmul %220, %221, %cst_108 {dimension_numbers = #tpu.dot_dimension_numbers<[1], [0], [0], [1], [0, 0, 1, 1], [], []>} : vector<32x64xbf16>, vector<64x128xbf16>, vector<32x128xf32> -> vector<32x128xf32>
    %c0_109 = arith.constant 0 : index
    %c0_110 = arith.constant 0 : index
    %223 = vector.load %arg10[%c0_109, %c0_110] : memref<1x128xf32, #tpu.memory_space<vmem>>, vector<1x128xf32>
    %224 = vector.broadcast %223 : vector<1x128xf32> to vector<32x128xf32>
    %225 = arith.addf %222, %224 : vector<32x128xf32>
    %c0_111 = arith.constant 0 : index
    %c0_112 = arith.constant 0 : index
    %c0_113 = arith.constant 0 : index
    %226 = vector.load %arg11[%c0_111, %c0_112, %c0_113] : memref<1x32x128xf32, #tpu.memory_space<vmem>>, vector<1x32x128xf32>
    %227 = vector.shape_cast %226 : vector<1x32x128xf32> to vector<32x128xf32>
    %228 = vector.shape_cast %225 : vector<32x128xf32> to vector<1x32x128xf32>
    tpu.vector_store %arg11[%c0_111, %c0_112, %c0_113], %228 {strides = array<i32>} : memref<1x32x128xf32, #tpu.memory_space<vmem>>, vector<1x32x128xf32>,
    return
  }
  func.func @transform_0(%arg0: i32) -> (i32, i32, i32) {
    %c0_i32 = arith.constant 0 : i32
    %c0_i32_0 = arith.constant 0 : i32
    %c0_i32_1 = arith.constant 0 : i32
    return %arg0, %c0_i32, %c0_i32_0 : i32, i32, i32
  }
  func.func @transform_1(%arg0: i32) -> (i32, i32) {
    %c0_i32 = arith.constant 0 : i32
    %c0_i32_0 = arith.constant 0 : i32
    %c0_i32_1 = arith.constant 0 : i32
    return %c0_i32, %c0_i32_0 : i32, i32
  }
  func.func @transform_2(%arg0: i32) -> (i32, i32, i32) {
    %c0_i32 = arith.constant 0 : i32
    %c0_i32_0 = arith.constant 0 : i32
    %c0_i32_1 = arith.constant 0 : i32
    %c0_i32_2 = arith.constant 0 : i32
    return %c0_i32, %c0_i32_0, %c0_i32_1 : i32, i32, i32
  }
  func.func @transform_3(%arg0: i32) -> (i32, i32, i32) {
    %c0_i32 = arith.constant 0 : i32
    %c0_i32_0 = arith.constant 0 : i32
    %c0_i32_1 = arith.constant 0 : i32
    %c0_i32_2 = arith.constant 0 : i32
    return %c0_i32, %c0_i32_0, %c0_i32_1 : i32, i32, i32
  }
  func.func @transform_4(%arg0: i32) -> (i32, i32, i32) {
    %c0_i32 = arith.constant 0 : i32
    %c0_i32_0 = arith.constant 0 : i32
    %c0_i32_1 = arith.constant 0 : i32
    %c0_i32_2 = arith.constant 0 : i32
    return %c0_i32, %c0_i32_0, %c0_i32_1 : i32, i32, i32
  }
  func.func @transform_5(%arg0: i32) -> (i32, i32, i32) {
    %c0_i32 = arith.constant 0 : i32
    %c0_i32_0 = arith.constant 0 : i32
    %c0_i32_1 = arith.constant 0 : i32
    return %arg0, %c0_i32, %c0_i32_0 : i32, i32, i32
  }
  func.func @transform_6(%arg0: i32) -> (i32, i32) {
    %c0_i32 = arith.constant 0 : i32
    %c0_i32_0 = arith.constant 0 : i32
    %c0_i32_1 = arith.constant 0 : i32
    return %c0_i32, %c0_i32_0 : i32, i32
  }
  func.func @transform_7(%arg0: i32) -> (i32, i32) {
    %c0_i32 = arith.constant 0 : i32
    %c0_i32_0 = arith.constant 0 : i32
    %c0_i32_1 = arith.constant 0 : i32
    return %c0_i32, %c0_i32_0 : i32, i32
  }
  func.func @transform_8(%arg0: i32) -> (i32, i32) {
    %c0_i32 = arith.constant 0 : i32
    %c0_i32_0 = arith.constant 0 : i32
    %c0_i32_1 = arith.constant 0 : i32
    return %c0_i32, %c0_i32_0 : i32, i32
  }
  func.func @transform_9(%arg0: i32) -> (i32, i32) {
    %c0_i32 = arith.constant 0 : i32
    %c0_i32_0 = arith.constant 0 : i32
    %c0_i32_1 = arith.constant 0 : i32
    return %c0_i32, %c0_i32_0 : i32, i32
  }
  func.func @transform_10(%arg0: i32) -> (i32, i32, i32) {
    %c0_i32 = arith.constant 0 : i32
    %c0_i32_0 = arith.constant 0 : i32
    %c0_i32_1 = arith.constant 0 : i32
    return %arg0, %c0_i32, %c0_i32_0 : i32, i32, i32
  }
}

</mosaic_0001>

<llo_original>
// kernel: tpu_custom_call.1
$region0: #{tpu_custom_call.1}
  #allocation0 [shape = 'u32[]', space=smem, size = 0x4, offset = 0x4, fixed_abs, tag = 'smem constant byte address 0x4 - core index']
  #allocation1 [shape = 'u32[144,128]{1,0:T(1,128)}', space=vmem, size = 0x12000, scoped, tag = 'internal scratch']
  %s0 = inlined_call_operand.hbm [shape: bf16[2,32,256], index: 0, kind: input, shape index: {}]
  %s1 = inlined_call_operand.vmem [shape: bf16[256,32], index: 1, kind: input, shape index: {}]
  %s2 = inlined_call_operand.vmem [shape: bf16[6,32,64], index: 2, kind: input, shape index: {}]
  %s3 = inlined_call_operand.hbm [shape: bf16[6,32,64], index: 3, kind: input, shape index: {}]
  %s4 = inlined_call_operand.vmem [shape: bf16[6,32,160], index: 4, kind: input, shape index: {}]
  %s5 = inlined_call_operand.vmem [shape: f32[2,6,64], index: 5, kind: input, shape index: {}]
  %s6 = inlined_call_operand.vmem [shape: bf16[128,64], index: 6, kind: input, shape index: {}]
  %s7 = inlined_call_operand.vmem [shape: f32[1,64], index: 7, kind: input, shape index: {}]
  %s8 = inlined_call_operand.hbm [shape: bf16[64,128], index: 8, kind: input, shape index: {}]
  %s9 = inlined_call_operand.vmem [shape: f32[1,128], index: 9, kind: input, shape index: {}]
  %s10 = inlined_call_operand.hbm [shape: f32[2,32,128], index: 10, kind: output, shape index: {}]
  %s11 = sld [smem:[#allocation0]]
  $region85: #{tpu_custom_call.1} parent=0
    _
  %s13 = ssub.s32 1, %s11
  %s14 = scalar_select 0, %s13, %s11
  $region1: #{tpu_custom_call.1} parent=0
    #allocation2 [shape = 'u8[32768]{0}', space=vmem, size = 0x8000, scoped, tag = 'input window, operand 0']
    #allocation3 [shape = 's32[2]{0}', space=sflag, size = 0x8, scoped, tag = 'scoped memory for tpu_custom_call.1']
    #allocation4 [shape = 's32[2]{0}', space=sflag, size = 0x8, scoped, tag = 'scoped memory for tpu_custom_call.1']
    #allocation5 [shape = 'u8[49152]{0}', space=vmem, size = 0xc000, scoped, tag = 'input window, operand 3, single buffered']
    #allocation6 [shape = 's32[1]{0}', space=sflag, size = 0x4, scoped, tag = 'scoped memory for tpu_custom_call.1']
    #allocation7 [shape = 'u8[16384]{0}', space=vmem, size = 0x4000, scoped, tag = 'input window, operand 8, single buffered']
    #allocation8 [shape = 'u8[32768]{0}', space=vmem, size = 0x8000, scoped, tag = 'output window, operand 0']
    %15 = vsyncpa [#allocation3], 0
    %s16 = scalar_lea.sflag [#allocation3], 1
    %17 = vsyncpa %s16, 0
    %18 = vsyncpa [#allocation6], 0
    %19 = vsyncpa [#allocation4], 0
    %s20 = scalar_lea.sflag [#allocation4], 1
    %21 = vsyncpa %s20, 0
    loop: start=0, step=1, limit=4
    $region2: #{tpu_custom_call.1} parent=1 // loop_pre_header
      _
    $region3: #{tpu_custom_call.1} parent=1 // loop_header
      %s23 = sphi 0, %s27
      %p24 = scmp.ge.s32.totalorder %s23, 4
      %s33 = sphi 0, %s35
      %s36 = sphi 0, %s33
      %s37 = sphi 0, %s36
      %s53 = sphi 0, %s37
      %s57 = sphi 0, %s57
      %s59 = sphi 0, %s57
      %s60 = sphi 0, %s59
      %s74 = sphi 0, %s60
      %s78 = sphi 0, %s78
      %s80 = sphi 0, %s78
      %s81 = sphi 0, %s80
      %s95 = sphi 0, %s81
      %s99 = sphi 0, %s99
      %s101 = sphi 0, %s99
      %s102 = sphi 0, %s101
      %s116 = sphi 0, %s102
      %s120 = sphi 0, %s120
      %s122 = sphi 0, %s120
      %s123 = sphi 0, %s122
      %s137 = sphi 0, %s123
      %s143 = sphi 0, %s145
      %s146 = sphi 0, %s143
      %s147 = sphi 0, %s146
      %s163 = sphi 0, %s147
      %s167 = sphi 0, %s167
      %s169 = sphi 0, %s167
      %s170 = sphi 0, %s169
      %s184 = sphi 0, %s170
      %s188 = sphi 0, %s188
      %s190 = sphi 0, %s188
      %s191 = sphi 0, %s190
      %s205 = sphi 0, %s191
      %s209 = sphi 0, %s209
      %s211 = sphi 0, %s209
      %s212 = sphi 0, %s211
      %s226 = sphi 0, %s212
      %s230 = sphi 0, %s230
      %s232 = sphi 0, %s230
      %s233 = sphi 0, %s232
      %s247 = sphi 0, %s233
      %s253 = sphi 0, %s255
      %s256 = sphi 0, %s253
      %s257 = sphi 0, %s256
      %s273 = sphi 0, %s257
    $region4: #{tpu_custom_call.1} parent=1 // loop_header_branch
      %26 = sbr.rel (%p24) target = $region8
    $region5: #{tpu_custom_call.1} parent=1 // loop_body
      %s28 = ssub.s32 %s23, 1
      %s29 = ssub.s32 %s23, 2
      %s30 = sadd.s32 %s23, 1
      %s31 = ssub.s32 %s23, %s30
      %p32 = scmp.eq.s32.totalorder %s31, 0
      %s34 = sadd.s32 %s33, 1
      %s35 = scalar_select %p32, %s33, %s34
      %p38 = pneg %p32
      %p39 = scmp.eq.s32.totalorder %s23, 1
      %p40 = por %p38, %p39
      %p41 = scmp.ne.s32.totalorder %s33, %s36
      %p42 = scmp.eq.s32.totalorder %s23, 0
      %p43 = por %p41, %p42
      %p44 = scmp.ne.s32.totalorder %s33, %s36
      %p45 = scmp.eq.s32.totalorder %s28, 1
      %p46 = por %p44, %p45
      %p47 = scmp.ne.s32.totalorder %s36, %s37
      %p48 = scmp.eq.s32.totalorder %s28, 0
      %p49 = por %p47, %p48
      %p50 = scmp.ne.s32.totalorder %s36, %s37
      %p51 = scmp.eq.s32.totalorder %s29, 1
      %p52 = por %p50, %p51
      %p54 = scmp.ne.s32.totalorder %s37, %s53
      %p55 = scmp.eq.s32.totalorder %s29, 0
      %p56 = por %p54, %p55
      %s58 = sadd.s32 %s57, 1
      %p61 = scmp.eq.s32.totalorder %s23, 1
      %p62 = scmp.ne.s32.totalorder %s57, %s59
      %p63 = scmp.eq.s32.totalorder %s23, 0
      %p64 = por %p62, %p63
      %p65 = scmp.ne.s32.totalorder %s57, %s59
      %p66 = scmp.eq.s32.totalorder %s28, 1
      %p67 = por %p65, %p66
      %p68 = scmp.ne.s32.totalorder %s59, %s60
      %p69 = scmp.eq.s32.totalorder %s28, 0
      %p70 = por %p68, %p69
      %p71 = scmp.ne.s32.totalorder %s59, %s60
      %p72 = scmp.eq.s32.totalorder %s29, 1
      %p73 = por %p71, %p72
      %p75 = scmp.ne.s32.totalorder %s60, %s74
      %p76 = scmp.eq.s32.totalorder %s29, 0
      %p77 = por %p75, %p76
      %s79 = sadd.s32 %s78, 1
      %p82 = scmp.eq.s32.totalorder %s23, 1
      %p83 = scmp.ne.s32.totalorder %s78, %s80
      %p84 = scmp.eq.s32.totalorder %s23, 0
      %p85 = por %p83, %p84
      %p86 = scmp.ne.s32.totalorder %s78, %s80
      %p87 = scmp.eq.s32.totalorder %s28, 1
      %p88 = por %p86, %p87
      %p89 = scmp.ne.s32.totalorder %s80, %s81
      %p90 = scmp.eq.s32.totalorder %s28, 0
      %p91 = por %p89, %p90
      %p92 = scmp.ne.s32.totalorder %s80, %s81
      %p93 = scmp.eq.s32.totalorder %s29, 1
      %p94 = por %p92, %p93
      %p96 = scmp.ne.s32.totalorder %s81, %s95
      %p97 = scmp.eq.s32.totalorder %s29, 0
      %p98 = por %p96, %p97
      %s100 = sadd.s32 %s99, 1
      %p103 = scmp.eq.s32.totalorder %s23, 1
      %p104 = scmp.ne.s32.totalorder %s99, %s101
      %p105 = scmp.eq.s32.totalorder %s23, 0
      %p106 = por %p104, %p105
      %p107 = scmp.ne.s32.totalorder %s99, %s101
      %p108 = scmp.eq.s32.totalorder %s28, 1
      %p109 = por %p107, %p108
      %p110 = scmp.ne.s32.totalorder %s101, %s102
      %p111 = scmp.eq.s32.totalorder %s28, 0
      %p112 = por %p110, %p111
      %p113 = scmp.ne.s32.totalorder %s101, %s102
      %p114 = scmp.eq.s32.totalorder %s29, 1
      %p115 = por %p113, %p114
      %p117 = scmp.ne.s32.totalorder %s102, %s116
      %p118 = scmp.eq.s32.totalorder %s29, 0
      %p119 = por %p117, %p118
      %s121 = sadd.s32 %s120, 1
      %p124 = scmp.eq.s32.totalorder %s23, 1
      %p125 = scmp.ne.s32.totalorder %s120, %s122
      %p126 = scmp.eq.s32.totalorder %s23, 0
      %p127 = por %p125, %p126
      %p128 = scmp.ne.s32.totalorder %s120, %s122
      %p129 = scmp.eq.s32.totalorder %s28, 1
      %p130 = por %p128, %p129
      %p131 = scmp.ne.s32.totalorder %s122, %s123
      %p132 = scmp.eq.s32.totalorder %s28, 0
      %p133 = por %p131, %p132
      %p134 = scmp.ne.s32.totalorder %s122, %s123
      %p135 = scmp.eq.s32.totalorder %s29, 1
      %p136 = por %p134, %p135
      %p138 = scmp.ne.s32.totalorder %s123, %s137
      %p139 = scmp.eq.s32.totalorder %s29, 0
      %p140 = por %p138, %p139
      %s141 = ssub.s32 %s23, %s30
      %p142 = scmp.eq.s32.totalorder %s141, 0
      %s144 = sadd.s32 %s143, 1
      %s145 = scalar_select %p142, %s143, %s144
      %p148 = pneg %p142
      %p149 = scmp.eq.s32.totalorder %s23, 1
      %p150 = por %p148, %p149
      %p151 = scmp.ne.s32.totalorder %s143, %s146
      %p152 = scmp.eq.s32.totalorder %s23, 0
      %p153 = por %p151, %p152
      %p154 = scmp.ne.s32.totalorder %s143, %s146
      %p155 = scmp.eq.s32.totalorder %s28, 1
      %p156 = por %p154, %p155
      %p157 = scmp.ne.s32.totalorder %s146, %s147
      %p158 = scmp.eq.s32.totalorder %s28, 0
      %p159 = por %p157, %p158
      %p160 = scmp.ne.s32.totalorder %s146, %s147
      %p161 = scmp.eq.s32.totalorder %s29, 1
      %p162 = por %p160, %p161
      %p164 = scmp.ne.s32.totalorder %s147, %s163
      %p165 = scmp.eq.s32.totalorder %s29, 0
      %p166 = por %p164, %p165
      %s168 = sadd.s32 %s167, 1
      %p171 = scmp.eq.s32.totalorder %s23, 1
      %p172 = scmp.ne.s32.totalorder %s167, %s169
      %p173 = scmp.eq.s32.totalorder %s23, 0
      %p174 = por %p172, %p173
      %p175 = scmp.ne.s32.totalorder %s167, %s169
      %p176 = scmp.eq.s32.totalorder %s28, 1
      %p177 = por %p175, %p176
      %p178 = scmp.ne.s32.totalorder %s169, %s170
      %p179 = scmp.eq.s32.totalorder %s28, 0
      %p180 = por %p178, %p179
      %p181 = scmp.ne.s32.totalorder %s169, %s170
      %p182 = scmp.eq.s32.totalorder %s29, 1
      %p183 = por %p181, %p182
      %p185 = scmp.ne.s32.totalorder %s170, %s184
      %p186 = scmp.eq.s32.totalorder %s29, 0
      %p187 = por %p185, %p186
      %s189 = sadd.s32 %s188, 1
      %p192 = scmp.eq.s32.totalorder %s23, 1
      %p193 = scmp.ne.s32.totalorder %s188, %s190
      %p194 = scmp.eq.s32.totalorder %s23, 0
      %p195 = por %p193, %p194
      %p196 = scmp.ne.s32.totalorder %s188, %s190
      %p197 = scmp.eq.s32.totalorder %s28, 1
      %p198 = por %p196, %p197
      %p199 = scmp.ne.s32.totalorder %s190, %s191
      %p200 = scmp.eq.s32.totalorder %s28, 0
      %p201 = por %p199, %p200
      %p202 = scmp.ne.s32.totalorder %s190, %s191
      %p203 = scmp.eq.s32.totalorder %s29, 1
      %p204 = por %p202, %p203
      %p206 = scmp.ne.s32.totalorder %s191, %s205
      %p207 = scmp.eq.s32.totalorder %s29, 0
      %p208 = por %p206, %p207
      %s210 = sadd.s32 %s209, 1
      %p213 = scmp.eq.s32.totalorder %s23, 1
      %p214 = scmp.ne.s32.totalorder %s209, %s211
      %p215 = scmp.eq.s32.totalorder %s23, 0
      %p216 = por %p214, %p215
      %p217 = scmp.ne.s32.totalorder %s209, %s211
      %p218 = scmp.eq.s32.totalorder %s28, 1
      %p219 = por %p217, %p218
      %p220 = scmp.ne.s32.totalorder %s211, %s212
      %p221 = scmp.eq.s32.totalorder %s28, 0
      %p222 = por %p220, %p221
      %p223 = scmp.ne.s32.totalorder %s211, %s212
      %p224 = scmp.eq.s32.totalorder %s29, 1
      %p225 = por %p223, %p224
      %p227 = scmp.ne.s32.totalorder %s212, %s226
      %p228 = scmp.eq.s32.totalorder %s29, 0
      %p229 = por %p227, %p228
      %s231 = sadd.s32 %s230, 1
      %p234 = scmp.eq.s32.totalorder %s23, 1
      %p235 = scmp.ne.s32.totalorder %s230, %s232
      %p236 = scmp.eq.s32.totalorder %s23, 0
      %p237 = por %p235, %p236
      %p238 = scmp.ne.s32.totalorder %s230, %s232
      %p239 = scmp.eq.s32.totalorder %s28, 1
      %p240 = por %p238, %p239
      %p241 = scmp.ne.s32.totalorder %s232, %s233
      %p242 = scmp.eq.s32.totalorder %s28, 0
      %p243 = por %p241, %p242
      %p244 = scmp.ne.s32.totalorder %s232, %s233
      %p245 = scmp.eq.s32.totalorder %s29, 1
      %p246 = por %p244, %p245
      %p248 = scmp.ne.s32.totalorder %s233, %s247
      %p249 = scmp.eq.s32.totalorder %s29, 0
      %p250 = por %p248, %p249
      %s251 = ssub.s32 %s23, %s30
      %p252 = scmp.eq.s32.totalorder %s251, 0
      %s254 = sadd.s32 %s253, 1
      %s255 = scalar_select %p252, %s253, %s254
      %p258 = pneg %p252
      %p259 = scmp.eq.s32.totalorder %s23, 1
      %p260 = por %p258, %p259
      %p261 = scmp.ne.s32.totalorder %s253, %s256
      %p262 = scmp.eq.s32.totalorder %s23, 0
      %p263 = por %p261, %p262
      %p264 = scmp.ne.s32.totalorder %s253, %s256
      %p265 = scmp.eq.s32.totalorder %s28, 1
      %p266 = por %p264, %p265
      %p267 = scmp.ne.s32.totalorder %s256, %s257
      %p268 = scmp.eq.s32.totalorder %s28, 0
      %p269 = por %p267, %p268
      %p270 = scmp.ne.s32.totalorder %s256, %s257
      %p271 = scmp.eq.s32.totalorder %s29, 1
      %p272 = por %p270, %p271
      %p274 = scmp.ne.s32.totalorder %s257, %s273
      %p275 = scmp.eq.s32.totalorder %s29, 0
      %p276 = por %p274, %p275
      %p277 = scmp.le.s32.totalorder 1, %s23
      %p278 = scmp.lt.s32.totalorder %s23, 3
      %p279 = pnand %p277, %p278
      %p280 = pneg %p279
      // Predicated region
      $region9: #{tpu_custom_call.1} parent=5 // pred_check
        _
      $region10: #{tpu_custom_call.1} parent=5 // pred_check_branch
        %282 = sbr.rel (%p279) target = $region12
      $region11: #{tpu_custom_call.1} parent=5 // pred_region
        %s283 = ssub.s32 %s23, 1
        // Predicated region
        $region13: #{tpu_custom_call.1} parent=11 // pred_check
          %p284 = pneg %p70
        $region14: #{tpu_custom_call.1} parent=11 // pred_check_branch
          %286 = sbr.rel (%p284) target = $region16
        $region15: #{tpu_custom_call.1} parent=11 // pred_region
          _
        $region16: #{tpu_custom_call.1} parent=11 // pred_fallthru
          _
        // Predicated region
        $region17: #{tpu_custom_call.1} parent=11 // pred_check
          %p287 = pneg %p91
        $region18: #{tpu_custom_call.1} parent=11 // pred_check_branch
          %289 = sbr.rel (%p287) target = $region20
        $region19: #{tpu_custom_call.1} parent=11 // pred_region
          _
        $region20: #{tpu_custom_call.1} parent=11 // pred_fallthru
          _
        // Predicated region
        $region21: #{tpu_custom_call.1} parent=11 // pred_check
          %p290 = pneg %p112
        $region22: #{tpu_custom_call.1} parent=11 // pred_check_branch
          %292 = sbr.rel (%p290) target = $region24
        $region23: #{tpu_custom_call.1} parent=11 // pred_region
          %s294 = ssub.s32 1536, 1536
          %295 = vsyncadd [#allocation6], %s294
          %s296 = sshll.u32 [#allocation5], 4
          %s297 = int_to_ptr.vmem [resolvable:$true] %s296
          %302 = dma.hbm_to_vmem [thread:$0]  %s3, 1536, %s297, [#allocation6], 64, 64, 4
        $region24: #{tpu_custom_call.1} parent=11 // pred_fallthru
          _
        // Predicated region
        $region25: #{tpu_custom_call.1} parent=11 // pred_check
          %p303 = pneg %p133
        $region26: #{tpu_custom_call.1} parent=11 // pred_check_branch
          %305 = sbr.rel (%p303) target = $region28
        $region27: #{tpu_custom_call.1} parent=11 // pred_region
          _
        $region28: #{tpu_custom_call.1} parent=11 // pred_fallthru
          _
        // Predicated region
        $region29: #{tpu_custom_call.1} parent=11 // pred_check
          %p306 = pneg %p180
        $region30: #{tpu_custom_call.1} parent=11 // pred_check_branch
          %308 = sbr.rel (%p306) target = $region32
        $region31: #{tpu_custom_call.1} parent=11 // pred_region
          _
        $region32: #{tpu_custom_call.1} parent=11 // pred_fallthru
          _
        // Predicated region
        $region33: #{tpu_custom_call.1} parent=11 // pred_check
          %p309 = pneg %p201
        $region34: #{tpu_custom_call.1} parent=11 // pred_check_branch
          %311 = sbr.rel (%p309) target = $region36
        $region35: #{tpu_custom_call.1} parent=11 // pred_region
          _
        $region36: #{tpu_custom_call.1} parent=11 // pred_fallthru
          _
        // Predicated region
        $region37: #{tpu_custom_call.1} parent=11 // pred_check
          %p312 = pneg %p222
        $region38: #{tpu_custom_call.1} parent=11 // pred_check_branch
          %314 = sbr.rel (%p312) target = $region40
        $region39: #{tpu_custom_call.1} parent=11 // pred_region
          %s316 = ssub.s32 512, 512
          %317 = vsyncadd [#allocation6], %s316
          %s318 = sshll.u32 [#allocation7], 4
          %s319 = int_to_ptr.vmem [resolvable:$true] %s318
          %324 = dma.hbm_to_vmem [thread:$0]  %s8, 512, %s319, [#allocation6], 64, 64, 4
        $region40: #{tpu_custom_call.1} parent=11 // pred_fallthru
          _
        // Predicated region
        $region41: #{tpu_custom_call.1} parent=11 // pred_check
          %p325 = pneg %p243
        $region42: #{tpu_custom_call.1} parent=11 // pred_check_branch
          %327 = sbr.rel (%p325) target = $region44
        $region43: #{tpu_custom_call.1} parent=11 // pred_region
          _
        $region44: #{tpu_custom_call.1} parent=11 // pred_fallthru
          _
      $region12: #{tpu_custom_call.1} parent=5 // pred_fallthru
        _
      %p328 = scmp.lt.s32.totalorder %s23, 2
      // Predicated region
      $region45: #{tpu_custom_call.1} parent=5 // pred_check
        %p329 = pneg %p328
      $region46: #{tpu_custom_call.1} parent=5 // pred_check_branch
        %331 = sbr.rel (%p329) target = $region48
      $region47: #{tpu_custom_call.1} parent=5 // pred_region
        // Predicated region
        $region49: #{tpu_custom_call.1} parent=47 // pred_check
          %p332 = pneg %p43
        $region50: #{tpu_custom_call.1} parent=47 // pred_check_branch
          %334 = sbr.rel (%p332) target = $region52
        $region51: #{tpu_custom_call.1} parent=47 // pred_region
          %s335 = sand.u32 %s33, 1
          %s336 = scalar_lea.sflag [#allocation3], %s335
          %s337 = sand.u32 %s33, 1
          %s338 = smul.addr %s337, 32
          %s339 = scalar_lea.vmem [#allocation2], %s338
          %s341 = ssub.s32 512, 512
          %342 = vsyncadd %s336, %s341
          %s343 = smul.addr %s23, 8
          %s344 = smul.addr %s343, 64
          %s345 = scalar_lea.hbm %s0, %s344
          %s346 = sshll.u32 %s339, 4
          %s347 = int_to_ptr.vmem [resolvable:$true] %s346
          %352 = dma.hbm_to_vmem [thread:$0]  %s345, 512, %s347, %s336, 128, 128, 8
        $region52: #{tpu_custom_call.1} parent=47 // pred_fallthru
          _
        // Predicated region
        $region53: #{tpu_custom_call.1} parent=47 // pred_check
          %p353 = pneg %p153
        $region54: #{tpu_custom_call.1} parent=47 // pred_check_branch
          %355 = sbr.rel (%p353) target = $region56
        $region55: #{tpu_custom_call.1} parent=47 // pred_region
          %p356 = scmp.lt.s32.totalorder %s23, 1
          %s357 = scalar_select %p356, %s23, 1
          %s358 = smul.addr %s357, 8
          %s359 = scalar_lea.vmem %s5, %s358
        $region56: #{tpu_custom_call.1} parent=47 // pred_fallthru
          _
      $region48: #{tpu_custom_call.1} parent=5 // pred_fallthru
        _
      %p360 = scmp.le.s32.totalorder 1, %s23
      %p361 = scmp.lt.s32.totalorder %s23, 3
      %p362 = pnand %p360, %p361
      %p363 = pneg %p362
      // Predicated region
      $region57: #{tpu_custom_call.1} parent=5 // pred_check
        _
      $region58: #{tpu_custom_call.1} parent=5 // pred_check_branch
        %365 = sbr.rel (%p362) target = $region60
      $region59: #{tpu_custom_call.1} parent=5 // pred_region
        %s366 = ssub.s32 %s23, 1
        %s367 = sand.u32 %s36, 1
        %s368 = scalar_lea.sflag [#allocation3], %s367
        %s369 = sand.u32 %s36, 1
        %s370 = smul.addr %s369, 32
        %s371 = scalar_lea.vmem [#allocation2], %s370
        // Predicated region
        $region61: #{tpu_custom_call.1} parent=59 // pred_check
          %p372 = pneg %p49
        $region62: #{tpu_custom_call.1} parent=59 // pred_check_branch
          %374 = sbr.rel (%p372) target = $region64
        $region63: #{tpu_custom_call.1} parent=59 // pred_region
          %375 = dma.done %s368, 512
        $region64: #{tpu_custom_call.1} parent=59 // pred_fallthru
          _
        // Predicated region
        $region65: #{tpu_custom_call.1} parent=59 // pred_check
          %p376 = pneg %p112
        $region66: #{tpu_custom_call.1} parent=59 // pred_check_branch
          %378 = sbr.rel (%p376) target = $region68
        $region67: #{tpu_custom_call.1} parent=59 // pred_region
          %379 = dma.done [#allocation6], 1536
        $region68: #{tpu_custom_call.1} parent=59 // pred_fallthru
          _
        // Predicated region
        $region69: #{tpu_custom_call.1} parent=59 // pred_check
          %p380 = pneg %p222
        $region70: #{tpu_custom_call.1} parent=59 // pred_check_branch
          %382 = sbr.rel (%p380) target = $region72
        $region71: #{tpu_custom_call.1} parent=59 // pred_region
          %383 = dma.done [#allocation6], 512
        $region72: #{tpu_custom_call.1} parent=59 // pred_fallthru
          _
        %s384 = sand.u32 %s36, 1
        %s385 = scalar_lea.sflag [#allocation3], %s384
        %s386 = sand.u32 %s36, 1
        %s387 = smul.addr %s386, 32
        %s388 = scalar_lea.vmem [#allocation2], %s387
        %p389 = pneg %p49
        %p390 = pneg %p46
        %p391 = pneg %p70
        %p392 = pneg %p67
        %p393 = pneg %p91
        %p394 = pneg %p88
        %p395 = pneg %p112
        %p396 = pneg %p109
        %p397 = pneg %p133
        %p398 = pneg %p130
        %p399 = scmp.lt.s32.totalorder %s28, 1
        %s400 = scalar_select %p399, %s28, 1
        %s401 = smul.addr %s400, 8
        %s402 = scalar_lea.vmem %s5, %s401
        %p403 = pneg %p159
        %p404 = pneg %p156
        %p405 = pneg %p180
        %p406 = pneg %p177
        %p407 = pneg %p201
        %p408 = pneg %p198
        %p409 = pneg %p222
        %p410 = pneg %p219
        %p411 = pneg %p243
        %p412 = pneg %p240
        %p413 = pneg %p269
        %p414 = pneg %p266
        %s415 = sand.u32 %s256, 1
        %s416 = scalar_lea.sflag [#allocation4], %s415
        %s417 = sand.u32 %s256, 1
        %s418 = smul.addr %s417, 32
        %s419 = scalar_lea.vmem [#allocation8], %s418
        %p420 = scmp.lt.s32.totalorder %s28, 1
        %s421 = scalar_select %p420, %s28, 1
        %s422 = smul.addr %s421, 8
        %s423 = scalar_lea.vmem %s5, %s422
        %v425 = vld [vmem:[%s371] sm:$0xff]
        %v426 = vld [vmem:[%s371 + $0x8] sm:$0xff]
        %v427 = vld [vmem:[%s371 + $0x10] sm:$0xff]
        %v428 = vld [vmem:[%s371 + $0x18] sm:$0xff]
        %v429 = vld [vmem:[%s1] sm:$0xf]
        %v430 = vld [vmem:[%s1 + $0x4] sm:$0xf]
        %v431 = vld [vmem:[%s1 + $0x8] sm:$0xf]
        %v432 = vld [vmem:[%s1 + $0xc] sm:$0xf]
        %v433 = vld [vmem:[%s1 + $0x10] sm:$0xf]
        %v434 = vld [vmem:[%s1 + $0x14] sm:$0xf]
        %v435 = vld [vmem:[%s1 + $0x18] sm:$0xf]
        %v436 = vld [vmem:[%s1 + $0x1c] sm:$0xf]
        %v437 = vld [vmem:[%s1 + $0x20] sm:$0xf]
        %v438 = vld [vmem:[%s1 + $0x24] sm:$0xf]
        %v439 = vld [vmem:[%s1 + $0x28] sm:$0xf]
        %v440 = vld [vmem:[%s1 + $0x2c] sm:$0xf]
        %v441 = vld [vmem:[%s1 + $0x30] sm:$0xf]
        %v442 = vld [vmem:[%s1 + $0x34] sm:$0xf]
        %v443 = vld [vmem:[%s1 + $0x38] sm:$0xf]
        %v444 = vld [vmem:[%s1 + $0x3c] sm:$0xf]
        %v445 = vld [vmem:[%s1 + $0x40] sm:$0xf]
        %v446 = vld [vmem:[%s1 + $0x44] sm:$0xf]
        %v447 = vld [vmem:[%s1 + $0x48] sm:$0xf]
        %v448 = vld [vmem:[%s1 + $0x4c] sm:$0xf]
        %v449 = vld [vmem:[%s1 + $0x50] sm:$0xf]
        %v450 = vld [vmem:[%s1 + $0x54] sm:$0xf]
        %v451 = vld [vmem:[%s1 + $0x58] sm:$0xf]
        %v452 = vld [vmem:[%s1 + $0x5c] sm:$0xf]
        %v453 = vld [vmem:[%s1 + $0x60] sm:$0xf]
        %v454 = vld [vmem:[%s1 + $0x64] sm:$0xf]
        %v455 = vld [vmem:[%s1 + $0x68] sm:$0xf]
        %v456 = vld [vmem:[%s1 + $0x6c] sm:$0xf]
        %v457 = vld [vmem:[%s1 + $0x70] sm:$0xf]
        %v458 = vld [vmem:[%s1 + $0x74] sm:$0xf]
        %v459 = vld [vmem:[%s1 + $0x78] sm:$0xf]
        %v460 = vld [vmem:[%s1 + $0x7c] sm:$0xf]
        %v465 = vunpack.c.l.b16 %v425
        %v466 = vunpack.c.h.b16 %v425
        %v467 = vunpack.c.l.b16 %v426
        %v468 = vunpack.c.h.b16 %v426
        %v469 = vunpack.c.l.b16 %v427
        %v470 = vunpack.c.h.b16 %v427
        %v471 = vunpack.c.l.b16 %v428
        %v472 = vunpack.c.h.b16 %v428
        %v473 = vpack.c.b16 %v467, %v465
        %v474 = vpack.c.b16 %v468, %v466
        %v475 = vpack.c.b16 %v471, %v469
        %v476 = vpack.c.b16 %v472, %v470
        %v513 = vunpack.c.l.b16 %v429
        %v514 = vunpack.c.l.b16 %v430
        %v515 = vunpack.c.l.b16 %v431
        %v516 = vunpack.c.l.b16 %v432
        %v517 = vunpack.c.l.b16 %v433
        %v518 = vunpack.c.l.b16 %v434
        %v519 = vunpack.c.l.b16 %v435
        %v520 = vunpack.c.l.b16 %v436
        %v521 = vunpack.c.l.b16 %v437
        %v522 = vunpack.c.l.b16 %v438
        %v523 = vunpack.c.l.b16 %v439
        %v524 = vunpack.c.l.b16 %v440
        %v525 = vunpack.c.l.b16 %v441
        %v526 = vunpack.c.l.b16 %v442
        %v527 = vunpack.c.l.b16 %v443
        %v528 = vunpack.c.l.b16 %v444
        %v529 = vunpack.c.l.b16 %v445
        %v530 = vunpack.c.l.b16 %v446
        %v531 = vunpack.c.l.b16 %v447
        %v532 = vunpack.c.l.b16 %v448
        %v533 = vunpack.c.l.b16 %v449
        %v534 = vunpack.c.l.b16 %v450
        %v535 = vunpack.c.l.b16 %v451
        %v536 = vunpack.c.l.b16 %v452
        %v537 = vunpack.c.l.b16 %v453
        %v538 = vunpack.c.l.b16 %v454
        %v539 = vunpack.c.l.b16 %v455
        %v540 = vunpack.c.l.b16 %v456
        %v541 = vunpack.c.l.b16 %v457
        %v542 = vunpack.c.l.b16 %v458
        %v543 = vunpack.c.l.b16 %v459
        %v544 = vunpack.c.l.b16 %v460
        %v545 = vpack.c.b16 %v514, %v513
        %v546 = vpack.c.b16 %v516, %v515
        %v547 = vpack.c.b16 %v518, %v517
        %v548 = vpack.c.b16 %v520, %v519
        %v549 = vpack.c.b16 %v522, %v521
        %v550 = vpack.c.b16 %v524, %v523
        %v551 = vpack.c.b16 %v526, %v525
        %v552 = vpack.c.b16 %v528, %v527
        %v553 = vpack.c.b16 %v530, %v529
        %v554 = vpack.c.b16 %v532, %v531
        %v555 = vpack.c.b16 %v534, %v533
        %v556 = vpack.c.b16 %v536, %v535
        %v557 = vpack.c.b16 %v538, %v537
        %v558 = vpack.c.b16 %v540, %v539
        %v559 = vpack.c.b16 %v542, %v541
        %v560 = vpack.c.b16 %v544, %v543
        %577 = vmatprep.subr.bf16.mxu0 0
        %578 = vmatpush1.bf16.msra.mxu0 %v545
        %579 = vmatprep.subr.bf16.mxu0 0
        %580 = vmatpush1.bf16.msra.mxu0 %v546
        %581 = vmatprep.subr.bf16.mxu0 0
        %582 = vmatpush1.bf16.msra.mxu0 %v547
        %583 = vmatprep.subr.bf16.mxu0 0
        %584 = vmatpush1.bf16.msra.mxu0 %v548
        %585 = vmatprep.subr.bf16.mxu0 0
        %586 = vmatpush1.bf16.msra.mxu0 %v549
        %587 = vmatprep.subr.bf16.mxu0 0
        %588 = vmatpush1.bf16.msra.mxu0 %v550
        %589 = vmatprep.subr.bf16.mxu0 0
        %590 = vmatpush1.bf16.msra.mxu0 %v551
        %591 = vmatprep.subr.bf16.mxu0 0
        %592 = vmatpush1.bf16.msra.mxu0 %v552
        %593 = vmatprep.subr.bf16.mxu0 0
        %594 = vmatpush1.bf16.msra.mxu0 %v553
        %595 = vmatprep.subr.bf16.mxu0 0
        %596 = vmatpush1.bf16.msra.mxu0 %v554
        %597 = vmatprep.subr.bf16.mxu0 0
        %598 = vmatpush1.bf16.msra.mxu0 %v555
        %599 = vmatprep.subr.bf16.mxu0 0
        %600 = vmatpush1.bf16.msra.mxu0 %v556
        %601 = vmatprep.subr.bf16.mxu0 0
        %602 = vmatpush1.bf16.msra.mxu0 %v557
        %603 = vmatprep.subr.bf16.mxu0 0
        %604 = vmatpush1.bf16.msra.mxu0 %v558
        %605 = vmatprep.subr.bf16.mxu0 0
        %606 = vmatpush1.bf16.msra.mxu0 %v559
        %607 = vmatprep.subr.bf16.mxu0 0
        %608 = vmatpush1.bf16.msra.mxu0 %v560
        %609 = vmatprep.mubr.bf16.mxu0 %v474
        %610 = vmatmul.mubr.bf16.gmra.mrb[0].mxu0 %v473
        %v611 = vpop.f32.mrb[0].mxu0
        %v612 = vadd.f32 0.0, %v611
        %v613 = vpop.f32.mrb[0].mxu0
        %v614 = vpop.f32.mrb[0].mxu0
        %v615 = vadd.f32 0.0, %v614
        %v616 = vpop.f32.mrb[0].mxu0
        %617 = vmatprep.mubr.bf16.mxu0 %v476
        %618 = vmatmul.mubr.bf16.gmra.mrb[0].mxu0 %v475
        %v619 = vpop.f32.mrb[0].mxu0
        %v620 = vadd.f32 0.0, %v619
        %v621 = vpop.f32.mrb[0].mxu0
        %v622 = vpop.f32.mrb[0].mxu0
        %v623 = vadd.f32 0.0, %v622
        %v624 = vpop.f32.mrb[0].mxu0
        %625 = vdwg.mxu0
        %v626 = vlaneseq
        %v627 = vshrl.u32 %v626, 7
        %v628 = vadd.s32 %v627, 8
        %v629 = vadd.s32 %v627, 16
        %v630 = vadd.s32 %v627, 24
        %vm631 = vcmp.lt.s32.totalorder %v627, 1
        %vm632 = vcmp.lt.s32.totalorder %v628, 1
        %vm633 = vcmp.lt.s32.totalorder %v629, 1
        %vm634 = vcmp.lt.s32.totalorder %v630, 1
        %vm635 = vcmp.lt.s32.totalorder %v627, 2
        %vm636 = vcmp.lt.s32.totalorder %v628, 2
        %vm637 = vcmp.lt.s32.totalorder %v629, 2
        %vm638 = vcmp.lt.s32.totalorder %v630, 2
        %vm639 = vcmp.lt.s32.totalorder %v627, 4
        %vm640 = vcmp.lt.s32.totalorder %v628, 4
        %vm641 = vcmp.lt.s32.totalorder %v629, 4
        %vm642 = vcmp.lt.s32.totalorder %v630, 4
        %v643 = vld [vmem:[%s423] sm:$0x3f]
        %v644 = vrot.slane %v612, 7
        %v645 = vrot.slane %v615, 7
        %v646 = vrot.slane %v620, 7
        %v647 = vrot.slane %v623, 7
        %v648 = vsel %vm631, %v646, %v647
        %v649 = vsel %vm631, %v645, %v646
        %v650 = vsel %vm631, %v644, %v645
        %v651 = vsel %vm631, %v647, %v644
        %v652 = vsel %vm631, 1, 0
        %v653 = vsel %vm632, 1, 0
        %v654 = vsel %vm633, 1, 0
        %v655 = vsel %vm634, 1, 0
        %vm656 = vcmp.eq.s32.totalorder %v652, 1
        %vm657 = vcmp.eq.s32.totalorder %v653, 1
        %vm658 = vcmp.eq.s32.totalorder %v654, 1
        %vm659 = vcmp.eq.s32.totalorder %v655, 1
        %v660 = vsel %vm656, 0.0, %v651
        %v661 = vsel %vm657, 0.0, %v650
        %v662 = vsel %vm658, 0.0, %v649
        %v663 = vsel %vm659, 0.0, %v648
        %v664 = vpack.c.bf16 %v661, %v660
        %v665 = vpack.c.bf16 %v663, %v662
        %v666 = vld [vmem:[%s2] sm:$0xf]
        %v667 = vld [vmem:[%s2 + $0x4] sm:$0xf]
        %v668 = vld [vmem:[%s2 + $0x8] sm:$0xf]
        %v669 = vld [vmem:[%s2 + $0xc] sm:$0xf]
        %v670 = vpack.c.bf16 %v615, %v612
        %v671 = vpack.c.bf16 %v623, %v620
        %v672 = vld [vmem:[#allocation5] sm:$0xf]
        %v673 = vld [vmem:[#allocation5 + $0x4] sm:$0xf]
        %v674 = vld [vmem:[#allocation5 + $0x8] sm:$0xf]
        %v675 = vld [vmem:[#allocation5 + $0xc] sm:$0xf]
        %v680 = vunpack.c.l.b16 %v672
        %v681 = vunpack.c.l.b16 %v673
        %v682 = vunpack.c.l.b16 %v674
        %v683 = vunpack.c.l.b16 %v675
        %v684 = vpack.c.b16 %v681, %v680
        %v685 = vpack.c.b16 %v683, %v682
        %vm688 = vcmask 261120
        %v690 = vsel %vm688, %v670, 0
        %v693 = vsel %vm688, %v671, 0
        %695 = vmatprep.subr.bf16.mxu0 0
        %696 = vmatpush1.bf16.msra.mxu0 %v684
        %697 = vmatprep.subr.bf16.mxu0 0
        %698 = vmatpush1.bf16.msra.mxu0 %v685
        %699 = vmatprep.subr.bf16.mxu0 0
        %700 = vmatpush1.bf16.msra.mxu0 0
        %701 = vmatprep.subr.bf16.mxu0 0
        %702 = vmatpush1.bf16.msra.mxu0 0
        %703 = vmatprep.subr.bf16.mxu0 0
        %704 = vmatpush1.bf16.msra.mxu0 0
        %705 = vmatprep.subr.bf16.mxu0 0
        %706 = vmatpush1.bf16.msra.mxu0 0
        %707 = vmatprep.subr.bf16.mxu0 0
        %708 = vmatpush1.bf16.msra.mxu0 0
        %709 = vmatprep.subr.bf16.mxu0 0
        %710 = vmatpush1.bf16.msra.mxu0 0
        %711 = vmatprep.subr.bf16.mxu0 0
        %712 = vmatpush1.bf16.msra.mxu0 0
        %713 = vmatprep.subr.bf16.mxu0 0
        %714 = vmatpush1.bf16.msra.mxu0 0
        %715 = vmatprep.subr.bf16.mxu0 0
        %716 = vmatpush1.bf16.msra.mxu0 0
        %717 = vmatprep.subr.bf16.mxu0 0
        %718 = vmatpush1.bf16.msra.mxu0 0
        %719 = vmatprep.subr.bf16.mxu0 0
        %720 = vmatpush1.bf16.msra.mxu0 0
        %721 = vmatprep.subr.bf16.mxu0 0
        %722 = vmatpush1.bf16.msra.mxu0 0
        %723 = vmatprep.subr.bf16.mxu0 0
        %724 = vmatpush1.bf16.msra.mxu0 0
        %725 = vmatprep.subr.bf16.mxu0 0
        %726 = vmatpush1.bf16.msra.mxu0 0
        %727 = vmatprep.mubr.bf16.mxu0 0
        %728 = vmatmul.mubr.bf16.gmra.mrb[0].mxu0 %v690
        %v729 = vpop.f32.mrb[0].mxu0
        %v730 = vadd.f32 0.0, %v729
        %v731 = vpop.f32.mrb[0].mxu0
        %v732 = vpop.f32.mrb[0].mxu0
        %v733 = vadd.f32 0.0, %v732
        %v734 = vpop.f32.mrb[0].mxu0
        %735 = vmatprep.mubr.bf16.mxu0 0
        %736 = vmatmul.mubr.bf16.gmra.mrb[0].mxu0 %v693
        %v737 = vpop.f32.mrb[0].mxu0
        %v738 = vadd.f32 0.0, %v737
        %v739 = vpop.f32.mrb[0].mxu0
        %v740 = vpop.f32.mrb[0].mxu0
        %v741 = vadd.f32 0.0, %v740
        %v742 = vpop.f32.mrb[0].mxu0
        %743 = vdwg.mxu0
        %v748 = vunpack.c.l.b16 %v666
        %v749 = vunpack.c.l.b16 %v667
        %v750 = vunpack.c.l.b16 %v668
        %v751 = vunpack.c.l.b16 %v669
        %v752 = vpack.c.b16 %v749, %v748
        %v753 = vpack.c.b16 %v751, %v750
        %v757 = vsel %vm688, %v664, 0
        %v760 = vsel %vm688, %v665, 0
        %762 = vmatprep.subr.bf16.mxu0 0
        %763 = vmatpush1.bf16.msra.mxu0 %v752
        %764 = vmatprep.subr.bf16.mxu0 0
        %765 = vmatpush1.bf16.msra.mxu0 %v753
        %766 = vmatprep.subr.bf16.mxu0 0
        %767 = vmatpush1.bf16.msra.mxu0 0
        %768 = vmatprep.subr.bf16.mxu0 0
        %769 = vmatpush1.bf16.msra.mxu0 0
        %770 = vmatprep.subr.bf16.mxu0 0
        %771 = vmatpush1.bf16.msra.mxu0 0
        %772 = vmatprep.subr.bf16.mxu0 0
        %773 = vmatpush1.bf16.msra.mxu0 0
        %774 = vmatprep.subr.bf16.mxu0 0
        %775 = vmatpush1.bf16.msra.mxu0 0
        %776 = vmatprep.subr.bf16.mxu0 0
        %777 = vmatpush1.bf16.msra.mxu0 0
        %778 = vmatprep.subr.bf16.mxu0 0
        %779 = vmatpush1.bf16.msra.mxu0 0
        %780 = vmatprep.subr.bf16.mxu0 0
        %781 = vmatpush1.bf16.msra.mxu0 0
        %782 = vmatprep.subr.bf16.mxu0 0
        %783 = vmatpush1.bf16.msra.mxu0 0
        %784 = vmatprep.subr.bf16.mxu0 0
        %785 = vmatpush1.bf16.msra.mxu0 0
        %786 = vmatprep.subr.bf16.mxu0 0
        %787 = vmatpush1.bf16.msra.mxu0 0
        %788 = vmatprep.subr.bf16.mxu0 0
        %789 = vmatpush1.bf16.msra.mxu0 0
        %790 = vmatprep.subr.bf16.mxu0 0
        %791 = vmatpush1.bf16.msra.mxu0 0
        %792 = vmatprep.subr.bf16.mxu0 0
        %793 = vmatpush1.bf16.msra.mxu0 0
        %794 = vmatprep.mubr.bf16.mxu0 0
        %795 = vmatmul.mubr.bf16.gmra.mrb[0].mxu0 %v757
        %v796 = vpop.f32.mrb[0].mxu0
        %v797 = vadd.f32 %v730, %v796
        %v798 = vpop.f32.mrb[0].mxu0
        %v799 = vpop.f32.mrb[0].mxu0
        %v800 = vadd.f32 %v733, %v799
        %v801 = vpop.f32.mrb[0].mxu0
        %802 = vmatprep.mubr.bf16.mxu0 0
        %803 = vmatmul.mubr.bf16.gmra.mrb[0].mxu0 %v760
        %v804 = vpop.f32.mrb[0].mxu0
        %v805 = vadd.f32 %v738, %v804
        %v806 = vpop.f32.mrb[0].mxu0
        %v807 = vpop.f32.mrb[0].mxu0
        %v808 = vadd.f32 %v741, %v807
        %v809 = vpop.f32.mrb[0].mxu0
        %810 = vdwg.mxu0
        %v811 = vlaneseq
        %v812 = vshrl.u32 %v811, 7
        %v813 = vsub.s32 0, %v812
        %v814 = vrot.slane %v643, %v813
        %v815 = vadd.f32 %v797, %v814
        %v816 = vadd.f32 %v800, %v814
        %v817 = vadd.f32 %v805, %v814
        %v818 = vadd.f32 %v808, %v814
        %v819 = vtanh.pop %v815
        %v820 = vtanh.pop %v816
        %v821 = vtanh.pop %v817
        %v822 = vtanh.pop %v818
        %v823 = vmul.f32 %v819, 0.5
        %v824 = vmul.f32 %v820, 0.5
        %v825 = vmul.f32 %v821, 0.5
        %v826 = vmul.f32 %v822, 0.5
        %v827 = vadd.f32 %v823, 0.5
        %v828 = vadd.f32 %v824, 0.5
        %v829 = vadd.f32 %v825, 0.5
        %v830 = vadd.f32 %v826, 0.5
        %835 = vrot.lane.b32.xlu0 %v827, 96
        %v836 = vpop.permute.xlu0 %835
        %837 = vrot.lane.b32.xlu0 %v828, 96
        %v838 = vpop.permute.xlu0 %837
        %839 = vrot.lane.b32.xlu0 %v829, 96
        %v840 = vpop.permute.xlu0 %839
        %841 = vrot.lane.b32.xlu0 %v830, 96
        %v842 = vpop.permute.xlu0 %841
        %v847 = vmul.f32 %v819, %v836
        %v848 = vmul.f32 %v820, %v838
        %v849 = vmul.f32 %v821, %v840
        %v850 = vmul.f32 %v822, %v842
        %v851 = vpack.c.bf16 %v848, %v847
        %v852 = vpack.c.bf16 %v850, %v849
        %v853 = vld [vmem:[%s4] sm:$0xff]
        %v854 = vld [vmem:[%s4 + $0x8] sm:$0xff]
        %v855 = vld [vmem:[%s4 + $0x10] sm:$0xff]
        %v856 = vld [vmem:[%s4 + $0x18] sm:$0xff]
        %v861 = vunpack.c.l.b16 %v853
        %v862 = vunpack.c.h.b16 %v853
        %v863 = vunpack.c.l.b16 %v854
        %v864 = vunpack.c.h.b16 %v854
        %v865 = vunpack.c.l.b16 %v855
        %v866 = vunpack.c.h.b16 %v855
        %v867 = vunpack.c.l.b16 %v856
        %v868 = vunpack.c.h.b16 %v856
        %v869 = vpack.c.b16 %v863, %v861
        %v870 = vpack.c.b16 %v864, %v862
        %v871 = vpack.c.b16 %v867, %v865
        %v872 = vpack.c.b16 %v868, %v866
        %v878 = vsel %vm688, %v851, 0
        %v881 = vsel %vm688, %v852, 0
        %883 = vmatprep.subr.bf16.mxu0 %v870
        %884 = vmatpush1.bf16.msra.mxu0 %v869
        %885 = vmatprep.subr.bf16.mxu0 %v872
        %886 = vmatpush1.bf16.msra.mxu0 %v871
        %887 = vmatprep.subr.bf16.mxu0 0
        %888 = vmatpush1.bf16.msra.mxu0 0
        %889 = vmatprep.subr.bf16.mxu0 0
        %890 = vmatpush1.bf16.msra.mxu0 0
        %891 = vmatprep.subr.bf16.mxu0 0
        %892 = vmatpush1.bf16.msra.mxu0 0
        %893 = vmatprep.subr.bf16.mxu0 0
        %894 = vmatpush1.bf16.msra.mxu0 0
        %895 = vmatprep.subr.bf16.mxu0 0
        %896 = vmatpush1.bf16.msra.mxu0 0
        %897 = vmatprep.subr.bf16.mxu0 0
        %898 = vmatpush1.bf16.msra.mxu0 0
        %899 = vmatprep.subr.bf16.mxu0 0
        %900 = vmatpush1.bf16.msra.mxu0 0
        %901 = vmatprep.subr.bf16.mxu0 0
        %902 = vmatpush1.bf16.msra.mxu0 0
        %903 = vmatprep.subr.bf16.mxu0 0
        %904 = vmatpush1.bf16.msra.mxu0 0
        %905 = vmatprep.subr.bf16.mxu0 0
        %906 = vmatpush1.bf16.msra.mxu0 0
        %907 = vmatprep.subr.bf16.mxu0 0
        %908 = vmatpush1.bf16.msra.mxu0 0
        %909 = vmatprep.subr.bf16.mxu0 0
        %910 = vmatpush1.bf16.msra.mxu0 0
        %911 = vmatprep.subr.bf16.mxu0 0
        %912 = vmatpush1.bf16.msra.mxu0 0
        %913 = vmatprep.subr.bf16.mxu0 0
        %914 = vmatpush1.bf16.msra.mxu0 0
        %915 = vmatprep.mubr.bf16.mxu0 0
        %916 = vmatmul.mubr.bf16.gmra.mrb[0].mxu0 %v878
        %v917 = vpop.f32.mrb[0].mxu0
        %v918 = vadd.f32 0.0, %v917
        %v919 = vpop.f32.mrb[0].mxu0
        %v920 = vadd.f32 0.0, %v919
        %v921 = vpop.f32.mrb[0].mxu0
        %v922 = vadd.f32 0.0, %v921
        %v923 = vpop.f32.mrb[0].mxu0
        %v924 = vadd.f32 0.0, %v923
        %925 = vmatprep.mubr.bf16.mxu0 0
        %926 = vmatmul.mubr.bf16.gmra.mrb[0].mxu0 %v881
        %v927 = vpop.f32.mrb[0].mxu0
        %v928 = vadd.f32 0.0, %v927
        %v929 = vpop.f32.mrb[0].mxu0
        %v930 = vadd.f32 0.0, %v929
        %v931 = vpop.f32.mrb[0].mxu0
        %v932 = vadd.f32 0.0, %v931
        %v933 = vpop.f32.mrb[0].mxu0
        %v934 = vadd.f32 0.0, %v933
        %935 = vdwg.mxu0
        %v936 = vadd.f32 %v918, 0.0
        %v937 = vadd.f32 %v922, 0.0
        %v938 = vadd.f32 %v928, 0.0
        %v939 = vadd.f32 %v932, 0.0
        %v940 = vadd.f32 %v612, %v920
        %v941 = vadd.f32 %v615, %v924
        %v942 = vadd.f32 %v620, %v930
        %v943 = vadd.f32 %v623, %v934
        %v944 = vrot.slane %v940, 6
        %v945 = vrot.slane %v941, 6
        %v946 = vrot.slane %v942, 6
        %v947 = vrot.slane %v943, 6
        %v948 = vsel %vm635, %v946, %v947
        %v949 = vsel %vm635, %v945, %v946
        %v950 = vsel %vm635, %v944, %v945
        %v951 = vsel %vm635, %v947, %v944
        %v952 = vsel %vm635, 1, 0
        %v953 = vsel %vm636, 1, 0
        %v954 = vsel %vm637, 1, 0
        %v955 = vsel %vm638, 1, 0
        %vm956 = vcmp.eq.s32.totalorder %v952, 1
        %vm957 = vcmp.eq.s32.totalorder %v953, 1
        %vm958 = vcmp.eq.s32.totalorder %v954, 1
        %vm959 = vcmp.eq.s32.totalorder %v955, 1
        %v960 = vsel %vm956, 0.0, %v951
        %v961 = vsel %vm957, 0.0, %v950
        %v962 = vsel %vm958, 0.0, %v949
        %v963 = vsel %vm959, 0.0, %v948
        %v964 = vpack.c.bf16 %v961, %v960
        %v965 = vpack.c.bf16 %v963, %v962
        %s966 = scalar_lea.vmem %s2, 16
        %v967 = vld [vmem:[%s966] sm:$0xf]
        %v968 = vld [vmem:[%s966 + $0x4] sm:$0xf]
        %v969 = vld [vmem:[%s966 + $0x8] sm:$0xf]
        %v970 = vld [vmem:[%s966 + $0xc] sm:$0xf]
        %v971 = vpack.c.bf16 %v941, %v940
        %v972 = vpack.c.bf16 %v943, %v942
        %s973 = scalar_lea.vmem [#allocation5], 16
        %v974 = vld [vmem:[%s973] sm:$0xf]
        %v975 = vld [vmem:[%s973 + $0x4] sm:$0xf]
        %v976 = vld [vmem:[%s973 + $0x8] sm:$0xf]
        %v977 = vld [vmem:[%s973 + $0xc] sm:$0xf]
        %v982 = vunpack.c.l.b16 %v974
        %v983 = vunpack.c.l.b16 %v975
        %v984 = vunpack.c.l.b16 %v976
        %v985 = vunpack.c.l.b16 %v977
        %v986 = vpack.c.b16 %v983, %v982
        %v987 = vpack.c.b16 %v985, %v984
        %v991 = vsel %vm688, %v971, 0
        %v994 = vsel %vm688, %v972, 0
        %996 = vmatprep.subr.bf16.mxu0 0
        %997 = vmatpush1.bf16.msra.mxu0 %v986
        %998 = vmatprep.subr.bf16.mxu0 0
        %999 = vmatpush1.bf16.msra.mxu0 %v987
        %1000 = vmatprep.subr.bf16.mxu0 0
        %1001 = vmatpush1.bf16.msra.mxu0 0
        %1002 = vmatprep.subr.bf16.mxu0 0
        %1003 = vmatpush1.bf16.msra.mxu0 0
        %1004 = vmatprep.subr.bf16.mxu0 0
        %1005 = vmatpush1.bf16.msra.mxu0 0
        %1006 = vmatprep.subr.bf16.mxu0 0
        %1007 = vmatpush1.bf16.msra.mxu0 0
        %1008 = vmatprep.subr.bf16.mxu0 0
        %1009 = vmatpush1.bf16.msra.mxu0 0
        %1010 = vmatprep.subr.bf16.mxu0 0
        %1011 = vmatpush1.bf16.msra.mxu0 0
        %1012 = vmatprep.subr.bf16.mxu0 0
        %1013 = vmatpush1.bf16.msra.mxu0 0
        %1014 = vmatprep.subr.bf16.mxu0 0
        %1015 = vmatpush1.bf16.msra.mxu0 0
        %1016 = vmatprep.subr.bf16.mxu0 0
        %1017 = vmatpush1.bf16.msra.mxu0 0
        %1018 = vmatprep.subr.bf16.mxu0 0
        %1019 = vmatpush1.bf16.msra.mxu0 0
        %1020 = vmatprep.subr.bf16.mxu0 0
        %1021 = vmatpush1.bf16.msra.mxu0 0
        %1022 = vmatprep.subr.bf16.mxu0 0
        %1023 = vmatpush1.bf16.msra.mxu0 0
        %1024 = vmatprep.subr.bf16.mxu0 0
        %1025 = vmatpush1.bf16.msra.mxu0 0
        %1026 = vmatprep.subr.bf16.mxu0 0
        %1027 = vmatpush1.bf16.msra.mxu0 0
        %1028 = vmatprep.mubr.bf16.mxu0 0
        %1029 = vmatmul.mubr.bf16.gmra.mrb[0].mxu0 %v991
        %v1030 = vpop.f32.mrb[0].mxu0
        %v1031 = vadd.f32 0.0, %v1030
        %v1032 = vpop.f32.mrb[0].mxu0
        %v1033 = vpop.f32.mrb[0].mxu0
        %v1034 = vadd.f32 0.0, %v1033
        %v1035 = vpop.f32.mrb[0].mxu0
        %1036 = vmatprep.mubr.bf16.mxu0 0
        %1037 = vmatmul.mubr.bf16.gmra.mrb[0].mxu0 %v994
        %v1038 = vpop.f32.mrb[0].mxu0
        %v1039 = vadd.f32 0.0, %v1038
        %v1040 = vpop.f32.mrb[0].mxu0
        %v1041 = vpop.f32.mrb[0].mxu0
        %v1042 = vadd.f32 0.0, %v1041
        %v1043 = vpop.f32.mrb[0].mxu0
        %1044 = vdwg.mxu0
        %v1049 = vunpack.c.l.b16 %v967
        %v1050 = vunpack.c.l.b16 %v968
        %v1051 = vunpack.c.l.b16 %v969
        %v1052 = vunpack.c.l.b16 %v970
        %v1053 = vpack.c.b16 %v1050, %v1049
        %v1054 = vpack.c.b16 %v1052, %v1051
        %v1058 = vsel %vm688, %v964, 0
        %v1061 = vsel %vm688, %v965, 0
        %1063 = vmatprep.subr.bf16.mxu0 0
        %1064 = vmatpush1.bf16.msra.mxu0 %v1053
        %1065 = vmatprep.subr.bf16.mxu0 0
        %1066 = vmatpush1.bf16.msra.mxu0 %v1054
        %1067 = vmatprep.subr.bf16.mxu0 0
        %1068 = vmatpush1.bf16.msra.mxu0 0
        %1069 = vmatprep.subr.bf16.mxu0 0
        %1070 = vmatpush1.bf16.msra.mxu0 0
        %1071 = vmatprep.subr.bf16.mxu0 0
        %1072 = vmatpush1.bf16.msra.mxu0 0
        %1073 = vmatprep.subr.bf16.mxu0 0
        %1074 = vmatpush1.bf16.msra.mxu0 0
        %1075 = vmatprep.subr.bf16.mxu0 0
        %1076 = vmatpush1.bf16.msra.mxu0 0
        %1077 = vmatprep.subr.bf16.mxu0 0
        %1078 = vmatpush1.bf16.msra.mxu0 0
        %1079 = vmatprep.subr.bf16.mxu0 0
        %1080 = vmatpush1.bf16.msra.mxu0 0
        %1081 = vmatprep.subr.bf16.mxu0 0
        %1082 = vmatpush1.bf16.msra.mxu0 0
        %1083 = vmatprep.subr.bf16.mxu0 0
        %1084 = vmatpush1.bf16.msra.mxu0 0
        %1085 = vmatprep.subr.bf16.mxu0 0
        %1086 = vmatpush1.bf16.msra.mxu0 0
        %1087 = vmatprep.subr.bf16.mxu0 0
        %1088 = vmatpush1.bf16.msra.mxu0 0
        %1089 = vmatprep.subr.bf16.mxu0 0
        %1090 = vmatpush1.bf16.msra.mxu0 0
        %1091 = vmatprep.subr.bf16.mxu0 0
        %1092 = vmatpush1.bf16.msra.mxu0 0
        %1093 = vmatprep.subr.bf16.mxu0 0
        %1094 = vmatpush1.bf16.msra.mxu0 0
        %1095 = vmatprep.mubr.bf16.mxu0 0
        %1096 = vmatmul.mubr.bf16.gmra.mrb[0].mxu0 %v1058
        %v1097 = vpop.f32.mrb[0].mxu0
        %v1098 = vadd.f32 %v1031, %v1097
        %v1099 = vpop.f32.mrb[0].mxu0
        %v1100 = vpop.f32.mrb[0].mxu0
        %v1101 = vadd.f32 %v1034, %v1100
        %v1102 = vpop.f32.mrb[0].mxu0
        %1103 = vmatprep.mubr.bf16.mxu0 0
        %1104 = vmatmul.mubr.bf16.gmra.mrb[0].mxu0 %v1061
        %v1105 = vpop.f32.mrb[0].mxu0
        %v1106 = vadd.f32 %v1039, %v1105
        %v1107 = vpop.f32.mrb[0].mxu0
        %v1108 = vpop.f32.mrb[0].mxu0
        %v1109 = vadd.f32 %v1042, %v1108
        %v1110 = vpop.f32.mrb[0].mxu0
        %1111 = vdwg.mxu0
        %v1112 = vlaneseq
        %v1113 = vshrl.u32 %v1112, 7
        %v1114 = vsub.s32 1, %v1113
        %v1115 = vrot.slane %v643, %v1114
        %v1116 = vadd.f32 %v1098, %v1115
        %v1117 = vadd.f32 %v1101, %v1115
        %v1118 = vadd.f32 %v1106, %v1115
        %v1119 = vadd.f32 %v1109, %v1115
        %v1120 = vtanh.pop %v1116
        %v1121 = vtanh.pop %v1117
        %v1122 = vtanh.pop %v1118
        %v1123 = vtanh.pop %v1119
        %v1124 = vmul.f32 %v1120, 0.5
        %v1125 = vmul.f32 %v1121, 0.5
        %v1126 = vmul.f32 %v1122, 0.5
        %v1127 = vmul.f32 %v1123, 0.5
        %v1128 = vadd.f32 %v1124, 0.5
        %v1129 = vadd.f32 %v1125, 0.5
        %v1130 = vadd.f32 %v1126, 0.5
        %v1131 = vadd.f32 %v1127, 0.5
        %1136 = vrot.lane.b32.xlu0 %v1128, 96
        %v1137 = vpop.permute.xlu0 %1136
        %1138 = vrot.lane.b32.xlu0 %v1129, 96
        %v1139 = vpop.permute.xlu0 %1138
        %1140 = vrot.lane.b32.xlu0 %v1130, 96
        %v1141 = vpop.permute.xlu0 %1140
        %1142 = vrot.lane.b32.xlu0 %v1131, 96
        %v1143 = vpop.permute.xlu0 %1142
        %v1148 = vmul.f32 %v1120, %v1137
        %v1149 = vmul.f32 %v1121, %v1139
        %v1150 = vmul.f32 %v1122, %v1141
        %v1151 = vmul.f32 %v1123, %v1143
        %v1152 = vpack.c.bf16 %v1149, %v1148
        %v1153 = vpack.c.bf16 %v1151, %v1150
        %s1154 = scalar_lea.vmem %s4, 32
        %v1155 = vld [vmem:[%s1154] sm:$0xff]
        %v1156 = vld [vmem:[%s1154 + $0x8] sm:$0xff]
        %v1157 = vld [vmem:[%s1154 + $0x10] sm:$0xff]
        %v1158 = vld [vmem:[%s1154 + $0x18] sm:$0xff]
        %v1163 = vunpack.c.l.b16 %v1155
        %v1164 = vunpack.c.h.b16 %v1155
        %v1165 = vunpack.c.l.b16 %v1156
        %v1166 = vunpack.c.h.b16 %v1156
        %v1167 = vunpack.c.l.b16 %v1157
        %v1168 = vunpack.c.h.b16 %v1157
        %v1169 = vunpack.c.l.b16 %v1158
        %v1170 = vunpack.c.h.b16 %v1158
        %v1171 = vpack.c.b16 %v1165, %v1163
        %v1172 = vpack.c.b16 %v1166, %v1164
        %v1173 = vpack.c.b16 %v1169, %v1167
        %v1174 = vpack.c.b16 %v1170, %v1168
        %v1180 = vsel %vm688, %v1152, 0
        %v1183 = vsel %vm688, %v1153, 0
        %1185 = vmatprep.subr.bf16.mxu0 %v1172
        %1186 = vmatpush1.bf16.msra.mxu0 %v1171
        %1187 = vmatprep.subr.bf16.mxu0 %v1174
        %1188 = vmatpush1.bf16.msra.mxu0 %v1173
        %1189 = vmatprep.subr.bf16.mxu0 0
        %1190 = vmatpush1.bf16.msra.mxu0 0
        %1191 = vmatprep.subr.bf16.mxu0 0
        %1192 = vmatpush1.bf16.msra.mxu0 0
        %1193 = vmatprep.subr.bf16.mxu0 0
        %1194 = vmatpush1.bf16.msra.mxu0 0
        %1195 = vmatprep.subr.bf16.mxu0 0
        %1196 = vmatpush1.bf16.msra.mxu0 0
        %1197 = vmatprep.subr.bf16.mxu0 0
        %1198 = vmatpush1.bf16.msra.mxu0 0
        %1199 = vmatprep.subr.bf16.mxu0 0
        %1200 = vmatpush1.bf16.msra.mxu0 0
        %1201 = vmatprep.subr.bf16.mxu0 0
        %1202 = vmatpush1.bf16.msra.mxu0 0
        %1203 = vmatprep.subr.bf16.mxu0 0
        %1204 = vmatpush1.bf16.msra.mxu0 0
        %1205 = vmatprep.subr.bf16.mxu0 0
        %1206 = vmatpush1.bf16.msra.mxu0 0
        %1207 = vmatprep.subr.bf16.mxu0 0
        %1208 = vmatpush1.bf16.msra.mxu0 0
        %1209 = vmatprep.subr.bf16.mxu0 0
        %1210 = vmatpush1.bf16.msra.mxu0 0
        %1211 = vmatprep.subr.bf16.mxu0 0
        %1212 = vmatpush1.bf16.msra.mxu0 0
        %1213 = vmatprep.subr.bf16.mxu0 0
        %1214 = vmatpush1.bf16.msra.mxu0 0
        %1215 = vmatprep.subr.bf16.mxu0 0
        %1216 = vmatpush1.bf16.msra.mxu0 0
        %1217 = vmatprep.mubr.bf16.mxu0 0
        %1218 = vmatmul.mubr.bf16.gmra.mrb[0].mxu0 %v1180
        %v1219 = vpop.f32.mrb[0].mxu0
        %v1220 = vadd.f32 0.0, %v1219
        %v1221 = vpop.f32.mrb[0].mxu0
        %v1222 = vadd.f32 0.0, %v1221
        %v1223 = vpop.f32.mrb[0].mxu0
        %v1224 = vadd.f32 0.0, %v1223
        %v1225 = vpop.f32.mrb[0].mxu0
        %v1226 = vadd.f32 0.0, %v1225
        %1227 = vmatprep.mubr.bf16.mxu0 0
        %1228 = vmatmul.mubr.bf16.gmra.mrb[0].mxu0 %v1183
        %v1229 = vpop.f32.mrb[0].mxu0
        %v1230 = vadd.f32 0.0, %v1229
        %v1231 = vpop.f32.mrb[0].mxu0
        %v1232 = vadd.f32 0.0, %v1231
        %v1233 = vpop.f32.mrb[0].mxu0
        %v1234 = vadd.f32 0.0, %v1233
        %v1235 = vpop.f32.mrb[0].mxu0
        %v1236 = vadd.f32 0.0, %v1235
        %1237 = vdwg.mxu0
        %v1238 = vadd.f32 %v936, %v1220
        %v1239 = vadd.f32 %v937, %v1224
        %v1240 = vadd.f32 %v938, %v1230
        %v1241 = vadd.f32 %v939, %v1234
        %v1242 = vadd.f32 %v940, %v1222
        %v1243 = vadd.f32 %v941, %v1226
        %v1244 = vadd.f32 %v942, %v1232
        %v1245 = vadd.f32 %v943, %v1236
        %v1246 = vrot.slane %v1242, 4
        %v1247 = vrot.slane %v1243, 4
        %v1248 = vrot.slane %v1244, 4
        %v1249 = vrot.slane %v1245, 4
        %v1250 = vsel %vm639, %v1248, %v1249
        %v1251 = vsel %vm639, %v1247, %v1248
        %v1252 = vsel %vm639, %v1246, %v1247
        %v1253 = vsel %vm639, %v1249, %v1246
        %v1254 = vsel %vm639, 1, 0
        %v1255 = vsel %vm640, 1, 0
        %v1256 = vsel %vm641, 1, 0
        %v1257 = vsel %vm642, 1, 0
        %vm1258 = vcmp.eq.s32.totalorder %v1254, 1
        %vm1259 = vcmp.eq.s32.totalorder %v1255, 1
        %vm1260 = vcmp.eq.s32.totalorder %v1256, 1
        %vm1261 = vcmp.eq.s32.totalorder %v1257, 1
        %v1262 = vsel %vm1258, 0.0, %v1253
        %v1263 = vsel %vm1259, 0.0, %v1252
        %v1264 = vsel %vm1260, 0.0, %v1251
        %v1265 = vsel %vm1261, 0.0, %v1250
        %v1266 = vpack.c.bf16 %v1263, %v1262
        %v1267 = vpack.c.bf16 %v1265, %v1264
        %s1268 = scalar_lea.vmem %s2, 32
        %v1269 = vld [vmem:[%s1268] sm:$0xf]
        %v1270 = vld [vmem:[%s1268 + $0x4] sm:$0xf]
        %v1271 = vld [vmem:[%s1268 + $0x8] sm:$0xf]
        %v1272 = vld [vmem:[%s1268 + $0xc] sm:$0xf]
        %v1273 = vpack.c.bf16 %v1243, %v1242
        %v1274 = vpack.c.bf16 %v1245, %v1244
        %s1275 = scalar_lea.vmem [#allocation5], 32
        %v1276 = vld [vmem:[%s1275] sm:$0xf]
        %v1277 = vld [vmem:[%s1275 + $0x4] sm:$0xf]
        %v1278 = vld [vmem:[%s1275 + $0x8] sm:$0xf]
        %v1279 = vld [vmem:[%s1275 + $0xc] sm:$0xf]
        %v1284 = vunpack.c.l.b16 %v1276
        %v1285 = vunpack.c.l.b16 %v1277
        %v1286 = vunpack.c.l.b16 %v1278
        %v1287 = vunpack.c.l.b16 %v1279
        %v1288 = vpack.c.b16 %v1285, %v1284
        %v1289 = vpack.c.b16 %v1287, %v1286
        %v1293 = vsel %vm688, %v1273, 0
        %v1296 = vsel %vm688, %v1274, 0
        %1298 = vmatprep.subr.bf16.mxu0 0
        %1299 = vmatpush1.bf16.msra.mxu0 %v1288
        %1300 = vmatprep.subr.bf16.mxu0 0
        %1301 = vmatpush1.bf16.msra.mxu0 %v1289
        %1302 = vmatprep.subr.bf16.mxu0 0
        %1303 = vmatpush1.bf16.msra.mxu0 0
        %1304 = vmatprep.subr.bf16.mxu0 0
        %1305 = vmatpush1.bf16.msra.mxu0 0
        %1306 = vmatprep.subr.bf16.mxu0 0
        %1307 = vmatpush1.bf16.msra.mxu0 0
        %1308 = vmatprep.subr.bf16.mxu0 0
        %1309 = vmatpush1.bf16.msra.mxu0 0
        %1310 = vmatprep.subr.bf16.mxu0 0
        %1311 = vmatpush1.bf16.msra.mxu0 0
        %1312 = vmatprep.subr.bf16.mxu0 0
        %1313 = vmatpush1.bf16.msra.mxu0 0
        %1314 = vmatprep.subr.bf16.mxu0 0
        %1315 = vmatpush1.bf16.msra.mxu0 0
        %1316 = vmatprep.subr.bf16.mxu0 0
        %1317 = vmatpush1.bf16.msra.mxu0 0
        %1318 = vmatprep.subr.bf16.mxu0 0
        %1319 = vmatpush1.bf16.msra.mxu0 0
        %1320 = vmatprep.subr.bf16.mxu0 0
        %1321 = vmatpush1.bf16.msra.mxu0 0
        %1322 = vmatprep.subr.bf16.mxu0 0
        %1323 = vmatpush1.bf16.msra.mxu0 0
        %1324 = vmatprep.subr.bf16.mxu0 0
        %1325 = vmatpush1.bf16.msra.mxu0 0
        %1326 = vmatprep.subr.bf16.mxu0 0
        %1327 = vmatpush1.bf16.msra.mxu0 0
        %1328 = vmatprep.subr.bf16.mxu0 0
        %1329 = vmatpush1.bf16.msra.mxu0 0
        %1330 = vmatprep.mubr.bf16.mxu0 0
        %1331 = vmatmul.mubr.bf16.gmra.mrb[0].mxu0 %v1293
        %v1332 = vpop.f32.mrb[0].mxu0
        %v1333 = vadd.f32 0.0, %v1332
        %v1334 = vpop.f32.mrb[0].mxu0
        %v1335 = vpop.f32.mrb[0].mxu0
        %v1336 = vadd.f32 0.0, %v1335
        %v1337 = vpop.f32.mrb[0].mxu0
        %1338 = vmatprep.mubr.bf16.mxu0 0
        %1339 = vmatmul.mubr.bf16.gmra.mrb[0].mxu0 %v1296
        %v1340 = vpop.f32.mrb[0].mxu0
        %v1341 = vadd.f32 0.0, %v1340
        %v1342 = vpop.f32.mrb[0].mxu0
        %v1343 = vpop.f32.mrb[0].mxu0
        %v1344 = vadd.f32 0.0, %v1343
        %v1345 = vpop.f32.mrb[0].mxu0
        %1346 = vdwg.mxu0
        %v1351 = vunpack.c.l.b16 %v1269
        %v1352 = vunpack.c.l.b16 %v1270
        %v1353 = vunpack.c.l.b16 %v1271
        %v1354 = vunpack.c.l.b16 %v1272
        %v1355 = vpack.c.b16 %v1352, %v1351
        %v1356 = vpack.c.b16 %v1354, %v1353
        %v1360 = vsel %vm688, %v1266, 0
        %v1363 = vsel %vm688, %v1267, 0
        %1365 = vmatprep.subr.bf16.mxu0 0
        %1366 = vmatpush1.bf16.msra.mxu0 %v1355
        %1367 = vmatprep.subr.bf16.mxu0 0
        %1368 = vmatpush1.bf16.msra.mxu0 %v1356
        %1369 = vmatprep.subr.bf16.mxu0 0
        %1370 = vmatpush1.bf16.msra.mxu0 0
        %1371 = vmatprep.subr.bf16.mxu0 0
        %1372 = vmatpush1.bf16.msra.mxu0 0
        %1373 = vmatprep.subr.bf16.mxu0 0
        %1374 = vmatpush1.bf16.msra.mxu0 0
        %1375 = vmatprep.subr.bf16.mxu0 0
        %1376 = vmatpush1.bf16.msra.mxu0 0
        %1377 = vmatprep.subr.bf16.mxu0 0
        %1378 = vmatpush1.bf16.msra.mxu0 0
        %1379 = vmatprep.subr.bf16.mxu0 0
        %1380 = vmatpush1.bf16.msra.mxu0 0
        %1381 = vmatprep.subr.bf16.mxu0 0
        %1382 = vmatpush1.bf16.msra.mxu0 0
        %1383 = vmatprep.subr.bf16.mxu0 0
        %1384 = vmatpush1.bf16.msra.mxu0 0
        %1385 = vmatprep.subr.bf16.mxu0 0
        %1386 = vmatpush1.bf16.msra.mxu0 0
        %1387 = vmatprep.subr.bf16.mxu0 0
        %1388 = vmatpush1.bf16.msra.mxu0 0
        %1389 = vmatprep.subr.bf16.mxu0 0
        %1390 = vmatpush1.bf16.msra.mxu0 0
        %1391 = vmatprep.subr.bf16.mxu0 0
        %1392 = vmatpush1.bf16.msra.mxu0 0
        %1393 = vmatprep.subr.bf16.mxu0 0
        %1394 = vmatpush1.bf16.msra.mxu0 0
        %1395 = vmatprep.subr.bf16.mxu0 0
        %1396 = vmatpush1.bf16.msra.mxu0 0
        %1397 = vmatprep.mubr.bf16.mxu0 0
        %1398 = vmatmul.mubr.bf16.gmra.mrb[0].mxu0 %v1360
        %v1399 = vpop.f32.mrb[0].mxu0
        %v1400 = vadd.f32 %v1333, %v1399
        %v1401 = vpop.f32.mrb[0].mxu0
        %v1402 = vpop.f32.mrb[0].mxu0
        %v1403 = vadd.f32 %v1336, %v1402
        %v1404 = vpop.f32.mrb[0].mxu0
        %1405 = vmatprep.mubr.bf16.mxu0 0
        %1406 = vmatmul.mubr.bf16.gmra.mrb[0].mxu0 %v1363
        %v1407 = vpop.f32.mrb[0].mxu0
        %v1408 = vadd.f32 %v1341, %v1407
        %v1409 = vpop.f32.mrb[0].mxu0
        %v1410 = vpop.f32.mrb[0].mxu0
        %v1411 = vadd.f32 %v1344, %v1410
        %v1412 = vpop.f32.mrb[0].mxu0
        %1413 = vdwg.mxu0
        %v1414 = vlaneseq
        %v1415 = vshrl.u32 %v1414, 7
        %v1416 = vsub.s32 2, %v1415
        %v1417 = vrot.slane %v643, %v1416
        %v1418 = vadd.f32 %v1400, %v1417
        %v1419 = vadd.f32 %v1403, %v1417
        %v1420 = vadd.f32 %v1408, %v1417
        %v1421 = vadd.f32 %v1411, %v1417
        %v1422 = vtanh.pop %v1418
        %v1423 = vtanh.pop %v1419
        %v1424 = vtanh.pop %v1420
        %v1425 = vtanh.pop %v1421
        %v1426 = vmul.f32 %v1422, 0.5
        %v1427 = vmul.f32 %v1423, 0.5
        %v1428 = vmul.f32 %v1424, 0.5
        %v1429 = vmul.f32 %v1425, 0.5
        %v1430 = vadd.f32 %v1426, 0.5
        %v1431 = vadd.f32 %v1427, 0.5
        %v1432 = vadd.f32 %v1428, 0.5
        %v1433 = vadd.f32 %v1429, 0.5
        %1438 = vrot.lane.b32.xlu0 %v1430, 96
        %v1439 = vpop.permute.xlu0 %1438
        %1440 = vrot.lane.b32.xlu0 %v1431, 96
        %v1441 = vpop.permute.xlu0 %1440
        %1442 = vrot.lane.b32.xlu0 %v1432, 96
        %v1443 = vpop.permute.xlu0 %1442
        %1444 = vrot.lane.b32.xlu0 %v1433, 96
        %v1445 = vpop.permute.xlu0 %1444
        %v1450 = vmul.f32 %v1422, %v1439
        %v1451 = vmul.f32 %v1423, %v1441
        %v1452 = vmul.f32 %v1424, %v1443
        %v1453 = vmul.f32 %v1425, %v1445
        %v1454 = vpack.c.bf16 %v1451, %v1450
        %v1455 = vpack.c.bf16 %v1453, %v1452
        %s1456 = scalar_lea.vmem %s4, 64
        %v1457 = vld [vmem:[%s1456] sm:$0xff]
        %v1458 = vld [vmem:[%s1456 + $0x8] sm:$0xff]
        %v1459 = vld [vmem:[%s1456 + $0x10] sm:$0xff]
        %v1460 = vld [vmem:[%s1456 + $0x18] sm:$0xff]
        %v1465 = vunpack.c.l.b16 %v1457
        %v1466 = vunpack.c.h.b16 %v1457
        %v1467 = vunpack.c.l.b16 %v1458
        %v1468 = vunpack.c.h.b16 %v1458
        %v1469 = vunpack.c.l.b16 %v1459
        %v1470 = vunpack.c.h.b16 %v1459
        %v1471 = vunpack.c.l.b16 %v1460
        %v1472 = vunpack.c.h.b16 %v1460
        %v1473 = vpack.c.b16 %v1467, %v1465
        %v1474 = vpack.c.b16 %v1468, %v1466
        %v1475 = vpack.c.b16 %v1471, %v1469
        %v1476 = vpack.c.b16 %v1472, %v1470
        %v1482 = vsel %vm688, %v1454, 0
        %v1485 = vsel %vm688, %v1455, 0
        %1487 = vmatprep.subr.bf16.mxu0 %v1474
        %1488 = vmatpush1.bf16.msra.mxu0 %v1473
        %1489 = vmatprep.subr.bf16.mxu0 %v1476
        %1490 = vmatpush1.bf16.msra.mxu0 %v1475
        %1491 = vmatprep.subr.bf16.mxu0 0
        %1492 = vmatpush1.bf16.msra.mxu0 0
        %1493 = vmatprep.subr.bf16.mxu0 0
        %1494 = vmatpush1.bf16.msra.mxu0 0
        %1495 = vmatprep.subr.bf16.mxu0 0
        %1496 = vmatpush1.bf16.msra.mxu0 0
        %1497 = vmatprep.subr.bf16.mxu0 0
        %1498 = vmatpush1.bf16.msra.mxu0 0
        %1499 = vmatprep.subr.bf16.mxu0 0
        %1500 = vmatpush1.bf16.msra.mxu0 0
        %1501 = vmatprep.subr.bf16.mxu0 0
        %1502 = vmatpush1.bf16.msra.mxu0 0
        %1503 = vmatprep.subr.bf16.mxu0 0
        %1504 = vmatpush1.bf16.msra.mxu0 0
        %1505 = vmatprep.subr.bf16.mxu0 0
        %1506 = vmatpush1.bf16.msra.mxu0 0
        %1507 = vmatprep.subr.bf16.mxu0 0
        %1508 = vmatpush1.bf16.msra.mxu0 0
        %1509 = vmatprep.subr.bf16.mxu0 0
        %1510 = vmatpush1.bf16.msra.mxu0 0
        %1511 = vmatprep.subr.bf16.mxu0 0
        %1512 = vmatpush1.bf16.msra.mxu0 0
        %1513 = vmatprep.subr.bf16.mxu0 0
        %1514 = vmatpush1.bf16.msra.mxu0 0
        %1515 = vmatprep.subr.bf16.mxu0 0
        %1516 = vmatpush1.bf16.msra.mxu0 0
        %1517 = vmatprep.subr.bf16.mxu0 0
        %1518 = vmatpush1.bf16.msra.mxu0 0
        %1519 = vmatprep.mubr.bf16.mxu0 0
        %1520 = vmatmul.mubr.bf16.gmra.mrb[0].mxu0 %v1482
        %v1521 = vpop.f32.mrb[0].mxu0
        %v1522 = vadd.f32 0.0, %v1521
        %v1523 = vpop.f32.mrb[0].mxu0
        %v1524 = vadd.f32 0.0, %v1523
        %v1525 = vpop.f32.mrb[0].mxu0
        %v1526 = vadd.f32 0.0, %v1525
        %v1527 = vpop.f32.mrb[0].mxu0
        %v1528 = vadd.f32 0.0, %v1527
        %1529 = vmatprep.mubr.bf16.mxu0 0
        %1530 = vmatmul.mubr.bf16.gmra.mrb[0].mxu0 %v1485
        %v1531 = vpop.f32.mrb[0].mxu0
        %v1532 = vadd.f32 0.0, %v1531
        %v1533 = vpop.f32.mrb[0].mxu0
        %v1534 = vadd.f32 0.0, %v1533
        %v1535 = vpop.f32.mrb[0].mxu0
        %v1536 = vadd.f32 0.0, %v1535
        %v1537 = vpop.f32.mrb[0].mxu0
        %v1538 = vadd.f32 0.0, %v1537
        %1539 = vdwg.mxu0
        %v1540 = vadd.f32 %v1238, %v1522
        %v1541 = vadd.f32 %v1239, %v1526
        %v1542 = vadd.f32 %v1240, %v1532
        %v1543 = vadd.f32 %v1241, %v1536
        %v1544 = vadd.f32 %v1242, %v1524
        %v1545 = vadd.f32 %v1243, %v1528
        %v1546 = vadd.f32 %v1244, %v1534
        %v1547 = vadd.f32 %v1245, %v1538
        %v1548 = vrot.slane %v1544, 7
        %v1549 = vrot.slane %v1545, 7
        %v1550 = vrot.slane %v1546, 7
        %v1551 = vrot.slane %v1547, 7
        %v1552 = vsel %vm631, %v1550, %v1551
        %v1553 = vsel %vm631, %v1549, %v1550
        %v1554 = vsel %vm631, %v1548, %v1549
        %v1555 = vsel %vm631, %v1551, %v1548
        %v1556 = vsel %vm656, 0.0, %v1555
        %v1557 = vsel %vm657, 0.0, %v1554
        %v1558 = vsel %vm658, 0.0, %v1553
        %v1559 = vsel %vm659, 0.0, %v1552
        %v1560 = vpack.c.bf16 %v1557, %v1556
        %v1561 = vpack.c.bf16 %v1559, %v1558
        %s1562 = scalar_lea.vmem %s2, 48
        %v1563 = vld [vmem:[%s1562] sm:$0xf]
        %v1564 = vld [vmem:[%s1562 + $0x4] sm:$0xf]
        %v1565 = vld [vmem:[%s1562 + $0x8] sm:$0xf]
        %v1566 = vld [vmem:[%s1562 + $0xc] sm:$0xf]
        %v1567 = vpack.c.bf16 %v1545, %v1544
        %v1568 = vpack.c.bf16 %v1547, %v1546
        %s1569 = scalar_lea.vmem [#allocation5], 48
        %v1570 = vld [vmem:[%s1569] sm:$0xf]
        %v1571 = vld [vmem:[%s1569 + $0x4] sm:$0xf]
        %v1572 = vld [vmem:[%s1569 + $0x8] sm:$0xf]
        %v1573 = vld [vmem:[%s1569 + $0xc] sm:$0xf]
        %v1578 = vunpack.c.l.b16 %v1570
        %v1579 = vunpack.c.l.b16 %v1571
        %v1580 = vunpack.c.l.b16 %v1572
        %v1581 = vunpack.c.l.b16 %v1573
        %v1582 = vpack.c.b16 %v1579, %v1578
        %v1583 = vpack.c.b16 %v1581, %v1580
        %v1587 = vsel %vm688, %v1567, 0
        %v1590 = vsel %vm688, %v1568, 0
        %1592 = vmatprep.subr.bf16.mxu0 0
        %1593 = vmatpush1.bf16.msra.mxu0 %v1582
        %1594 = vmatprep.subr.bf16.mxu0 0
        %1595 = vmatpush1.bf16.msra.mxu0 %v1583
        %1596 = vmatprep.subr.bf16.mxu0 0
        %1597 = vmatpush1.bf16.msra.mxu0 0
        %1598 = vmatprep.subr.bf16.mxu0 0
        %1599 = vmatpush1.bf16.msra.mxu0 0
        %1600 = vmatprep.subr.bf16.mxu0 0
        %1601 = vmatpush1.bf16.msra.mxu0 0
        %1602 = vmatprep.subr.bf16.mxu0 0
        %1603 = vmatpush1.bf16.msra.mxu0 0
        %1604 = vmatprep.subr.bf16.mxu0 0
        %1605 = vmatpush1.bf16.msra.mxu0 0
        %1606 = vmatprep.subr.bf16.mxu0 0
        %1607 = vmatpush1.bf16.msra.mxu0 0
        %1608 = vmatprep.subr.bf16.mxu0 0
        %1609 = vmatpush1.bf16.msra.mxu0 0
        %1610 = vmatprep.subr.bf16.mxu0 0
        %1611 = vmatpush1.bf16.msra.mxu0 0
        %1612 = vmatprep.subr.bf16.mxu0 0
        %1613 = vmatpush1.bf16.msra.mxu0 0
        %1614 = vmatprep.subr.bf16.mxu0 0
        %1615 = vmatpush1.bf16.msra.mxu0 0
        %1616 = vmatprep.subr.bf16.mxu0 0
        %1617 = vmatpush1.bf16.msra.mxu0 0
        %1618 = vmatprep.subr.bf16.mxu0 0
        %1619 = vmatpush1.bf16.msra.mxu0 0
        %1620 = vmatprep.subr.bf16.mxu0 0
        %1621 = vmatpush1.bf16.msra.mxu0 0
        %1622 = vmatprep.subr.bf16.mxu0 0
        %1623 = vmatpush1.bf16.msra.mxu0 0
        %1624 = vmatprep.mubr.bf16.mxu0 0
        %1625 = vmatmul.mubr.bf16.gmra.mrb[0].mxu0 %v1587
        %v1626 = vpop.f32.mrb[0].mxu0
        %v1627 = vadd.f32 0.0, %v1626
        %v1628 = vpop.f32.mrb[0].mxu0
        %v1629 = vpop.f32.mrb[0].mxu0
        %v1630 = vadd.f32 0.0, %v1629
        %v1631 = vpop.f32.mrb[0].mxu0
        %1632 = vmatprep.mubr.bf16.mxu0 0
        %1633 = vmatmul.mubr.bf16.gmra.mrb[0].mxu0 %v1590
        %v1634 = vpop.f32.mrb[0].mxu0
        %v1635 = vadd.f32 0.0, %v1634
        %v1636 = vpop.f32.mrb[0].mxu0
        %v1637 = vpop.f32.mrb[0].mxu0
        %v1638 = vadd.f32 0.0, %v1637
        %v1639 = vpop.f32.mrb[0].mxu0
        %1640 = vdwg.mxu0
        %v1645 = vunpack.c.l.b16 %v1563
        %v1646 = vunpack.c.l.b16 %v1564
        %v1647 = vunpack.c.l.b16 %v1565
        %v1648 = vunpack.c.l.b16 %v1566
        %v1649 = vpack.c.b16 %v1646, %v1645
        %v1650 = vpack.c.b16 %v1648, %v1647
        %v1654 = vsel %vm688, %v1560, 0
        %v1657 = vsel %vm688, %v1561, 0
        %1659 = vmatprep.subr.bf16.mxu0 0
        %1660 = vmatpush1.bf16.msra.mxu0 %v1649
        %1661 = vmatprep.subr.bf16.mxu0 0
        %1662 = vmatpush1.bf16.msra.mxu0 %v1650
        %1663 = vmatprep.subr.bf16.mxu0 0
        %1664 = vmatpush1.bf16.msra.mxu0 0
        %1665 = vmatprep.subr.bf16.mxu0 0
        %1666 = vmatpush1.bf16.msra.mxu0 0
        %1667 = vmatprep.subr.bf16.mxu0 0
        %1668 = vmatpush1.bf16.msra.mxu0 0
        %1669 = vmatprep.subr.bf16.mxu0 0
        %1670 = vmatpush1.bf16.msra.mxu0 0
        %1671 = vmatprep.subr.bf16.mxu0 0
        %1672 = vmatpush1.bf16.msra.mxu0 0
        %1673 = vmatprep.subr.bf16.mxu0 0
        %1674 = vmatpush1.bf16.msra.mxu0 0
        %1675 = vmatprep.subr.bf16.mxu0 0
        %1676 = vmatpush1.bf16.msra.mxu0 0
        %1677 = vmatprep.subr.bf16.mxu0 0
        %1678 = vmatpush1.bf16.msra.mxu0 0
        %1679 = vmatprep.subr.bf16.mxu0 0
        %1680 = vmatpush1.bf16.msra.mxu0 0
        %1681 = vmatprep.subr.bf16.mxu0 0
        %1682 = vmatpush1.bf16.msra.mxu0 0
        %1683 = vmatprep.subr.bf16.mxu0 0
        %1684 = vmatpush1.bf16.msra.mxu0 0
        %1685 = vmatprep.subr.bf16.mxu0 0
        %1686 = vmatpush1.bf16.msra.mxu0 0
        %1687 = vmatprep.subr.bf16.mxu0 0
        %1688 = vmatpush1.bf16.msra.mxu0 0
        %1689 = vmatprep.subr.bf16.mxu0 0
        %1690 = vmatpush1.bf16.msra.mxu0 0
        %1691 = vmatprep.mubr.bf16.mxu0 0
        %1692 = vmatmul.mubr.bf16.gmra.mrb[0].mxu0 %v1654
        %v1693 = vpop.f32.mrb[0].mxu0
        %v1694 = vadd.f32 %v1627, %v1693
        %v1695 = vpop.f32.mrb[0].mxu0
        %v1696 = vpop.f32.mrb[0].mxu0
        %v1697 = vadd.f32 %v1630, %v1696
        %v1698 = vpop.f32.mrb[0].mxu0
        %1699 = vmatprep.mubr.bf16.mxu0 0
        %1700 = vmatmul.mubr.bf16.gmra.mrb[0].mxu0 %v1657
        %v1701 = vpop.f32.mrb[0].mxu0
        %v1702 = vadd.f32 %v1635, %v1701
        %v1703 = vpop.f32.mrb[0].mxu0
        %v1704 = vpop.f32.mrb[0].mxu0
        %v1705 = vadd.f32 %v1638, %v1704
        %v1706 = vpop.f32.mrb[0].mxu0
        %1707 = vdwg.mxu0
        %v1708 = vlaneseq
        %v1709 = vshrl.u32 %v1708, 7
        %v1710 = vsub.s32 3, %v1709
        %v1711 = vrot.slane %v643, %v1710
        %v1712 = vadd.f32 %v1694, %v1711
        %v1713 = vadd.f32 %v1697, %v1711
        %v1714 = vadd.f32 %v1702, %v1711
        %v1715 = vadd.f32 %v1705, %v1711
        %v1716 = vtanh.pop %v1712
        %v1717 = vtanh.pop %v1713
        %v1718 = vtanh.pop %v1714
        %v1719 = vtanh.pop %v1715
        %v1720 = vmul.f32 %v1716, 0.5
        %v1721 = vmul.f32 %v1717, 0.5
        %v1722 = vmul.f32 %v1718, 0.5
        %v1723 = vmul.f32 %v1719, 0.5
        %v1724 = vadd.f32 %v1720, 0.5
        %v1725 = vadd.f32 %v1721, 0.5
        %v1726 = vadd.f32 %v1722, 0.5
        %v1727 = vadd.f32 %v1723, 0.5
        %1732 = vrot.lane.b32.xlu0 %v1724, 96
        %v1733 = vpop.permute.xlu0 %1732
        %1734 = vrot.lane.b32.xlu0 %v1725, 96
        %v1735 = vpop.permute.xlu0 %1734
        %1736 = vrot.lane.b32.xlu0 %v1726, 96
        %v1737 = vpop.permute.xlu0 %1736
        %1738 = vrot.lane.b32.xlu0 %v1727, 96
        %v1739 = vpop.permute.xlu0 %1738
        %v1744 = vmul.f32 %v1716, %v1733
        %v1745 = vmul.f32 %v1717, %v1735
        %v1746 = vmul.f32 %v1718, %v1737
        %v1747 = vmul.f32 %v1719, %v1739
        %v1748 = vpack.c.bf16 %v1745, %v1744
        %v1749 = vpack.c.bf16 %v1747, %v1746
        %s1750 = scalar_lea.vmem %s4, 96
        %v1751 = vld [vmem:[%s1750] sm:$0xff]
        %v1752 = vld [vmem:[%s1750 + $0x8] sm:$0xff]
        %v1753 = vld [vmem:[%s1750 + $0x10] sm:$0xff]
        %v1754 = vld [vmem:[%s1750 + $0x18] sm:$0xff]
        %v1759 = vunpack.c.l.b16 %v1751
        %v1760 = vunpack.c.h.b16 %v1751
        %v1761 = vunpack.c.l.b16 %v1752
        %v1762 = vunpack.c.h.b16 %v1752
        %v1763 = vunpack.c.l.b16 %v1753
        %v1764 = vunpack.c.h.b16 %v1753
        %v1765 = vunpack.c.l.b16 %v1754
        %v1766 = vunpack.c.h.b16 %v1754
        %v1767 = vpack.c.b16 %v1761, %v1759
        %v1768 = vpack.c.b16 %v1762, %v1760
        %v1769 = vpack.c.b16 %v1765, %v1763
        %v1770 = vpack.c.b16 %v1766, %v1764
        %v1776 = vsel %vm688, %v1748, 0
        %v1779 = vsel %vm688, %v1749, 0
        %1781 = vmatprep.subr.bf16.mxu0 %v1768
        %1782 = vmatpush1.bf16.msra.mxu0 %v1767
        %1783 = vmatprep.subr.bf16.mxu0 %v1770
        %1784 = vmatpush1.bf16.msra.mxu0 %v1769
        %1785 = vmatprep.subr.bf16.mxu0 0
        %1786 = vmatpush1.bf16.msra.mxu0 0
        %1787 = vmatprep.subr.bf16.mxu0 0
        %1788 = vmatpush1.bf16.msra.mxu0 0
        %1789 = vmatprep.subr.bf16.mxu0 0
        %1790 = vmatpush1.bf16.msra.mxu0 0
        %1791 = vmatprep.subr.bf16.mxu0 0
        %1792 = vmatpush1.bf16.msra.mxu0 0
        %1793 = vmatprep.subr.bf16.mxu0 0
        %1794 = vmatpush1.bf16.msra.mxu0 0
        %1795 = vmatprep.subr.bf16.mxu0 0
        %1796 = vmatpush1.bf16.msra.mxu0 0
        %1797 = vmatprep.subr.bf16.mxu0 0
        %1798 = vmatpush1.bf16.msra.mxu0 0
        %1799 = vmatprep.subr.bf16.mxu0 0
        %1800 = vmatpush1.bf16.msra.mxu0 0
        %1801 = vmatprep.subr.bf16.mxu0 0
        %1802 = vmatpush1.bf16.msra.mxu0 0
        %1803 = vmatprep.subr.bf16.mxu0 0
        %1804 = vmatpush1.bf16.msra.mxu0 0
        %1805 = vmatprep.subr.bf16.mxu0 0
        %1806 = vmatpush1.bf16.msra.mxu0 0
        %1807 = vmatprep.subr.bf16.mxu0 0
        %1808 = vmatpush1.bf16.msra.mxu0 0
        %1809 = vmatprep.subr.bf16.mxu0 0
        %1810 = vmatpush1.bf16.msra.mxu0 0
        %1811 = vmatprep.subr.bf16.mxu0 0
        %1812 = vmatpush1.bf16.msra.mxu0 0
        %1813 = vmatprep.mubr.bf16.mxu0 0
        %1814 = vmatmul.mubr.bf16.gmra.mrb[0].mxu0 %v1776
        %v1815 = vpop.f32.mrb[0].mxu0
        %v1816 = vadd.f32 0.0, %v1815
        %v1817 = vpop.f32.mrb[0].mxu0
        %v1818 = vadd.f32 0.0, %v1817
        %v1819 = vpop.f32.mrb[0].mxu0
        %v1820 = vadd.f32 0.0, %v1819
        %v1821 = vpop.f32.mrb[0].mxu0
        %v1822 = vadd.f32 0.0, %v1821
        %1823 = vmatprep.mubr.bf16.mxu0 0
        %1824 = vmatmul.mubr.bf16.gmra.mrb[0].mxu0 %v1779
        %v1825 = vpop.f32.mrb[0].mxu0
        %v1826 = vadd.f32 0.0, %v1825
        %v1827 = vpop.f32.mrb[0].mxu0
        %v1828 = vadd.f32 0.0, %v1827
        %v1829 = vpop.f32.mrb[0].mxu0
        %v1830 = vadd.f32 0.0, %v1829
        %v1831 = vpop.f32.mrb[0].mxu0
        %v1832 = vadd.f32 0.0, %v1831
        %1833 = vdwg.mxu0
        %v1834 = vadd.f32 %v1540, %v1816
        %v1835 = vadd.f32 %v1541, %v1820
        %v1836 = vadd.f32 %v1542, %v1826
        %v1837 = vadd.f32 %v1543, %v1830
        %v1838 = vadd.f32 %v1544, %v1818
        %v1839 = vadd.f32 %v1545, %v1822
        %v1840 = vadd.f32 %v1546, %v1828
        %v1841 = vadd.f32 %v1547, %v1832
        %v1842 = vrot.slane %v1838, 6
        %v1843 = vrot.slane %v1839, 6
        %v1844 = vrot.slane %v1840, 6
        %v1845 = vrot.slane %v1841, 6
        %v1846 = vsel %vm635, %v1844, %v1845
        %v1847 = vsel %vm635, %v1843, %v1844
        %v1848 = vsel %vm635, %v1842, %v1843
        %v1849 = vsel %vm635, %v1845, %v1842
        %v1850 = vsel %vm956, 0.0, %v1849
        %v1851 = vsel %vm957, 0.0, %v1848
        %v1852 = vsel %vm958, 0.0, %v1847
        %v1853 = vsel %vm959, 0.0, %v1846
        %v1854 = vpack.c.bf16 %v1851, %v1850
        %v1855 = vpack.c.bf16 %v1853, %v1852
        %s1856 = scalar_lea.vmem %s2, 64
        %v1857 = vld [vmem:[%s1856] sm:$0xf]
        %v1858 = vld [vmem:[%s1856 + $0x4] sm:$0xf]
        %v1859 = vld [vmem:[%s1856 + $0x8] sm:$0xf]
        %v1860 = vld [vmem:[%s1856 + $0xc] sm:$0xf]
        %v1861 = vpack.c.bf16 %v1839, %v1838
        %v1862 = vpack.c.bf16 %v1841, %v1840
        %s1863 = scalar_lea.vmem [#allocation5], 64
        %v1864 = vld [vmem:[%s1863] sm:$0xf]
        %v1865 = vld [vmem:[%s1863 + $0x4] sm:$0xf]
        %v1866 = vld [vmem:[%s1863 + $0x8] sm:$0xf]
        %v1867 = vld [vmem:[%s1863 + $0xc] sm:$0xf]
        %v1872 = vunpack.c.l.b16 %v1864
        %v1873 = vunpack.c.l.b16 %v1865
        %v1874 = vunpack.c.l.b16 %v1866
        %v1875 = vunpack.c.l.b16 %v1867
        %v1876 = vpack.c.b16 %v1873, %v1872
        %v1877 = vpack.c.b16 %v1875, %v1874
        %v1881 = vsel %vm688, %v1861, 0
        %v1884 = vsel %vm688, %v1862, 0
        %1886 = vmatprep.subr.bf16.mxu0 0
        %1887 = vmatpush1.bf16.msra.mxu0 %v1876
        %1888 = vmatprep.subr.bf16.mxu0 0
        %1889 = vmatpush1.bf16.msra.mxu0 %v1877
        %1890 = vmatprep.subr.bf16.mxu0 0
        %1891 = vmatpush1.bf16.msra.mxu0 0
        %1892 = vmatprep.subr.bf16.mxu0 0
        %1893 = vmatpush1.bf16.msra.mxu0 0
        %1894 = vmatprep.subr.bf16.mxu0 0
        %1895 = vmatpush1.bf16.msra.mxu0 0
        %1896 = vmatprep.subr.bf16.mxu0 0
        %1897 = vmatpush1.bf16.msra.mxu0 0
        %1898 = vmatprep.subr.bf16.mxu0 0
        %1899 = vmatpush1.bf16.msra.mxu0 0
        %1900 = vmatprep.subr.bf16.mxu0 0
        %1901 = vmatpush1.bf16.msra.mxu0 0
        %1902 = vmatprep.subr.bf16.mxu0 0
        %1903 = vmatpush1.bf16.msra.mxu0 0
        %1904 = vmatprep.subr.bf16.mxu0 0
        %1905 = vmatpush1.bf16.msra.mxu0 0
        %1906 = vmatprep.subr.bf16.mxu0 0
        %1907 = vmatpush1.bf16.msra.mxu0 0
        %1908 = vmatprep.subr.bf16.mxu0 0
        %1909 = vmatpush1.bf16.msra.mxu0 0
        %1910 = vmatprep.subr.bf16.mxu0 0
        %1911 = vmatpush1.bf16.msra.mxu0 0
        %1912 = vmatprep.subr.bf16.mxu0 0
        %1913 = vmatpush1.bf16.msra.mxu0 0
        %1914 = vmatprep.subr.bf16.mxu0 0
        %1915 = vmatpush1.bf16.msra.mxu0 0
        %1916 = vmatprep.subr.bf16.mxu0 0
        %1917 = vmatpush1.bf16.msra.mxu0 0
        %1918 = vmatprep.mubr.bf16.mxu0 0
        %1919 = vmatmul.mubr.bf16.gmra.mrb[0].mxu0 %v1881
        %v1920 = vpop.f32.mrb[0].mxu0
        %v1921 = vadd.f32 0.0, %v1920
        %v1922 = vpop.f32.mrb[0].mxu0
        %v1923 = vpop.f32.mrb[0].mxu0
        %v1924 = vadd.f32 0.0, %v1923
        %v1925 = vpop.f32.mrb[0].mxu0
        %1926 = vmatprep.mubr.bf16.mxu0 0
        %1927 = vmatmul.mubr.bf16.gmra.mrb[0].mxu0 %v1884
        %v1928 = vpop.f32.mrb[0].mxu0
        %v1929 = vadd.f32 0.0, %v1928
        %v1930 = vpop.f32.mrb[0].mxu0
        %v1931 = vpop.f32.mrb[0].mxu0
        %v1932 = vadd.f32 0.0, %v1931
        %v1933 = vpop.f32.mrb[0].mxu0
        %1934 = vdwg.mxu0
        %v1939 = vunpack.c.l.b16 %v1857
        %v1940 = vunpack.c.l.b16 %v1858
        %v1941 = vunpack.c.l.b16 %v1859
        %v1942 = vunpack.c.l.b16 %v1860
        %v1943 = vpack.c.b16 %v1940, %v1939
        %v1944 = vpack.c.b16 %v1942, %v1941
        %v1948 = vsel %vm688, %v1854, 0
        %v1951 = vsel %vm688, %v1855, 0
        %1953 = vmatprep.subr.bf16.mxu0 0
        %1954 = vmatpush1.bf16.msra.mxu0 %v1943
        %1955 = vmatprep.subr.bf16.mxu0 0
        %1956 = vmatpush1.bf16.msra.mxu0 %v1944
        %1957 = vmatprep.subr.bf16.mxu0 0
        %1958 = vmatpush1.bf16.msra.mxu0 0
        %1959 = vmatprep.subr.bf16.mxu0 0
        %1960 = vmatpush1.bf16.msra.mxu0 0
        %1961 = vmatprep.subr.bf16.mxu0 0
        %1962 = vmatpush1.bf16.msra.mxu0 0
        %1963 = vmatprep.subr.bf16.mxu0 0
        %1964 = vmatpush1.bf16.msra.mxu0 0
        %1965 = vmatprep.subr.bf16.mxu0 0
        %1966 = vmatpush1.bf16.msra.mxu0 0
        %1967 = vmatprep.subr.bf16.mxu0 0
        %1968 = vmatpush1.bf16.msra.mxu0 0
        %1969 = vmatprep.subr.bf16.mxu0 0
        %1970 = vmatpush1.bf16.msra.mxu0 0
        %1971 = vmatprep.subr.bf16.mxu0 0
        %1972 = vmatpush1.bf16.msra.mxu0 0
        %1973 = vmatprep.subr.bf16.mxu0 0
        %1974 = vmatpush1.bf16.msra.mxu0 0
        %1975 = vmatprep.subr.bf16.mxu0 0
        %1976 = vmatpush1.bf16.msra.mxu0 0
        %1977 = vmatprep.subr.bf16.mxu0 0
        %1978 = vmatpush1.bf16.msra.mxu0 0
        %1979 = vmatprep.subr.bf16.mxu0 0
        %1980 = vmatpush1.bf16.msra.mxu0 0
        %1981 = vmatprep.subr.bf16.mxu0 0
        %1982 = vmatpush1.bf16.msra.mxu0 0
        %1983 = vmatprep.subr.bf16.mxu0 0
        %1984 = vmatpush1.bf16.msra.mxu0 0
        %1985 = vmatprep.mubr.bf16.mxu0 0
        %1986 = vmatmul.mubr.bf16.gmra.mrb[0].mxu0 %v1948
        %v1987 = vpop.f32.mrb[0].mxu0
        %v1988 = vadd.f32 %v1921, %v1987
        %v1989 = vpop.f32.mrb[0].mxu0
        %v1990 = vpop.f32.mrb[0].mxu0
        %v1991 = vadd.f32 %v1924, %v1990
        %v1992 = vpop.f32.mrb[0].mxu0
        %1993 = vmatprep.mubr.bf16.mxu0 0
        %1994 = vmatmul.mubr.bf16.gmra.mrb[0].mxu0 %v1951
        %v1995 = vpop.f32.mrb[0].mxu0
        %v1996 = vadd.f32 %v1929, %v1995
        %v1997 = vpop.f32.mrb[0].mxu0
        %v1998 = vpop.f32.mrb[0].mxu0
        %v1999 = vadd.f32 %v1932, %v1998
        %v2000 = vpop.f32.mrb[0].mxu0
        %2001 = vdwg.mxu0
        %v2002 = vlaneseq
        %v2003 = vshrl.u32 %v2002, 7
        %v2004 = vsub.s32 4, %v2003
        %v2005 = vrot.slane %v643, %v2004
        %v2006 = vadd.f32 %v1988, %v2005
        %v2007 = vadd.f32 %v1991, %v2005
        %v2008 = vadd.f32 %v1996, %v2005
        %v2009 = vadd.f32 %v1999, %v2005
        %v2010 = vtanh.pop %v2006
        %v2011 = vtanh.pop %v2007
        %v2012 = vtanh.pop %v2008
        %v2013 = vtanh.pop %v2009
        %v2014 = vmul.f32 %v2010, 0.5
        %v2015 = vmul.f32 %v2011, 0.5
        %v2016 = vmul.f32 %v2012, 0.5
        %v2017 = vmul.f32 %v2013, 0.5
        %v2018 = vadd.f32 %v2014, 0.5
        %v2019 = vadd.f32 %v2015, 0.5
        %v2020 = vadd.f32 %v2016, 0.5
        %v2021 = vadd.f32 %v2017, 0.5
        %2026 = vrot.lane.b32.xlu0 %v2018, 96
        %v2027 = vpop.permute.xlu0 %2026
        %2028 = vrot.lane.b32.xlu0 %v2019, 96
        %v2029 = vpop.permute.xlu0 %2028
        %2030 = vrot.lane.b32.xlu0 %v2020, 96
        %v2031 = vpop.permute.xlu0 %2030
        %2032 = vrot.lane.b32.xlu0 %v2021, 96
        %v2033 = vpop.permute.xlu0 %2032
        %v2038 = vmul.f32 %v2010, %v2027
        %v2039 = vmul.f32 %v2011, %v2029
        %v2040 = vmul.f32 %v2012, %v2031
        %v2041 = vmul.f32 %v2013, %v2033
        %v2042 = vpack.c.bf16 %v2039, %v2038
        %v2043 = vpack.c.bf16 %v2041, %v2040
        %s2044 = scalar_lea.vmem %s4, 128
        %v2045 = vld [vmem:[%s2044] sm:$0xff]
        %v2046 = vld [vmem:[%s2044 + $0x8] sm:$0xff]
        %v2047 = vld [vmem:[%s2044 + $0x10] sm:$0xff]
        %v2048 = vld [vmem:[%s2044 + $0x18] sm:$0xff]
        %v2053 = vunpack.c.l.b16 %v2045
        %v2054 = vunpack.c.h.b16 %v2045
        %v2055 = vunpack.c.l.b16 %v2046
        %v2056 = vunpack.c.h.b16 %v2046
        %v2057 = vunpack.c.l.b16 %v2047
        %v2058 = vunpack.c.h.b16 %v2047
        %v2059 = vunpack.c.l.b16 %v2048
        %v2060 = vunpack.c.h.b16 %v2048
        %v2061 = vpack.c.b16 %v2055, %v2053
        %v2062 = vpack.c.b16 %v2056, %v2054
        %v2063 = vpack.c.b16 %v2059, %v2057
        %v2064 = vpack.c.b16 %v2060, %v2058
        %v2070 = vsel %vm688, %v2042, 0
        %v2073 = vsel %vm688, %v2043, 0
        %2075 = vmatprep.subr.bf16.mxu0 %v2062
        %2076 = vmatpush1.bf16.msra.mxu0 %v2061
        %2077 = vmatprep.subr.bf16.mxu0 %v2064
        %2078 = vmatpush1.bf16.msra.mxu0 %v2063
        %2079 = vmatprep.subr.bf16.mxu0 0
        %2080 = vmatpush1.bf16.msra.mxu0 0
        %2081 = vmatprep.subr.bf16.mxu0 0
        %2082 = vmatpush1.bf16.msra.mxu0 0
        %2083 = vmatprep.subr.bf16.mxu0 0
        %2084 = vmatpush1.bf16.msra.mxu0 0
        %2085 = vmatprep.subr.bf16.mxu0 0
        %2086 = vmatpush1.bf16.msra.mxu0 0
        %2087 = vmatprep.subr.bf16.mxu0 0
        %2088 = vmatpush1.bf16.msra.mxu0 0
        %2089 = vmatprep.subr.bf16.mxu0 0
        %2090 = vmatpush1.bf16.msra.mxu0 0
        %2091 = vmatprep.subr.bf16.mxu0 0
        %2092 = vmatpush1.bf16.msra.mxu0 0
        %2093 = vmatprep.subr.bf16.mxu0 0
        %2094 = vmatpush1.bf16.msra.mxu0 0
        %2095 = vmatprep.subr.bf16.mxu0 0
        %2096 = vmatpush1.bf16.msra.mxu0 0
        %2097 = vmatprep.subr.bf16.mxu0 0
        %2098 = vmatpush1.bf16.msra.mxu0 0
        %2099 = vmatprep.subr.bf16.mxu0 0
        %2100 = vmatpush1.bf16.msra.mxu0 0
        %2101 = vmatprep.subr.bf16.mxu0 0
        %2102 = vmatpush1.bf16.msra.mxu0 0
        %2103 = vmatprep.subr.bf16.mxu0 0
        %2104 = vmatpush1.bf16.msra.mxu0 0
        %2105 = vmatprep.subr.bf16.mxu0 0
        %2106 = vmatpush1.bf16.msra.mxu0 0
        %2107 = vmatprep.mubr.bf16.mxu0 0
        %2108 = vmatmul.mubr.bf16.gmra.mrb[0].mxu0 %v2070
        %v2109 = vpop.f32.mrb[0].mxu0
        %v2110 = vadd.f32 0.0, %v2109
        %v2111 = vpop.f32.mrb[0].mxu0
        %v2112 = vadd.f32 0.0, %v2111
        %v2113 = vpop.f32.mrb[0].mxu0
        %v2114 = vadd.f32 0.0, %v2113
        %v2115 = vpop.f32.mrb[0].mxu0
        %v2116 = vadd.f32 0.0, %v2115
        %2117 = vmatprep.mubr.bf16.mxu0 0
        %2118 = vmatmul.mubr.bf16.gmra.mrb[0].mxu0 %v2073
        %v2119 = vpop.f32.mrb[0].mxu0
        %v2120 = vadd.f32 0.0, %v2119
        %v2121 = vpop.f32.mrb[0].mxu0
        %v2122 = vadd.f32 0.0, %v2121
        %v2123 = vpop.f32.mrb[0].mxu0
        %v2124 = vadd.f32 0.0, %v2123
        %v2125 = vpop.f32.mrb[0].mxu0
        %v2126 = vadd.f32 0.0, %v2125
        %2127 = vdwg.mxu0
        %v2128 = vadd.f32 %v1834, %v2110
        %v2129 = vadd.f32 %v1835, %v2114
        %v2130 = vadd.f32 %v1836, %v2120
        %v2131 = vadd.f32 %v1837, %v2124
        %v2132 = vadd.f32 %v1838, %v2112
        %v2133 = vadd.f32 %v1839, %v2116
        %v2134 = vadd.f32 %v1840, %v2122
        %v2135 = vadd.f32 %v1841, %v2126
        %v2136 = vrot.slane %v2132, 4
        %v2137 = vrot.slane %v2133, 4
        %v2138 = vrot.slane %v2134, 4
        %v2139 = vrot.slane %v2135, 4
        %v2140 = vsel %vm639, %v2138, %v2139
        %v2141 = vsel %vm639, %v2137, %v2138
        %v2142 = vsel %vm639, %v2136, %v2137
        %v2143 = vsel %vm639, %v2139, %v2136
        %v2144 = vsel %vm1258, 0.0, %v2143
        %v2145 = vsel %vm1259, 0.0, %v2142
        %v2146 = vsel %vm1260, 0.0, %v2141
        %v2147 = vsel %vm1261, 0.0, %v2140
        %v2148 = vpack.c.bf16 %v2145, %v2144
        %v2149 = vpack.c.bf16 %v2147, %v2146
        %s2150 = scalar_lea.vmem %s2, 80
        %v2151 = vld [vmem:[%s2150] sm:$0xf]
        %v2152 = vld [vmem:[%s2150 + $0x4] sm:$0xf]
        %v2153 = vld [vmem:[%s2150 + $0x8] sm:$0xf]
        %v2154 = vld [vmem:[%s2150 + $0xc] sm:$0xf]
        %v2155 = vpack.c.bf16 %v2133, %v2132
        %v2156 = vpack.c.bf16 %v2135, %v2134
        %s2157 = scalar_lea.vmem [#allocation5], 80
        %v2158 = vld [vmem:[%s2157] sm:$0xf]
        %v2159 = vld [vmem:[%s2157 + $0x4] sm:$0xf]
        %v2160 = vld [vmem:[%s2157 + $0x8] sm:$0xf]
        %v2161 = vld [vmem:[%s2157 + $0xc] sm:$0xf]
        %v2166 = vunpack.c.l.b16 %v2158
        %v2167 = vunpack.c.l.b16 %v2159
        %v2168 = vunpack.c.l.b16 %v2160
        %v2169 = vunpack.c.l.b16 %v2161
        %v2170 = vpack.c.b16 %v2167, %v2166
        %v2171 = vpack.c.b16 %v2169, %v2168
        %v2175 = vsel %vm688, %v2155, 0
        %v2178 = vsel %vm688, %v2156, 0
        %2180 = vmatprep.subr.bf16.mxu0 0
        %2181 = vmatpush1.bf16.msra.mxu0 %v2170
        %2182 = vmatprep.subr.bf16.mxu0 0
        %2183 = vmatpush1.bf16.msra.mxu0 %v2171
        %2184 = vmatprep.subr.bf16.mxu0 0
        %2185 = vmatpush1.bf16.msra.mxu0 0
        %2186 = vmatprep.subr.bf16.mxu0 0
        %2187 = vmatpush1.bf16.msra.mxu0 0
        %2188 = vmatprep.subr.bf16.mxu0 0
        %2189 = vmatpush1.bf16.msra.mxu0 0
        %2190 = vmatprep.subr.bf16.mxu0 0
        %2191 = vmatpush1.bf16.msra.mxu0 0
        %2192 = vmatprep.subr.bf16.mxu0 0
        %2193 = vmatpush1.bf16.msra.mxu0 0
        %2194 = vmatprep.subr.bf16.mxu0 0
        %2195 = vmatpush1.bf16.msra.mxu0 0
        %2196 = vmatprep.subr.bf16.mxu0 0
        %2197 = vmatpush1.bf16.msra.mxu0 0
        %2198 = vmatprep.subr.bf16.mxu0 0
        %2199 = vmatpush1.bf16.msra.mxu0 0
        %2200 = vmatprep.subr.bf16.mxu0 0
        %2201 = vmatpush1.bf16.msra.mxu0 0
        %2202 = vmatprep.subr.bf16.mxu0 0
        %2203 = vmatpush1.bf16.msra.mxu0 0
        %2204 = vmatprep.subr.bf16.mxu0 0
        %2205 = vmatpush1.bf16.msra.mxu0 0
        %2206 = vmatprep.subr.bf16.mxu0 0
        %2207 = vmatpush1.bf16.msra.mxu0 0
        %2208 = vmatprep.subr.bf16.mxu0 0
        %2209 = vmatpush1.bf16.msra.mxu0 0
        %2210 = vmatprep.subr.bf16.mxu0 0
        %2211 = vmatpush1.bf16.msra.mxu0 0
        %2212 = vmatprep.mubr.bf16.mxu0 0
        %2213 = vmatmul.mubr.bf16.gmra.mrb[0].mxu0 %v2175
        %v2214 = vpop.f32.mrb[0].mxu0
        %v2215 = vadd.f32 0.0, %v2214
        %v2216 = vpop.f32.mrb[0].mxu0
        %v2217 = vpop.f32.mrb[0].mxu0
        %v2218 = vadd.f32 0.0, %v2217
        %v2219 = vpop.f32.mrb[0].mxu0
        %2220 = vmatprep.mubr.bf16.mxu0 0
        %2221 = vmatmul.mubr.bf16.gmra.mrb[0].mxu0 %v2178
        %v2222 = vpop.f32.mrb[0].mxu0
        %v2223 = vadd.f32 0.0, %v2222
        %v2224 = vpop.f32.mrb[0].mxu0
        %v2225 = vpop.f32.mrb[0].mxu0
        %v2226 = vadd.f32 0.0, %v2225
        %v2227 = vpop.f32.mrb[0].mxu0
        %2228 = vdwg.mxu0
        %v2233 = vunpack.c.l.b16 %v2151
        %v2234 = vunpack.c.l.b16 %v2152
        %v2235 = vunpack.c.l.b16 %v2153
        %v2236 = vunpack.c.l.b16 %v2154
        %v2237 = vpack.c.b16 %v2234, %v2233
        %v2238 = vpack.c.b16 %v2236, %v2235
        %v2242 = vsel %vm688, %v2148, 0
        %v2245 = vsel %vm688, %v2149, 0
        %2247 = vmatprep.subr.bf16.mxu0 0
        %2248 = vmatpush1.bf16.msra.mxu0 %v2237
        %2249 = vmatprep.subr.bf16.mxu0 0
        %2250 = vmatpush1.bf16.msra.mxu0 %v2238
        %2251 = vmatprep.subr.bf16.mxu0 0
        %2252 = vmatpush1.bf16.msra.mxu0 0
        %2253 = vmatprep.subr.bf16.mxu0 0
        %2254 = vmatpush1.bf16.msra.mxu0 0
        %2255 = vmatprep.subr.bf16.mxu0 0
        %2256 = vmatpush1.bf16.msra.mxu0 0
        %2257 = vmatprep.subr.bf16.mxu0 0
        %2258 = vmatpush1.bf16.msra.mxu0 0
        %2259 = vmatprep.subr.bf16.mxu0 0
        %2260 = vmatpush1.bf16.msra.mxu0 0
        %2261 = vmatprep.subr.bf16.mxu0 0
        %2262 = vmatpush1.bf16.msra.mxu0 0
        %2263 = vmatprep.subr.bf16.mxu0 0
        %2264 = vmatpush1.bf16.msra.mxu0 0
        %2265 = vmatprep.subr.bf16.mxu0 0
        %2266 = vmatpush1.bf16.msra.mxu0 0
        %2267 = vmatprep.subr.bf16.mxu0 0
        %2268 = vmatpush1.bf16.msra.mxu0 0
        %2269 = vmatprep.subr.bf16.mxu0 0
        %2270 = vmatpush1.bf16.msra.mxu0 0
        %2271 = vmatprep.subr.bf16.mxu0 0
        %2272 = vmatpush1.bf16.msra.mxu0 0
        %2273 = vmatprep.subr.bf16.mxu0 0
        %2274 = vmatpush1.bf16.msra.mxu0 0
        %2275 = vmatprep.subr.bf16.mxu0 0
        %2276 = vmatpush1.bf16.msra.mxu0 0
        %2277 = vmatprep.subr.bf16.mxu0 0
        %2278 = vmatpush1.bf16.msra.mxu0 0
        %2279 = vmatprep.mubr.bf16.mxu0 0
        %2280 = vmatmul.mubr.bf16.gmra.mrb[0].mxu0 %v2242
        %v2281 = vpop.f32.mrb[0].mxu0
        %v2282 = vadd.f32 %v2215, %v2281
        %v2283 = vpop.f32.mrb[0].mxu0
        %v2284 = vpop.f32.mrb[0].mxu0
        %v2285 = vadd.f32 %v2218, %v2284
        %v2286 = vpop.f32.mrb[0].mxu0
        %2287 = vmatprep.mubr.bf16.mxu0 0
        %2288 = vmatmul.mubr.bf16.gmra.mrb[0].mxu0 %v2245
        %v2289 = vpop.f32.mrb[0].mxu0
        %v2290 = vadd.f32 %v2223, %v2289
        %v2291 = vpop.f32.mrb[0].mxu0
        %v2292 = vpop.f32.mrb[0].mxu0
        %v2293 = vadd.f32 %v2226, %v2292
        %v2294 = vpop.f32.mrb[0].mxu0
        %2295 = vdwg.mxu0
        %v2296 = vlaneseq
        %v2297 = vshrl.u32 %v2296, 7
        %v2298 = vsub.s32 5, %v2297
        %v2299 = vrot.slane %v643, %v2298
        %v2300 = vadd.f32 %v2282, %v2299
        %v2301 = vadd.f32 %v2285, %v2299
        %v2302 = vadd.f32 %v2290, %v2299
        %v2303 = vadd.f32 %v2293, %v2299
        %v2304 = vtanh.pop %v2300
        %v2305 = vtanh.pop %v2301
        %v2306 = vtanh.pop %v2302
        %v2307 = vtanh.pop %v2303
        %v2308 = vmul.f32 %v2304, 0.5
        %v2309 = vmul.f32 %v2305, 0.5
        %v2310 = vmul.f32 %v2306, 0.5
        %v2311 = vmul.f32 %v2307, 0.5
        %v2312 = vadd.f32 %v2308, 0.5
        %v2313 = vadd.f32 %v2309, 0.5
        %v2314 = vadd.f32 %v2310, 0.5
        %v2315 = vadd.f32 %v2311, 0.5
        %2320 = vrot.lane.b32.xlu0 %v2312, 96
        %v2321 = vpop.permute.xlu0 %2320
        %2322 = vrot.lane.b32.xlu0 %v2313, 96
        %v2323 = vpop.permute.xlu0 %2322
        %2324 = vrot.lane.b32.xlu0 %v2314, 96
        %v2325 = vpop.permute.xlu0 %2324
        %2326 = vrot.lane.b32.xlu0 %v2315, 96
        %v2327 = vpop.permute.xlu0 %2326
        %v2332 = vmul.f32 %v2304, %v2321
        %v2333 = vmul.f32 %v2305, %v2323
        %v2334 = vmul.f32 %v2306, %v2325
        %v2335 = vmul.f32 %v2307, %v2327
        %v2336 = vpack.c.bf16 %v2333, %v2332
        %v2337 = vpack.c.bf16 %v2335, %v2334
        %s2338 = scalar_lea.vmem %s4, 160
        %v2339 = vld [vmem:[%s2338] sm:$0xff]
        %v2340 = vld [vmem:[%s2338 + $0x8] sm:$0xff]
        %v2341 = vld [vmem:[%s2338 + $0x10] sm:$0xff]
        %v2342 = vld [vmem:[%s2338 + $0x18] sm:$0xff]
        %v2347 = vunpack.c.l.b16 %v2339
        %v2348 = vunpack.c.h.b16 %v2339
        %v2349 = vunpack.c.l.b16 %v2340
        %v2350 = vunpack.c.h.b16 %v2340
        %v2351 = vunpack.c.l.b16 %v2341
        %v2352 = vunpack.c.h.b16 %v2341
        %v2353 = vunpack.c.l.b16 %v2342
        %v2354 = vunpack.c.h.b16 %v2342
        %v2355 = vpack.c.b16 %v2349, %v2347
        %v2356 = vpack.c.b16 %v2350, %v2348
        %v2357 = vpack.c.b16 %v2353, %v2351
        %v2358 = vpack.c.b16 %v2354, %v2352
        %v2364 = vsel %vm688, %v2336, 0
        %v2367 = vsel %vm688, %v2337, 0
        %2369 = vmatprep.subr.bf16.mxu0 %v2356
        %2370 = vmatpush1.bf16.msra.mxu0 %v2355
        %2371 = vmatprep.subr.bf16.mxu0 %v2358
        %2372 = vmatpush1.bf16.msra.mxu0 %v2357
        %2373 = vmatprep.subr.bf16.mxu0 0
        %2374 = vmatpush1.bf16.msra.mxu0 0
        %2375 = vmatprep.subr.bf16.mxu0 0
        %2376 = vmatpush1.bf16.msra.mxu0 0
        %2377 = vmatprep.subr.bf16.mxu0 0
        %2378 = vmatpush1.bf16.msra.mxu0 0
        %2379 = vmatprep.subr.bf16.mxu0 0
        %2380 = vmatpush1.bf16.msra.mxu0 0
        %2381 = vmatprep.subr.bf16.mxu0 0
        %2382 = vmatpush1.bf16.msra.mxu0 0
        %2383 = vmatprep.subr.bf16.mxu0 0
        %2384 = vmatpush1.bf16.msra.mxu0 0
        %2385 = vmatprep.subr.bf16.mxu0 0
        %2386 = vmatpush1.bf16.msra.mxu0 0
        %2387 = vmatprep.subr.bf16.mxu0 0
        %2388 = vmatpush1.bf16.msra.mxu0 0
        %2389 = vmatprep.subr.bf16.mxu0 0
        %2390 = vmatpush1.bf16.msra.mxu0 0
        %2391 = vmatprep.subr.bf16.mxu0 0
        %2392 = vmatpush1.bf16.msra.mxu0 0
        %2393 = vmatprep.subr.bf16.mxu0 0
        %2394 = vmatpush1.bf16.msra.mxu0 0
        %2395 = vmatprep.subr.bf16.mxu0 0
        %2396 = vmatpush1.bf16.msra.mxu0 0
        %2397 = vmatprep.subr.bf16.mxu0 0
        %2398 = vmatpush1.bf16.msra.mxu0 0
        %2399 = vmatprep.subr.bf16.mxu0 0
        %2400 = vmatpush1.bf16.msra.mxu0 0
        %2401 = vmatprep.mubr.bf16.mxu0 0
        %2402 = vmatmul.mubr.bf16.gmra.mrb[0].mxu0 %v2364
        %v2403 = vpop.f32.mrb[0].mxu0
        %v2404 = vadd.f32 0.0, %v2403
        %v2405 = vpop.f32.mrb[0].mxu0
        %v2406 = vpop.f32.mrb[0].mxu0
        %v2407 = vadd.f32 0.0, %v2406
        %v2408 = vpop.f32.mrb[0].mxu0
        %2409 = vmatprep.mubr.bf16.mxu0 0
        %2410 = vmatmul.mubr.bf16.gmra.mrb[0].mxu0 %v2367
        %v2411 = vpop.f32.mrb[0].mxu0
        %v2412 = vadd.f32 0.0, %v2411
        %v2413 = vpop.f32.mrb[0].mxu0
        %v2414 = vpop.f32.mrb[0].mxu0
        %v2415 = vadd.f32 0.0, %v2414
        %v2416 = vpop.f32.mrb[0].mxu0
        %2417 = vdwg.mxu0
        %v2418 = vadd.f32 %v2128, %v2404
        %v2419 = vadd.f32 %v2129, %v2407
        %v2420 = vadd.f32 %v2130, %v2412
        %v2421 = vadd.f32 %v2131, %v2415
        %v2422 = vmax.f32 %v2418, 0.0
        %v2423 = vmax.f32 %v2419, 0.0
        %v2424 = vmax.f32 %v2420, 0.0
        %v2425 = vmax.f32 %v2421, 0.0
        %v2426 = vpack.c.bf16 %v2423, %v2422
        %v2427 = vpack.c.bf16 %v2425, %v2424
        %v2428 = vld [vmem:[%s6] sm:$0xf]
        %v2429 = vld [vmem:[%s6 + $0x4] sm:$0xf]
        %v2430 = vld [vmem:[%s6 + $0x8] sm:$0xf]
        %v2431 = vld [vmem:[%s6 + $0xc] sm:$0xf]
        %v2432 = vld [vmem:[%s6 + $0x10] sm:$0xf]
        %v2433 = vld [vmem:[%s6 + $0x14] sm:$0xf]
        %v2434 = vld [vmem:[%s6 + $0x18] sm:$0xf]
        %v2435 = vld [vmem:[%s6 + $0x1c] sm:$0xf]
        %v2436 = vld [vmem:[%s6 + $0x20] sm:$0xf]
        %v2437 = vld [vmem:[%s6 + $0x24] sm:$0xf]
        %v2438 = vld [vmem:[%s6 + $0x28] sm:$0xf]
        %v2439 = vld [vmem:[%s6 + $0x2c] sm:$0xf]
        %v2440 = vld [vmem:[%s6 + $0x30] sm:$0xf]
        %v2441 = vld [vmem:[%s6 + $0x34] sm:$0xf]
        %v2442 = vld [vmem:[%s6 + $0x38] sm:$0xf]
        %v2443 = vld [vmem:[%s6 + $0x3c] sm:$0xf]
        %v2444 = vld [vmem:[%s7] sm:$0x1]
        %v2446 = vlaneseq
        %v2447 = vshrl.u32 %v2446, 7
        %v2448 = vsub.s32 0, %v2447
        %v2449 = vrot.slane %v2444, %v2448
        %v2467 = vunpack.c.l.b16 %v2428
        %v2468 = vunpack.c.l.b16 %v2429
        %v2469 = vunpack.c.l.b16 %v2430
        %v2470 = vunpack.c.l.b16 %v2431
        %v2471 = vunpack.c.l.b16 %v2432
        %v2472 = vunpack.c.l.b16 %v2433
        %v2473 = vunpack.c.l.b16 %v2434
        %v2474 = vunpack.c.l.b16 %v2435
        %v2475 = vunpack.c.l.b16 %v2436
        %v2476 = vunpack.c.l.b16 %v2437
        %v2477 = vunpack.c.l.b16 %v2438
        %v2478 = vunpack.c.l.b16 %v2439
        %v2479 = vunpack.c.l.b16 %v2440
        %v2480 = vunpack.c.l.b16 %v2441
        %v2481 = vunpack.c.l.b16 %v2442
        %v2482 = vunpack.c.l.b16 %v2443
        %v2483 = vpack.c.b16 %v2468, %v2467
        %v2484 = vpack.c.b16 %v2470, %v2469
        %v2485 = vpack.c.b16 %v2472, %v2471
        %v2486 = vpack.c.b16 %v2474, %v2473
        %v2487 = vpack.c.b16 %v2476, %v2475
        %v2488 = vpack.c.b16 %v2478, %v2477
        %v2489 = vpack.c.b16 %v2480, %v2479
        %v2490 = vpack.c.b16 %v2482, %v2481
        %2499 = vmatprep.subr.bf16.mxu0 0
        %2500 = vmatpush1.bf16.msra.mxu0 %v2483
        %2501 = vmatprep.subr.bf16.mxu0 0
        %2502 = vmatpush1.bf16.msra.mxu0 %v2484
        %2503 = vmatprep.subr.bf16.mxu0 0
        %2504 = vmatpush1.bf16.msra.mxu0 %v2485
        %2505 = vmatprep.subr.bf16.mxu0 0
        %2506 = vmatpush1.bf16.msra.mxu0 %v2486
        %2507 = vmatprep.subr.bf16.mxu0 0
        %2508 = vmatpush1.bf16.msra.mxu0 %v2487
        %2509 = vmatprep.subr.bf16.mxu0 0
        %2510 = vmatpush1.bf16.msra.mxu0 %v2488
        %2511 = vmatprep.subr.bf16.mxu0 0
        %2512 = vmatpush1.bf16.msra.mxu0 %v2489
        %2513 = vmatprep.subr.bf16.mxu0 0
        %2514 = vmatpush1.bf16.msra.mxu0 %v2490
        %2515 = vmatprep.subr.bf16.mxu0 0
        %2516 = vmatpush1.bf16.msra.mxu0 0
        %2517 = vmatprep.subr.bf16.mxu0 0
        %2518 = vmatpush1.bf16.msra.mxu0 0
        %2519 = vmatprep.subr.bf16.mxu0 0
        %2520 = vmatpush1.bf16.msra.mxu0 0
        %2521 = vmatprep.subr.bf16.mxu0 0
        %2522 = vmatpush1.bf16.msra.mxu0 0
        %2523 = vmatprep.subr.bf16.mxu0 0
        %2524 = vmatpush1.bf16.msra.mxu0 0
        %2525 = vmatprep.subr.bf16.mxu0 0
        %2526 = vmatpush1.bf16.msra.mxu0 0
        %2527 = vmatprep.subr.bf16.mxu0 0
        %2528 = vmatpush1.bf16.msra.mxu0 0
        %2529 = vmatprep.subr.bf16.mxu0 0
        %2530 = vmatpush1.bf16.msra.mxu0 0
        %2531 = vmatprep.mubr.bf16.mxu0 0
        %2532 = vmatmul.mubr.bf16.gmra.mrb[0].mxu0 %v2426
        %v2533 = vpop.f32.mrb[0].mxu0
        %v2534 = vadd.f32 %v2449, %v2533
        %v2535 = vpop.f32.mrb[0].mxu0
        %v2536 = vpop.f32.mrb[0].mxu0
        %v2537 = vadd.f32 %v2449, %v2536
        %v2538 = vpop.f32.mrb[0].mxu0
        %2539 = vmatprep.mubr.bf16.mxu0 0
        %2540 = vmatmul.mubr.bf16.gmra.mrb[0].mxu0 %v2427
        %v2541 = vpop.f32.mrb[0].mxu0
        %v2542 = vadd.f32 %v2449, %v2541
        %v2543 = vpop.f32.mrb[0].mxu0
        %v2544 = vpop.f32.mrb[0].mxu0
        %v2545 = vadd.f32 %v2449, %v2544
        %v2546 = vpop.f32.mrb[0].mxu0
        %2547 = vdwg.mxu0
        %v2548 = vmax.f32 %v2534, 0.0
        %v2549 = vmax.f32 %v2537, 0.0
        %v2550 = vmax.f32 %v2542, 0.0
        %v2551 = vmax.f32 %v2545, 0.0
        %v2552 = vpack.c.bf16 %v2549, %v2548
        %v2553 = vpack.c.bf16 %v2551, %v2550
        %v2554 = vld [vmem:[#allocation7] sm:$0xf]
        %v2555 = vld [vmem:[#allocation7 + $0x4] sm:$0xf]
        %v2556 = vld [vmem:[#allocation7 + $0x8] sm:$0xf]
        %v2557 = vld [vmem:[#allocation7 + $0xc] sm:$0xf]
        %v2558 = vld [vmem:[#allocation7 + $0x10] sm:$0xf]
        %v2559 = vld [vmem:[#allocation7 + $0x14] sm:$0xf]
        %v2560 = vld [vmem:[#allocation7 + $0x18] sm:$0xf]
        %v2561 = vld [vmem:[#allocation7 + $0x1c] sm:$0xf]
        %v2562 = vld [vmem:[%s9] sm:$0x1]
        %v2564 = vlaneseq
        %v2565 = vshrl.u32 %v2564, 7
        %v2566 = vsub.s32 0, %v2565
        %v2567 = vrot.slane %v2562, %v2566
        %v2577 = vunpack.c.l.b16 %v2554
        %v2578 = vunpack.c.l.b16 %v2555
        %v2579 = vunpack.c.l.b16 %v2556
        %v2580 = vunpack.c.l.b16 %v2557
        %v2581 = vunpack.c.l.b16 %v2558
        %v2582 = vunpack.c.l.b16 %v2559
        %v2583 = vunpack.c.l.b16 %v2560
        %v2584 = vunpack.c.l.b16 %v2561
        %v2585 = vpack.c.b16 %v2578, %v2577
        %v2586 = vpack.c.b16 %v2580, %v2579
        %v2587 = vpack.c.b16 %v2582, %v2581
        %v2588 = vpack.c.b16 %v2584, %v2583
        %vm2593 = vcmask 523264
        %v2595 = vsel %vm2593, %v2552, 0
        %v2598 = vsel %vm2593, %v2553, 0
        %2600 = vmatprep.subr.bf16.mxu0 0
        %2601 = vmatpush1.bf16.msra.mxu0 %v2585
        %2602 = vmatprep.subr.bf16.mxu0 0
        %2603 = vmatpush1.bf16.msra.mxu0 %v2586
        %2604 = vmatprep.subr.bf16.mxu0 0
        %2605 = vmatpush1.bf16.msra.mxu0 %v2587
        %2606 = vmatprep.subr.bf16.mxu0 0
        %2607 = vmatpush1.bf16.msra.mxu0 %v2588
        %2608 = vmatprep.subr.bf16.mxu0 0
        %2609 = vmatpush1.bf16.msra.mxu0 0
        %2610 = vmatprep.subr.bf16.mxu0 0
        %2611 = vmatpush1.bf16.msra.mxu0 0
        %2612 = vmatprep.subr.bf16.mxu0 0
        %2613 = vmatpush1.bf16.msra.mxu0 0
        %2614 = vmatprep.subr.bf16.mxu0 0
        %2615 = vmatpush1.bf16.msra.mxu0 0
        %2616 = vmatprep.subr.bf16.mxu0 0
        %2617 = vmatpush1.bf16.msra.mxu0 0
        %2618 = vmatprep.subr.bf16.mxu0 0
        %2619 = vmatpush1.bf16.msra.mxu0 0
        %2620 = vmatprep.subr.bf16.mxu0 0
        %2621 = vmatpush1.bf16.msra.mxu0 0
        %2622 = vmatprep.subr.bf16.mxu0 0
        %2623 = vmatpush1.bf16.msra.mxu0 0
        %2624 = vmatprep.subr.bf16.mxu0 0
        %2625 = vmatpush1.bf16.msra.mxu0 0
        %2626 = vmatprep.subr.bf16.mxu0 0
        %2627 = vmatpush1.bf16.msra.mxu0 0
        %2628 = vmatprep.subr.bf16.mxu0 0
        %2629 = vmatpush1.bf16.msra.mxu0 0
        %2630 = vmatprep.subr.bf16.mxu0 0
        %2631 = vmatpush1.bf16.msra.mxu0 0
        %2632 = vmatprep.mubr.bf16.mxu0 0
        %2633 = vmatmul.mubr.bf16.gmra.mrb[0].mxu0 %v2595
        %v2634 = vpop.f32.mrb[0].mxu0
        %v2635 = vadd.f32 %v2567, %v2634
        %v2636 = vpop.f32.mrb[0].mxu0
        %v2637 = vpop.f32.mrb[0].mxu0
        %v2638 = vadd.f32 %v2567, %v2637
        %v2639 = vpop.f32.mrb[0].mxu0
        %2640 = vmatprep.mubr.bf16.mxu0 0
        %2641 = vmatmul.mubr.bf16.gmra.mrb[0].mxu0 %v2598
        %v2642 = vpop.f32.mrb[0].mxu0
        %v2643 = vadd.f32 %v2567, %v2642
        %v2644 = vpop.f32.mrb[0].mxu0
        %v2645 = vpop.f32.mrb[0].mxu0
        %v2646 = vadd.f32 %v2567, %v2645
        %v2647 = vpop.f32.mrb[0].mxu0
        %2648 = vdwg.mxu0
        %2649 = vst [vmem:[%s419] sm:$0xff] %v2635
        %2650 = vst [vmem:[%s419 + $0x8] sm:$0xff] %v2638
        %2651 = vst [vmem:[%s419 + $0x10] sm:$0xff] %v2643
        %2652 = vst [vmem:[%s419 + $0x18] sm:$0xff] %v2646
        %s2653 = sand.u32 %s256, 1
        %s2654 = scalar_lea.sflag [#allocation4], %s2653
        %s2655 = sand.u32 %s256, 1
        %s2656 = smul.addr %s2655, 32
        %s2657 = scalar_lea.vmem [#allocation8], %s2656
        // Predicated region
        $region73: #{tpu_custom_call.1} parent=59 // pred_check
          %p2658 = pneg %p266
        $region74: #{tpu_custom_call.1} parent=59 // pred_check_branch
          %2660 = sbr.rel (%p2658) target = $region76
        $region75: #{tpu_custom_call.1} parent=59 // pred_region
          %s2662 = ssub.s32 512, 512
          %2663 = vsyncadd %s2654, %s2662
          %s2664 = smul.addr %s28, 4
          %s2665 = smul.addr %s2664, 128
          %s2666 = scalar_lea.hbm %s10, %s2665
          %s2667 = sshll.u32 %s2657, 4
          %s2668 = int_to_ptr.vmem [resolvable:$true] %s2667
          %2673 = dma.vmem_to_hbm [thread:$0]  %s2668, 512, %s2666, %s2654, 128, 128, 8
        $region76: #{tpu_custom_call.1} parent=59 // pred_fallthru
          _
      $region60: #{tpu_custom_call.1} parent=5 // pred_fallthru
        _
      %p2674 = scmp.le.s32.totalorder 2, %s23
      // Predicated region
      $region77: #{tpu_custom_call.1} parent=5 // pred_check
        %p2675 = pneg %p2674
      $region78: #{tpu_custom_call.1} parent=5 // pred_check_branch
        %2677 = sbr.rel (%p2675) target = $region80
      $region79: #{tpu_custom_call.1} parent=5 // pred_region
        %s2678 = ssub.s32 %s23, 2
        // Predicated region
        $region81: #{tpu_custom_call.1} parent=79 // pred_check
          %p2679 = pneg %p272
        $region82: #{tpu_custom_call.1} parent=79 // pred_check_branch
          %2681 = sbr.rel (%p2679) target = $region84
        $region83: #{tpu_custom_call.1} parent=79 // pred_region
          %s2682 = sand.u32 %s257, 1
          %s2683 = scalar_lea.sflag [#allocation4], %s2682
          %s2684 = sand.u32 %s257, 1
          %s2685 = smul.addr %s2684, 32
          %s2686 = scalar_lea.vmem [#allocation8], %s2685
          %2687 = dma.done %s2683, 512
        $region84: #{tpu_custom_call.1} parent=79 // pred_fallthru
          _
      $region80: #{tpu_custom_call.1} parent=5 // pred_fallthru
        _
    $region6: #{tpu_custom_call.1} parent=1 // loop_footer
      %s27 = sadd.s32 1, %s23
    $region7: #{tpu_custom_call.1} parent=1 // loop_footer_branch
      %22 = sbr.rel target = $region3
    $region8: #{tpu_custom_call.1} parent=1 // loop_exit
      _
    %2688 = vsyncpa [#allocation3], 1
    %s2689 = scalar_lea.sflag [#allocation3], 1
    %2690 = vsyncpa %s2689, 1
    %2691 = vsyncpa [#allocation6], 1
    %2692 = vsyncpa [#allocation4], 1
    %s2693 = scalar_lea.sflag [#allocation4], 1
    %2694 = vsyncpa %s2693, 1

</llo_original>
